<compile_context>
chip_gen: v7x
topology: tpu7x:2x2x1
jax: 0.10.0
libtpu: 0.0.40
codegen_flags: <defaults>
</compile_context>

<pallas_src>
import functools

import jax
import jax.numpy as jnp
from jax import lax
from jax.experimental import pallas as pl
from jax.experimental.pallas import tpu as pltpu

NEG_SLOPE = 0.2
BN_EPS = 1e-5
KW = 4       # kernel_size
PADW = 1     # padding
LANE = 128
TM_MAX = 256                     # M-tile rows: fits v5e 16 MiB scoped / v7x 64 MiB VMEM
VMEM_LIMIT = 32 * 1024 * 1024    # explicit scoped-VMEM budget, safe on v5e/v6e/v7x


def _round_up(x, m):
    return (x + m - 1) // m * m


# ------------------------------ Pallas kernels ------------------------------

def _conv_bias_act_kernel(x_ref, w_ref, b_ref, o_ref, *, apply_act):
    """Conv tile (bf16 matmul, f32 acc) + bias (+ optional LeakyReLU)."""
    acc = jnp.dot(x_ref[...], w_ref[...], preferred_element_type=jnp.float32)
    acc = acc + b_ref[...]
    if apply_act:
        acc = jnp.where(acc >= 0, acc, NEG_SLOPE * acc)
    o_ref[...] = acc


def _conv_stats_kernel(x_ref, w_ref, o_ref, sum_ref, ssq_ref):
    """Conv tile + accumulate exact per-channel sum / sum-of-squares over M."""
    @pl.when(pl.program_id(0) == 0)
    def _init():
        sum_ref[...] = jnp.zeros_like(sum_ref)
        ssq_ref[...] = jnp.zeros_like(ssq_ref)

    acc = jnp.dot(x_ref[...], w_ref[...], preferred_element_type=jnp.float32)
    o_ref[...] = acc
    # Zero-padded rows produce exactly-zero conv values -> sums unaffected.
    sum_ref[...] += jnp.sum(acc, axis=0, keepdims=True)
    ssq_ref[...] += jnp.sum(acc * acc, axis=0, keepdims=True)


def _bn_lrelu_kernel(y_ref, sum_ref, ssq_ref, gamma_ref, beta_ref, o_ref, *, inv_m):
    """BatchNorm (training-mode batch stats) + affine + LeakyReLU on one M tile."""
    mean = sum_ref[...] * inv_m
    var = ssq_ref[...] * inv_m - mean * mean
    scale = gamma_ref[...] * lax.rsqrt(var + BN_EPS)
    shift = beta_ref[...] - mean * scale
    y = y_ref[...] * scale + shift
    o_ref[...] = jnp.where(y >= 0, y, NEG_SLOPE * y)


# ------------------------------ pallas_call wrappers ------------------------------

def _matmul_cost(m, k, c):
    return pl.CostEstimate(flops=2 * m * k * c, transcendentals=0,
                           bytes_accessed=int(m * k * 2 + k * c * 2 + m * c * 4))


def _conv_bias_call(patches, wmat, bias, apply_act, tm):
    m_pad, k_pad = patches.shape
    c_pad = wmat.shape[1]
    kern = functools.partial(_conv_bias_act_kernel, apply_act=apply_act)
    return pl.pallas_call(
        kern,
        out_shape=jax.ShapeDtypeStruct((m_pad, c_pad), jnp.float32),
        grid=(m_pad // tm,),
        in_specs=[pl.BlockSpec((tm, k_pad), lambda i: (i, 0)),
                  pl.BlockSpec((k_pad, c_pad), lambda i: (0, 0)),
                  pl.BlockSpec((1, c_pad), lambda i: (0, 0))],
        out_specs=pl.BlockSpec((tm, c_pad), lambda i: (i, 0)),
        compiler_params=pltpu.CompilerParams(
            dimension_semantics=("parallel",),
            vmem_limit_bytes=VMEM_LIMIT),
        cost_estimate=_matmul_cost(m_pad, k_pad, c_pad),
    )(patches, wmat, bias)


def _conv_bn_call(patches, wmat, gamma, beta, m_valid, tm):
    m_pad, k_pad = patches.shape
    c_pad = wmat.shape[1]

    # Pass 1: tiled conv matmul + exact per-channel sum / sum-of-squares.
    conv_out, ch_sum, ch_ssq = pl.pallas_call(
        _conv_stats_kernel,
        out_shape=(jax.ShapeDtypeStruct((m_pad, c_pad), jnp.float32),
                   jax.ShapeDtypeStruct((1, c_pad), jnp.float32),
                   jax.ShapeDtypeStruct((1, c_pad), jnp.float32)),
        grid=(m_pad // tm,),
        in_specs=[pl.BlockSpec((tm, k_pad), lambda i: (i, 0)),
                  pl.BlockSpec((k_pad, c_pad), lambda i: (0, 0))],
        out_specs=(pl.BlockSpec((tm, c_pad), lambda i: (i, 0)),
                   pl.BlockSpec((1, c_pad), lambda i: (0, 0)),
                   pl.BlockSpec((1, c_pad), lambda i: (0, 0))),
        compiler_params=pltpu.CompilerParams(
            dimension_semantics=("arbitrary",),   # stats blocks revisited across M
            vmem_limit_bytes=VMEM_LIMIT),
        cost_estimate=_matmul_cost(m_pad, k_pad, c_pad),
    )(patches, wmat)

    # Pass 2: normalize + gamma/beta + LeakyReLU, independent tiles over M.
    kern = functools.partial(_bn_lrelu_kernel, inv_m=1.0 / float(m_valid))
    return pl.pallas_call(
        kern,
        out_shape=jax.ShapeDtypeStruct((m_pad, c_pad), jnp.float32),
        grid=(m_pad // tm,),
        in_specs=[pl.BlockSpec((tm, c_pad), lambda i: (i, 0)),
                  pl.BlockSpec((1, c_pad), lambda i: (0, 0)),
                  pl.BlockSpec((1, c_pad), lambda i: (0, 0)),
                  pl.BlockSpec((1, c_pad), lambda i: (0, 0)),
                  pl.BlockSpec((1, c_pad), lambda i: (0, 0))],
        out_specs=pl.BlockSpec((tm, c_pad), lambda i: (i, 0)),
        compiler_params=pltpu.CompilerParams(
            dimension_semantics=("parallel",),
            vmem_limit_bytes=VMEM_LIMIT),
        cost_estimate=pl.CostEstimate(
            flops=4 * m_pad * c_pad, transcendentals=c_pad,
            bytes_accessed=int(2 * m_pad * c_pad * 4 + 4 * c_pad * 4)),
    )(conv_out, ch_sum, ch_ssq, gamma, beta)


# ------------------------------ layer glue ------------------------------

def _im2col(x_nhwc, k, stride, pad):
    """(N,H,W,C) -> (N*OH*OW, k*k*C), (kh, kw, C)-ordered, via static strided slices."""
    x = jnp.pad(x_nhwc, ((0, 0), (pad, pad), (pad, pad), (0, 0)))
    N, H, W, C = x.shape
    OH = (H - k) // stride + 1
    OW = (W - k) // stride + 1
    cols = []
    for i in range(k):
        for j in range(k):
            cols.append(lax.slice(
                x, (0, i, j, 0),
                (N, i + (OH - 1) * stride + 1, j + (OW - 1) * stride + 1, C),
                (1, stride, stride, 1)))
    patches = jnp.stack(cols, axis=3).reshape(N * OH * OW, k * k * C)
    return patches, OH, OW


def _apply_layer(x_nhwc, layer):
    stride = layer["stride"]
    patches, OH, OW = _im2col(x_nhwc, KW, stride, PADW)
    M, K = patches.shape
    cout = layer["w"].shape[0]

    k_pad = _round_up(K, LANE)
    c_pad = _round_up(cout, LANE)
    tm = min(TM_MAX, _round_up(M, 8))
    m_pad = _round_up(M, tm)

    # Zero padding: contributes exactly 0 to matmul results and BN sums.
    patches_p = jnp.pad(patches, ((0, m_pad - M), (0, k_pad - K))).astype(jnp.bfloat16)
    wmat = jnp.transpose(layer["w"], (2, 3, 1, 0)).reshape(K, cout)
    wmat = jnp.pad(wmat, ((0, k_pad - K), (0, c_pad - cout))).astype(jnp.bfloat16)

    if layer["kind"] == "conv_bn_lrelu":
        gamma = jnp.pad(layer["gamma"], (0, c_pad - cout)).reshape(1, c_pad)
        beta = jnp.pad(layer["beta"], (0, c_pad - cout)).reshape(1, c_pad)
        out = _conv_bn_call(patches_p, wmat, gamma, beta, M, tm)
    else:
        bias = jnp.pad(layer["b"], (0, c_pad - cout)).reshape(1, c_pad)
        out = _conv_bias_call(patches_p, wmat, bias,
                              layer["kind"] == "conv_bias_lrelu", tm)

    N = x_nhwc.shape[0]
    return out[:M, :cout].reshape(N, OH, OW, cout)


def patch_discriminator_forward(x_nchw, layers):
    x = jnp.transpose(x_nchw, (0, 2, 3, 1))   # NCHW -> NHWC
    for layer in layers:
        x = _apply_layer(x, layer)
    return jnp.transpose(x, (0, 3, 1, 2))     # NHWC -> NCHW


# ------------------------- parameter initialization -------------------------

def init_patch_discriminator(key, input_nc, ndf=64, n_layers=3):
    """Mirror PyTorch __init__ layer construction; deterministic synthetic init."""
    layers = []
    keys = iter(jax.random.split(key, 4 * (n_layers + 2)))

    def conv_w(cin, cout):
        return jax.random.normal(next(keys), (cout, cin, KW, KW), jnp.float32) * 0.02

    # conv(input_nc -> ndf, s=2) + LeakyReLU
    layers.append(dict(kind="conv_bias_lrelu", stride=2,
                       w=conv_w(input_nc, ndf),
                       b=jax.random.normal(next(keys), (ndf,), jnp.float32) * 0.02))
    nf_mult = 1
    for n in range(1, n_layers):
        nf_mult_prev, nf_mult = nf_mult, min(2 ** n, 8)
        cout = ndf * nf_mult
        layers.append(dict(kind="conv_bn_lrelu", stride=2,
                           w=conv_w(ndf * nf_mult_prev, cout),
                           gamma=1.0 + 0.1 * jax.random.normal(next(keys), (cout,), jnp.float32),
                           beta=0.1 * jax.random.normal(next(keys), (cout,), jnp.float32)))
    nf_mult_prev, nf_mult = nf_mult, min(2 ** n_layers, 8)
    cout = ndf * nf_mult
    layers.append(dict(kind="conv_bn_lrelu", stride=1,
                       w=conv_w(ndf * nf_mult_prev, cout),
                       gamma=1.0 + 0.1 * jax.random.normal(next(keys), (cout,), jnp.float32),
                       beta=0.1 * jax.random.normal(next(keys), (cout,), jnp.float32)))
    # final conv(ndf*nf_mult -> 1, s=1) with bias, no activation (use_sigmoid=False)
    layers.append(dict(kind="conv_bias", stride=1,
                       w=conv_w(cout, 1),
                       b=jax.random.normal(next(keys), (1,), jnp.float32) * 0.02))
    return layers


# --------------------------- pure-JAX reference ------------------------------

def reference_forward(x_nchw, layers):
    """Reference with convs at bf16 input / f32 accumulation (matches MXU precision)."""
    x = x_nchw
    for layer in layers:
        s = layer["stride"]
        y = lax.conv_general_dilated(
            x.astype(jnp.bfloat16), layer["w"].astype(jnp.bfloat16),
            (s, s), ((PADW, PADW), (PADW, PADW)),
            dimension_numbers=("NCHW", "OIHW", "NCHW"),
            preferred_element_type=jnp.float32)
        if layer["kind"] == "conv_bias_lrelu":
            y = y + layer["b"][None, :, None, None]
            y = jnp.where(y >= 0, y, NEG_SLOPE * y)
        elif layer["kind"] == "conv_bn_lrelu":
            mean = jnp.mean(y, axis=(0, 2, 3), keepdims=True)
            var = jnp.mean((y - mean) ** 2, axis=(0, 2, 3), keepdims=True)
            y = (y - mean) * lax.rsqrt(var + BN_EPS)
            y = y * layer["gamma"][None, :, None, None] + layer["beta"][None, :, None, None]
            y = jnp.where(y >= 0, y, NEG_SLOPE * y)
        else:
            y = y + layer["b"][None, :, None, None]
        x = y
    return x


# ----------------------------------- main ------------------------------------

if __name__ == "__main__":
    key = jax.random.PRNGKey(0)
    k_param, k_data = jax.random.split(key)

    # Small shapes: batch=2, input_nc=3, ndf=16, n_layers=3.  Spatial 32 is the
    # smallest power of two keeping every PatchGAN conv output non-empty.
    input_nc, ndf, n_layers = 3, 16, 3
    x = jax.random.normal(k_data, (2, input_nc, 32, 32), jnp.float32)

    layers = init_patch_discriminator(k_param, input_nc, ndf=ndf, n_layers=n_layers)

    fwd = jax.jit(lambda inp: patch_discriminator_forward(inp, layers))
    out = jax.block_until_ready(fwd(x))

    ref = jax.block_until_ready(reference_forward(x, layers))
    assert out.shape == ref.shape == (2, 1, 2, 2), (out.shape, ref.shape)
    max_err = float(jnp.max(jnp.abs(out - ref)))
    assert jnp.allclose(out, ref, rtol=2e-3, atol=2e-3), max_err

    print("KERNEL_OK")
</pallas_src>

<mosaic_0001>
module attributes {stable_mosaic.version = 11 : i64} {
  func.func @_conv_bias_act_kernel(%arg0: i32, %arg1: memref<256x128xbf16, #tpu.memory_space<vmem>>, %arg2: memref<128x128xbf16, #tpu.memory_space<vmem>>, %arg3: memref<1x128xf32, #tpu.memory_space<vmem>>, %arg4: memref<256x128xf32, #tpu.memory_space<vmem>>) attributes {dimension_semantics = [#tpu.dimension_semantics<parallel>], iteration_bounds = array<i64: 2>, scalar_prefetch = 0 : i64, scratch_operands = 0 : i64, tpu.core_type = #tpu.core_type<tc>, window_params = [{transform_indices = @transform_0, window_bounds = array<i64: 256, 128>}, {pipeline_mode = #tpu.pipeline_mode<synchronous>, transform_indices = @transform_1, window_bounds = array<i64: 128, 128>}, {pipeline_mode = #tpu.pipeline_mode<synchronous>, transform_indices = @transform_2, window_bounds = array<i64: 1, 128>}, {transform_indices = @transform_3, window_bounds = array<i64: 256, 128>}]} {
    %c0 = arith.constant 0 : index
    %c0_0 = arith.constant 0 : index
    %0 = vector.load %arg1[%c0, %c0_0] : memref<256x128xbf16, #tpu.memory_space<vmem>>, vector<256x128xbf16>
    %c0_1 = arith.constant 0 : index
    %c0_2 = arith.constant 0 : index
    %1 = vector.load %arg2[%c0_1, %c0_2] : memref<128x128xbf16, #tpu.memory_space<vmem>>, vector<128x128xbf16>
    %cst = arith.constant dense<0.000000e+00> : vector<256x128xf32>
    %2 = tpu.matmul %0, %1, %cst {dimension_numbers = #tpu.dot_dimension_numbers<[1], [0], [0], [1], [0, 0, 1, 1], [], []>} : vector<256x128xbf16>, vector<128x128xbf16>, vector<256x128xf32> -> vector<256x128xf32>
    %c0_3 = arith.constant 0 : index
    %c0_4 = arith.constant 0 : index
    %3 = vector.load %arg3[%c0_3, %c0_4] : memref<1x128xf32, #tpu.memory_space<vmem>>, vector<1x128xf32>
    %4 = vector.broadcast %3 : vector<1x128xf32> to vector<256x128xf32>
    %5 = arith.addf %2, %4 : vector<256x128xf32>
    %cst_5 = arith.constant 0.000000e+00 : f32
    %6 = vector.broadcast %cst_5 : f32 to vector<256x128xf32>
    %7 = arith.cmpf oge, %5, %6 : vector<256x128xf32>
    %cst_6 = arith.constant 2.000000e-01 : f32
    %8 = vector.broadcast %cst_6 : f32 to vector<256x128xf32>
    %9 = arith.mulf %8, %5 : vector<256x128xf32>
    %10 = arith.select %7, %5, %9 : vector<256x128xi1>, vector<256x128xf32>
    %c0_7 = arith.constant 0 : index
    %c0_8 = arith.constant 0 : index
    %11 = vector.load %arg4[%c0_7, %c0_8] : memref<256x128xf32, #tpu.memory_space<vmem>>, vector<256x128xf32>
    tpu.vector_store %arg4[%c0_7, %c0_8], %10 {strides = array<i32>} : memref<256x128xf32, #tpu.memory_space<vmem>>, vector<256x128xf32>,
    return
  }
  func.func @transform_0(%arg0: i32) -> (i32, i32) {
    %c0_i32 = arith.constant 0 : i32
    %c0_i32_0 = arith.constant 0 : i32
    return %arg0, %c0_i32 : i32, i32
  }
  func.func @transform_1(%arg0: i32) -> (i32, i32) {
    %c0_i32 = arith.constant 0 : i32
    %c0_i32_0 = arith.constant 0 : i32
    %c0_i32_1 = arith.constant 0 : i32
    return %c0_i32, %c0_i32_0 : i32, i32
  }
  func.func @transform_2(%arg0: i32) -> (i32, i32) {
    %c0_i32 = arith.constant 0 : i32
    %c0_i32_0 = arith.constant 0 : i32
    %c0_i32_1 = arith.constant 0 : i32
    return %c0_i32, %c0_i32_0 : i32, i32
  }
  func.func @transform_3(%arg0: i32) -> (i32, i32) {
    %c0_i32 = arith.constant 0 : i32
    %c0_i32_0 = arith.constant 0 : i32
    return %arg0, %c0_i32 : i32, i32
  }
}

module attributes {stable_mosaic.version = 11 : i64} {
  func.func @_conv_stats_kernel(%arg0: i32, %arg1: memref<128x256xbf16, #tpu.memory_space<vmem>>, %arg2: memref<256x128xbf16, #tpu.memory_space<vmem>>, %arg3: memref<128x128xf32, #tpu.memory_space<vmem>>, %arg4: memref<1x128xf32, #tpu.memory_space<vmem>>, %arg5: memref<1x128xf32, #tpu.memory_space<vmem>>) attributes {dimension_semantics = [#tpu.dimension_semantics<arbitrary>], iteration_bounds = array<i64: 1>, scalar_prefetch = 0 : i64, scratch_operands = 0 : i64, tpu.core_type = #tpu.core_type<tc>, window_params = [{transform_indices = @transform_0, window_bounds = array<i64: 128, 256>}, {pipeline_mode = #tpu.pipeline_mode<synchronous>, transform_indices = @transform_1, window_bounds = array<i64: 256, 128>}, {transform_indices = @transform_2, window_bounds = array<i64: 128, 128>}, {pipeline_mode = #tpu.pipeline_mode<synchronous>, transform_indices = @transform_3, window_bounds = array<i64: 1, 128>}, {pipeline_mode = #tpu.pipeline_mode<synchronous>, transform_indices = @transform_4, window_bounds = array<i64: 1, 128>}]} {
    %c0_i32 = arith.constant 0 : i32
    %0 = arith.cmpi eq, %arg0, %c0_i32 : i32
    %1 = arith.extui %0 : i1 to i32
    %c0_i32_0 = arith.constant 0 : i32
    %2 = arith.cmpi ne, %1, %c0_i32_0 : i32
    scf.if %2 {
      %cst_16 = arith.constant 0.000000e+00 : f32
      %18 = vector.broadcast %cst_16 : f32 to vector<1x128xf32>
      %c0_17 = arith.constant 0 : index
      %c0_18 = arith.constant 0 : index
      %19 = vector.load %arg4[%c0_17, %c0_18] : memref<1x128xf32, #tpu.memory_space<vmem>>, vector<1x128xf32>
      tpu.vector_store %arg4[%c0_17, %c0_18], %18 {strides = array<i32>} : memref<1x128xf32, #tpu.memory_space<vmem>>, vector<1x128xf32>,
      %cst_19 = arith.constant 0.000000e+00 : f32
      %20 = vector.broadcast %cst_19 : f32 to vector<1x128xf32>
      %c0_20 = arith.constant 0 : index
      %c0_21 = arith.constant 0 : index
      %21 = vector.load %arg5[%c0_20, %c0_21] : memref<1x128xf32, #tpu.memory_space<vmem>>, vector<1x128xf32>
      tpu.vector_store %arg5[%c0_20, %c0_21], %20 {strides = array<i32>} : memref<1x128xf32, #tpu.memory_space<vmem>>, vector<1x128xf32>,
    } else {
    }
    %c0 = arith.constant 0 : index
    %c0_1 = arith.constant 0 : index
    %3 = vector.load %arg1[%c0, %c0_1] : memref<128x256xbf16, #tpu.memory_space<vmem>>, vector<128x256xbf16>
    %c0_2 = arith.constant 0 : index
    %c0_3 = arith.constant 0 : index
    %4 = vector.load %arg2[%c0_2, %c0_3] : memref<256x128xbf16, #tpu.memory_space<vmem>>, vector<256x128xbf16>
    %cst = arith.constant dense<0.000000e+00> : vector<128x128xf32>
    %5 = tpu.matmul %3, %4, %cst {dimension_numbers = #tpu.dot_dimension_numbers<[1], [0], [0], [1], [0, 0, 1, 1], [], []>} : vector<128x256xbf16>, vector<256x128xbf16>, vector<128x128xf32> -> vector<128x128xf32>
    %c0_4 = arith.constant 0 : index
    %c0_5 = arith.constant 0 : index
    %6 = vector.load %arg3[%c0_4, %c0_5] : memref<128x128xf32, #tpu.memory_space<vmem>>, vector<128x128xf32>
    tpu.vector_store %arg3[%c0_4, %c0_5], %5 {strides = array<i32>} : memref<128x128xf32, #tpu.memory_space<vmem>>, vector<128x128xf32>,
    %c0_6 = arith.constant 0 : index
    %c0_7 = arith.constant 0 : index
    %7 = vector.load %arg4[%c0_6, %c0_7] : memref<1x128xf32, #tpu.memory_space<vmem>>, vector<1x128xf32>
    %cst_8 = arith.constant dense<0.000000e+00> : vector<128xf32>
    %8 = vector.multi_reduction <add>, %5, %cst_8 [0] : vector<128x128xf32> to vector<128xf32>
    %9 = vector.shape_cast %8 : vector<128xf32> to vector<1x128xf32>
    %10 = arith.addf %7, %9 : vector<1x128xf32>
    %c0_9 = arith.constant 0 : index
    %c0_10 = arith.constant 0 : index
    %11 = vector.load %arg4[%c0_9, %c0_10] : memref<1x128xf32, #tpu.memory_space<vmem>>, vector<1x128xf32>
    tpu.vector_store %arg4[%c0_9, %c0_10], %10 {strides = array<i32>} : memref<1x128xf32, #tpu.memory_space<vmem>>, vector<1x128xf32>,
    %c0_11 = arith.constant 0 : index
    %c0_12 = arith.constant 0 : index
    %12 = vector.load %arg5[%c0_11, %c0_12] : memref<1x128xf32, #tpu.memory_space<vmem>>, vector<1x128xf32>
    %13 = arith.mulf %5, %5 : vector<128x128xf32>
    %cst_13 = arith.constant dense<0.000000e+00> : vector<128xf32>
    %14 = vector.multi_reduction <add>, %13, %cst_13 [0] : vector<128x128xf32> to vector<128xf32>
    %15 = vector.shape_cast %14 : vector<128xf32> to vector<1x128xf32>
    %16 = arith.addf %12, %15 : vector<1x128xf32>
    %c0_14 = arith.constant 0 : index
    %c0_15 = arith.constant 0 : index
    %17 = vector.load %arg5[%c0_14, %c0_15] : memref<1x128xf32, #tpu.memory_space<vmem>>, vector<1x128xf32>
    tpu.vector_store %arg5[%c0_14, %c0_15], %16 {strides = array<i32>} : memref<1x128xf32, #tpu.memory_space<vmem>>, vector<1x128xf32>,
    return
  }
  func.func @transform_0(%arg0: i32) -> (i32, i32) {
    %c0_i32 = arith.constant 0 : i32
    %c0_i32_0 = arith.constant 0 : i32
    return %arg0, %c0_i32 : i32, i32
  }
  func.func @transform_1(%arg0: i32) -> (i32, i32) {
    %c0_i32 = arith.constant 0 : i32
    %c0_i32_0 = arith.constant 0 : i32
    %c0_i32_1 = arith.constant 0 : i32
    return %c0_i32, %c0_i32_0 : i32, i32
  }
  func.func @transform_2(%arg0: i32) -> (i32, i32) {
    %c0_i32 = arith.constant 0 : i32
    %c0_i32_0 = arith.constant 0 : i32
    return %arg0, %c0_i32 : i32, i32
  }
  func.func @transform_3(%arg0: i32) -> (i32, i32) {
    %c0_i32 = arith.constant 0 : i32
    %c0_i32_0 = arith.constant 0 : i32
    %c0_i32_1 = arith.constant 0 : i32
    return %c0_i32, %c0_i32_0 : i32, i32
  }
  func.func @transform_4(%arg0: i32) -> (i32, i32) {
    %c0_i32 = arith.constant 0 : i32
    %c0_i32_0 = arith.constant 0 : i32
    %c0_i32_1 = arith.constant 0 : i32
    return %c0_i32, %c0_i32_0 : i32, i32
  }
}

module attributes {stable_mosaic.version = 11 : i64} {
  func.func @_bn_lrelu_kernel(%arg0: i32, %arg1: memref<128x128xf32, #tpu.memory_space<vmem>>, %arg2: memref<1x128xf32, #tpu.memory_space<vmem>>, %arg3: memref<1x128xf32, #tpu.memory_space<vmem>>, %arg4: memref<1x128xf32, #tpu.memory_space<vmem>>, %arg5: memref<1x128xf32, #tpu.memory_space<vmem>>, %arg6: memref<128x128xf32, #tpu.memory_space<vmem>>) attributes {dimension_semantics = [#tpu.dimension_semantics<parallel>], iteration_bounds = array<i64: 1>, scalar_prefetch = 0 : i64, scratch_operands = 0 : i64, tpu.core_type = #tpu.core_type<tc>, window_params = [{transform_indices = @transform_0, window_bounds = array<i64: 128, 128>}, {pipeline_mode = #tpu.pipeline_mode<synchronous>, transform_indices = @transform_1, window_bounds = array<i64: 1, 128>}, {pipeline_mode = #tpu.pipeline_mode<synchronous>, transform_indices = @transform_2, window_bounds = array<i64: 1, 128>}, {pipeline_mode = #tpu.pipeline_mode<synchronous>, transform_indices = @transform_3, window_bounds = array<i64: 1, 128>}, {pipeline_mode = #tpu.pipeline_mode<synchronous>, transform_indices = @transform_4, window_bounds = array<i64: 1, 128>}, {transform_indices = @transform_5, window_bounds = array<i64: 128, 128>}]} {
    %c0 = arith.constant 0 : index
    %c0_0 = arith.constant 0 : index
    %0 = vector.load %arg2[%c0, %c0_0] : memref<1x128xf32, #tpu.memory_space<vmem>>, vector<1x128xf32>
    %cst = arith.constant 7.812500e-03 : f32
    %1 = vector.broadcast %cst : f32 to vector<1x128xf32>
    %2 = arith.mulf %0, %1 : vector<1x128xf32>
    %c0_1 = arith.constant 0 : index
    %c0_2 = arith.constant 0 : index
    %3 = vector.load %arg3[%c0_1, %c0_2] : memref<1x128xf32, #tpu.memory_space<vmem>>, vector<1x128xf32>
    %cst_3 = arith.constant 7.812500e-03 : f32
    %4 = vector.broadcast %cst_3 : f32 to vector<1x128xf32>
    %5 = arith.mulf %3, %4 : vector<1x128xf32>
    %6 = arith.mulf %2, %2 : vector<1x128xf32>
    %7 = arith.subf %5, %6 : vector<1x128xf32>
    %c0_4 = arith.constant 0 : index
    %c0_5 = arith.constant 0 : index
    %8 = vector.load %arg4[%c0_4, %c0_5] : memref<1x128xf32, #tpu.memory_space<vmem>>, vector<1x128xf32>
    %cst_6 = arith.constant 9.99999974E-6 : f32
    %9 = vector.broadcast %cst_6 : f32 to vector<1x128xf32>
    %10 = arith.addf %7, %9 : vector<1x128xf32>
    %11 = math.rsqrt %10 : vector<1x128xf32>
    %12 = arith.mulf %8, %11 : vector<1x128xf32>
    %c0_7 = arith.constant 0 : index
    %c0_8 = arith.constant 0 : index
    %13 = vector.load %arg5[%c0_7, %c0_8] : memref<1x128xf32, #tpu.memory_space<vmem>>, vector<1x128xf32>
    %14 = arith.mulf %2, %12 : vector<1x128xf32>
    %15 = arith.subf %13, %14 : vector<1x128xf32>
    %c0_9 = arith.constant 0 : index
    %c0_10 = arith.constant 0 : index
    %16 = vector.load %arg1[%c0_9, %c0_10] : memref<128x128xf32, #tpu.memory_space<vmem>>, vector<128x128xf32>
    %17 = vector.broadcast %12 : vector<1x128xf32> to vector<128x128xf32>
    %18 = arith.mulf %16, %17 : vector<128x128xf32>
    %19 = vector.broadcast %15 : vector<1x128xf32> to vector<128x128xf32>
    %20 = arith.addf %18, %19 : vector<128x128xf32>
    %cst_11 = arith.constant 0.000000e+00 : f32
    %21 = vector.broadcast %cst_11 : f32 to vector<128x128xf32>
    %22 = arith.cmpf oge, %20, %21 : vector<128x128xf32>
    %cst_12 = arith.constant 2.000000e-01 : f32
    %23 = vector.broadcast %cst_12 : f32 to vector<128x128xf32>
    %24 = arith.mulf %23, %20 : vector<128x128xf32>
    %25 = arith.select %22, %20, %24 : vector<128x128xi1>, vector<128x128xf32>
    %c0_13 = arith.constant 0 : index
    %c0_14 = arith.constant 0 : index
    %26 = vector.load %arg6[%c0_13, %c0_14] : memref<128x128xf32, #tpu.memory_space<vmem>>, vector<128x128xf32>
    tpu.vector_store %arg6[%c0_13, %c0_14], %25 {strides = array<i32>} : memref<128x128xf32, #tpu.memory_space<vmem>>, vector<128x128xf32>,
    return
  }
  func.func @transform_0(%arg0: i32) -> (i32, i32) {
    %c0_i32 = arith.constant 0 : i32
    %c0_i32_0 = arith.constant 0 : i32
    return %arg0, %c0_i32 : i32, i32
  }
  func.func @transform_1(%arg0: i32) -> (i32, i32) {
    %c0_i32 = arith.constant 0 : i32
    %c0_i32_0 = arith.constant 0 : i32
    %c0_i32_1 = arith.constant 0 : i32
    return %c0_i32, %c0_i32_0 : i32, i32
  }
  func.func @transform_2(%arg0: i32) -> (i32, i32) {
    %c0_i32 = arith.constant 0 : i32
    %c0_i32_0 = arith.constant 0 : i32
    %c0_i32_1 = arith.constant 0 : i32
    return %c0_i32, %c0_i32_0 : i32, i32
  }
  func.func @transform_3(%arg0: i32) -> (i32, i32) {
    %c0_i32 = arith.constant 0 : i32
    %c0_i32_0 = arith.constant 0 : i32
    %c0_i32_1 = arith.constant 0 : i32
    return %c0_i32, %c0_i32_0 : i32, i32
  }
  func.func @transform_4(%arg0: i32) -> (i32, i32) {
    %c0_i32 = arith.constant 0 : i32
    %c0_i32_0 = arith.constant 0 : i32
    %c0_i32_1 = arith.constant 0 : i32
    return %c0_i32, %c0_i32_0 : i32, i32
  }
  func.func @transform_5(%arg0: i32) -> (i32, i32) {
    %c0_i32 = arith.constant 0 : i32
    %c0_i32_0 = arith.constant 0 : i32
    return %arg0, %c0_i32 : i32, i32
  }
}

module attributes {stable_mosaic.version = 11 : i64} {
  func.func @_conv_stats_kernel(%arg0: i32, %arg1: memref<32x512xbf16, #tpu.memory_space<vmem>>, %arg2: memref<512x128xbf16, #tpu.memory_space<vmem>>, %arg3: memref<32x128xf32, #tpu.memory_space<vmem>>, %arg4: memref<1x128xf32, #tpu.memory_space<vmem>>, %arg5: memref<1x128xf32, #tpu.memory_space<vmem>>) attributes {dimension_semantics = [#tpu.dimension_semantics<arbitrary>], iteration_bounds = array<i64: 1>, scalar_prefetch = 0 : i64, scratch_operands = 0 : i64, tpu.core_type = #tpu.core_type<tc>, window_params = [{transform_indices = @transform_0, window_bounds = array<i64: 32, 512>}, {pipeline_mode = #tpu.pipeline_mode<synchronous>, transform_indices = @transform_1, window_bounds = array<i64: 512, 128>}, {transform_indices = @transform_2, window_bounds = array<i64: 32, 128>}, {pipeline_mode = #tpu.pipeline_mode<synchronous>, transform_indices = @transform_3, window_bounds = array<i64: 1, 128>}, {pipeline_mode = #tpu.pipeline_mode<synchronous>, transform_indices = @transform_4, window_bounds = array<i64: 1, 128>}]} {
    %c0_i32 = arith.constant 0 : i32
    %0 = arith.cmpi eq, %arg0, %c0_i32 : i32
    %1 = arith.extui %0 : i1 to i32
    %c0_i32_0 = arith.constant 0 : i32
    %2 = arith.cmpi ne, %1, %c0_i32_0 : i32
    scf.if %2 {
      %cst_16 = arith.constant 0.000000e+00 : f32
      %18 = vector.broadcast %cst_16 : f32 to vector<1x128xf32>
      %c0_17 = arith.constant 0 : index
      %c0_18 = arith.constant 0 : index
      %19 = vector.load %arg4[%c0_17, %c0_18] : memref<1x128xf32, #tpu.memory_space<vmem>>, vector<1x128xf32>
      tpu.vector_store %arg4[%c0_17, %c0_18], %18 {strides = array<i32>} : memref<1x128xf32, #tpu.memory_space<vmem>>, vector<1x128xf32>,
      %cst_19 = arith.constant 0.000000e+00 : f32
      %20 = vector.broadcast %cst_19 : f32 to vector<1x128xf32>
      %c0_20 = arith.constant 0 : index
      %c0_21 = arith.constant 0 : index
      %21 = vector.load %arg5[%c0_20, %c0_21] : memref<1x128xf32, #tpu.memory_space<vmem>>, vector<1x128xf32>
      tpu.vector_store %arg5[%c0_20, %c0_21], %20 {strides = array<i32>} : memref<1x128xf32, #tpu.memory_space<vmem>>, vector<1x128xf32>,
    } else {
    }
    %c0 = arith.constant 0 : index
    %c0_1 = arith.constant 0 : index
    %3 = vector.load %arg1[%c0, %c0_1] : memref<32x512xbf16, #tpu.memory_space<vmem>>, vector<32x512xbf16>
    %c0_2 = arith.constant 0 : index
    %c0_3 = arith.constant 0 : index
    %4 = vector.load %arg2[%c0_2, %c0_3] : memref<512x128xbf16, #tpu.memory_space<vmem>>, vector<512x128xbf16>
    %cst = arith.constant dense<0.000000e+00> : vector<32x128xf32>
    %5 = tpu.matmul %3, %4, %cst {dimension_numbers = #tpu.dot_dimension_numbers<[1], [0], [0], [1], [0, 0, 1, 1], [], []>} : vector<32x512xbf16>, vector<512x128xbf16>, vector<32x128xf32> -> vector<32x128xf32>
    %c0_4 = arith.constant 0 : index
    %c0_5 = arith.constant 0 : index
    %6 = vector.load %arg3[%c0_4, %c0_5] : memref<32x128xf32, #tpu.memory_space<vmem>>, vector<32x128xf32>
    tpu.vector_store %arg3[%c0_4, %c0_5], %5 {strides = array<i32>} : memref<32x128xf32, #tpu.memory_space<vmem>>, vector<32x128xf32>,
    %c0_6 = arith.constant 0 : index
    %c0_7 = arith.constant 0 : index
    %7 = vector.load %arg4[%c0_6, %c0_7] : memref<1x128xf32, #tpu.memory_space<vmem>>, vector<1x128xf32>
    %cst_8 = arith.constant dense<0.000000e+00> : vector<128xf32>
    %8 = vector.multi_reduction <add>, %5, %cst_8 [0] : vector<32x128xf32> to vector<128xf32>
    %9 = vector.shape_cast %8 : vector<128xf32> to vector<1x128xf32>
    %10 = arith.addf %7, %9 : vector<1x128xf32>
    %c0_9 = arith.constant 0 : index
    %c0_10 = arith.constant 0 : index
    %11 = vector.load %arg4[%c0_9, %c0_10] : memref<1x128xf32, #tpu.memory_space<vmem>>, vector<1x128xf32>
    tpu.vector_store %arg4[%c0_9, %c0_10], %10 {strides = array<i32>} : memref<1x128xf32, #tpu.memory_space<vmem>>, vector<1x128xf32>,
    %c0_11 = arith.constant 0 : index
    %c0_12 = arith.constant 0 : index
    %12 = vector.load %arg5[%c0_11, %c0_12] : memref<1x128xf32, #tpu.memory_space<vmem>>, vector<1x128xf32>
    %13 = arith.mulf %5, %5 : vector<32x128xf32>
    %cst_13 = arith.constant dense<0.000000e+00> : vector<128xf32>
    %14 = vector.multi_reduction <add>, %13, %cst_13 [0] : vector<32x128xf32> to vector<128xf32>
    %15 = vector.shape_cast %14 : vector<128xf32> to vector<1x128xf32>
    %16 = arith.addf %12, %15 : vector<1x128xf32>
    %c0_14 = arith.constant 0 : index
    %c0_15 = arith.constant 0 : index
    %17 = vector.load %arg5[%c0_14, %c0_15] : memref<1x128xf32, #tpu.memory_space<vmem>>, vector<1x128xf32>
    tpu.vector_store %arg5[%c0_14, %c0_15], %16 {strides = array<i32>} : memref<1x128xf32, #tpu.memory_space<vmem>>, vector<1x128xf32>,
    return
  }
  func.func @transform_0(%arg0: i32) -> (i32, i32) {
    %c0_i32 = arith.constant 0 : i32
    %c0_i32_0 = arith.constant 0 : i32
    return %arg0, %c0_i32 : i32, i32
  }
  func.func @transform_1(%arg0: i32) -> (i32, i32) {
    %c0_i32 = arith.constant 0 : i32
    %c0_i32_0 = arith.constant 0 : i32
    %c0_i32_1 = arith.constant 0 : i32
    return %c0_i32, %c0_i32_0 : i32, i32
  }
  func.func @transform_2(%arg0: i32) -> (i32, i32) {
    %c0_i32 = arith.constant 0 : i32
    %c0_i32_0 = arith.constant 0 : i32
    return %arg0, %c0_i32 : i32, i32
  }
  func.func @transform_3(%arg0: i32) -> (i32, i32) {
    %c0_i32 = arith.constant 0 : i32
    %c0_i32_0 = arith.constant 0 : i32
    %c0_i32_1 = arith.constant 0 : i32
    return %c0_i32, %c0_i32_0 : i32, i32
  }
  func.func @transform_4(%arg0: i32) -> (i32, i32) {
    %c0_i32 = arith.constant 0 : i32
    %c0_i32_0 = arith.constant 0 : i32
    %c0_i32_1 = arith.constant 0 : i32
    return %c0_i32, %c0_i32_0 : i32, i32
  }
}

module attributes {stable_mosaic.version = 11 : i64} {
  func.func @_bn_lrelu_kernel(%arg0: i32, %arg1: memref<32x128xf32, #tpu.memory_space<vmem>>, %arg2: memref<1x128xf32, #tpu.memory_space<vmem>>, %arg3: memref<1x128xf32, #tpu.memory_space<vmem>>, %arg4: memref<1x128xf32, #tpu.memory_space<vmem>>, %arg5: memref<1x128xf32, #tpu.memory_space<vmem>>, %arg6: memref<32x128xf32, #tpu.memory_space<vmem>>) attributes {dimension_semantics = [#tpu.dimension_semantics<parallel>], iteration_bounds = array<i64: 1>, scalar_prefetch = 0 : i64, scratch_operands = 0 : i64, tpu.core_type = #tpu.core_type<tc>, window_params = [{transform_indices = @transform_0, window_bounds = array<i64: 32, 128>}, {pipeline_mode = #tpu.pipeline_mode<synchronous>, transform_indices = @transform_1, window_bounds = array<i64: 1, 128>}, {pipeline_mode = #tpu.pipeline_mode<synchronous>, transform_indices = @transform_2, window_bounds = array<i64: 1, 128>}, {pipeline_mode = #tpu.pipeline_mode<synchronous>, transform_indices = @transform_3, window_bounds = array<i64: 1, 128>}, {pipeline_mode = #tpu.pipeline_mode<synchronous>, transform_indices = @transform_4, window_bounds = array<i64: 1, 128>}, {transform_indices = @transform_5, window_bounds = array<i64: 32, 128>}]} {
    %c0 = arith.constant 0 : index
    %c0_0 = arith.constant 0 : index
    %0 = vector.load %arg2[%c0, %c0_0] : memref<1x128xf32, #tpu.memory_space<vmem>>, vector<1x128xf32>
    %cst = arith.constant 3.125000e-02 : f32
    %1 = vector.broadcast %cst : f32 to vector<1x128xf32>
    %2 = arith.mulf %0, %1 : vector<1x128xf32>
    %c0_1 = arith.constant 0 : index
    %c0_2 = arith.constant 0 : index
    %3 = vector.load %arg3[%c0_1, %c0_2] : memref<1x128xf32, #tpu.memory_space<vmem>>, vector<1x128xf32>
    %cst_3 = arith.constant 3.125000e-02 : f32
    %4 = vector.broadcast %cst_3 : f32 to vector<1x128xf32>
    %5 = arith.mulf %3, %4 : vector<1x128xf32>
    %6 = arith.mulf %2, %2 : vector<1x128xf32>
    %7 = arith.subf %5, %6 : vector<1x128xf32>
    %c0_4 = arith.constant 0 : index
    %c0_5 = arith.constant 0 : index
    %8 = vector.load %arg4[%c0_4, %c0_5] : memref<1x128xf32, #tpu.memory_space<vmem>>, vector<1x128xf32>
    %cst_6 = arith.constant 9.99999974E-6 : f32
    %9 = vector.broadcast %cst_6 : f32 to vector<1x128xf32>
    %10 = arith.addf %7, %9 : vector<1x128xf32>
    %11 = math.rsqrt %10 : vector<1x128xf32>
    %12 = arith.mulf %8, %11 : vector<1x128xf32>
    %c0_7 = arith.constant 0 : index
    %c0_8 = arith.constant 0 : index
    %13 = vector.load %arg5[%c0_7, %c0_8] : memref<1x128xf32, #tpu.memory_space<vmem>>, vector<1x128xf32>
    %14 = arith.mulf %2, %12 : vector<1x128xf32>
    %15 = arith.subf %13, %14 : vector<1x128xf32>
    %c0_9 = arith.constant 0 : index
    %c0_10 = arith.constant 0 : index
    %16 = vector.load %arg1[%c0_9, %c0_10] : memref<32x128xf32, #tpu.memory_space<vmem>>, vector<32x128xf32>
    %17 = vector.broadcast %12 : vector<1x128xf32> to vector<32x128xf32>
    %18 = arith.mulf %16, %17 : vector<32x128xf32>
    %19 = vector.broadcast %15 : vector<1x128xf32> to vector<32x128xf32>
    %20 = arith.addf %18, %19 : vector<32x128xf32>
    %cst_11 = arith.constant 0.000000e+00 : f32
    %21 = vector.broadcast %cst_11 : f32 to vector<32x128xf32>
    %22 = arith.cmpf oge, %20, %21 : vector<32x128xf32>
    %cst_12 = arith.constant 2.000000e-01 : f32
    %23 = vector.broadcast %cst_12 : f32 to vector<32x128xf32>
    %24 = arith.mulf %23, %20 : vector<32x128xf32>
    %25 = arith.select %22, %20, %24 : vector<32x128xi1>, vector<32x128xf32>
    %c0_13 = arith.constant 0 : index
    %c0_14 = arith.constant 0 : index
    %26 = vector.load %arg6[%c0_13, %c0_14] : memref<32x128xf32, #tpu.memory_space<vmem>>, vector<32x128xf32>
    tpu.vector_store %arg6[%c0_13, %c0_14], %25 {strides = array<i32>} : memref<32x128xf32, #tpu.memory_space<vmem>>, vector<32x128xf32>,
    return
  }
  func.func @transform_0(%arg0: i32) -> (i32, i32) {
    %c0_i32 = arith.constant 0 : i32
    %c0_i32_0 = arith.constant 0 : i32
    return %arg0, %c0_i32 : i32, i32
  }
  func.func @transform_1(%arg0: i32) -> (i32, i32) {
    %c0_i32 = arith.constant 0 : i32
    %c0_i32_0 = arith.constant 0 : i32
    %c0_i32_1 = arith.constant 0 : i32
    return %c0_i32, %c0_i32_0 : i32, i32
  }
  func.func @transform_2(%arg0: i32) -> (i32, i32) {
    %c0_i32 = arith.constant 0 : i32
    %c0_i32_0 = arith.constant 0 : i32
    %c0_i32_1 = arith.constant 0 : i32
    return %c0_i32, %c0_i32_0 : i32, i32
  }
  func.func @transform_3(%arg0: i32) -> (i32, i32) {
    %c0_i32 = arith.constant 0 : i32
    %c0_i32_0 = arith.constant 0 : i32
    %c0_i32_1 = arith.constant 0 : i32
    return %c0_i32, %c0_i32_0 : i32, i32
  }
  func.func @transform_4(%arg0: i32) -> (i32, i32) {
    %c0_i32 = arith.constant 0 : i32
    %c0_i32_0 = arith.constant 0 : i32
    %c0_i32_1 = arith.constant 0 : i32
    return %c0_i32, %c0_i32_0 : i32, i32
  }
  func.func @transform_5(%arg0: i32) -> (i32, i32) {
    %c0_i32 = arith.constant 0 : i32
    %c0_i32_0 = arith.constant 0 : i32
    return %arg0, %c0_i32 : i32, i32
  }
}

module attributes {stable_mosaic.version = 11 : i64} {
  func.func @_bn_lrelu_kernel(%arg0: i32, %arg1: memref<24x128xf32, #tpu.memory_space<vmem>>, %arg2: memref<1x128xf32, #tpu.memory_space<vmem>>, %arg3: memref<1x128xf32, #tpu.memory_space<vmem>>, %arg4: memref<1x128xf32, #tpu.memory_space<vmem>>, %arg5: memref<1x128xf32, #tpu.memory_space<vmem>>, %arg6: memref<24x128xf32, #tpu.memory_space<vmem>>) attributes {dimension_semantics = [#tpu.dimension_semantics<parallel>], iteration_bounds = array<i64: 1>, scalar_prefetch = 0 : i64, scratch_operands = 0 : i64, tpu.core_type = #tpu.core_type<tc>, window_params = [{transform_indices = @transform_0, window_bounds = array<i64: 24, 128>}, {pipeline_mode = #tpu.pipeline_mode<synchronous>, transform_indices = @transform_1, window_bounds = array<i64: 1, 128>}, {pipeline_mode = #tpu.pipeline_mode<synchronous>, transform_indices = @transform_2, window_bounds = array<i64: 1, 128>}, {pipeline_mode = #tpu.pipeline_mode<synchronous>, transform_indices = @transform_3, window_bounds = array<i64: 1, 128>}, {pipeline_mode = #tpu.pipeline_mode<synchronous>, transform_indices = @transform_4, window_bounds = array<i64: 1, 128>}, {transform_indices = @transform_5, window_bounds = array<i64: 24, 128>}]} {
    %c0 = arith.constant 0 : index
    %c0_0 = arith.constant 0 : index
    %0 = vector.load %arg2[%c0, %c0_0] : memref<1x128xf32, #tpu.memory_space<vmem>>, vector<1x128xf32>
    %cst = arith.constant 0.055555556 : f32
    %1 = vector.broadcast %cst : f32 to vector<1x128xf32>
    %2 = arith.mulf %0, %1 : vector<1x128xf32>
    %c0_1 = arith.constant 0 : index
    %c0_2 = arith.constant 0 : index
    %3 = vector.load %arg3[%c0_1, %c0_2] : memref<1x128xf32, #tpu.memory_space<vmem>>, vector<1x128xf32>
    %cst_3 = arith.constant 0.055555556 : f32
    %4 = vector.broadcast %cst_3 : f32 to vector<1x128xf32>
    %5 = arith.mulf %3, %4 : vector<1x128xf32>
    %6 = arith.mulf %2, %2 : vector<1x128xf32>
    %7 = arith.subf %5, %6 : vector<1x128xf32>
    %c0_4 = arith.constant 0 : index
    %c0_5 = arith.constant 0 : index
    %8 = vector.load %arg4[%c0_4, %c0_5] : memref<1x128xf32, #tpu.memory_space<vmem>>, vector<1x128xf32>
    %cst_6 = arith.constant 9.99999974E-6 : f32
    %9 = vector.broadcast %cst_6 : f32 to vector<1x128xf32>
    %10 = arith.addf %7, %9 : vector<1x128xf32>
    %11 = math.rsqrt %10 : vector<1x128xf32>
    %12 = arith.mulf %8, %11 : vector<1x128xf32>
    %c0_7 = arith.constant 0 : index
    %c0_8 = arith.constant 0 : index
    %13 = vector.load %arg5[%c0_7, %c0_8] : memref<1x128xf32, #tpu.memory_space<vmem>>, vector<1x128xf32>
    %14 = arith.mulf %2, %12 : vector<1x128xf32>
    %15 = arith.subf %13, %14 : vector<1x128xf32>
    %c0_9 = arith.constant 0 : index
    %c0_10 = arith.constant 0 : index
    %16 = vector.load %arg1[%c0_9, %c0_10] : memref<24x128xf32, #tpu.memory_space<vmem>>, vector<24x128xf32>
    %17 = vector.broadcast %12 : vector<1x128xf32> to vector<24x128xf32>
    %18 = arith.mulf %16, %17 : vector<24x128xf32>
    %19 = vector.broadcast %15 : vector<1x128xf32> to vector<24x128xf32>
    %20 = arith.addf %18, %19 : vector<24x128xf32>
    %cst_11 = arith.constant 0.000000e+00 : f32
    %21 = vector.broadcast %cst_11 : f32 to vector<24x128xf32>
    %22 = arith.cmpf oge, %20, %21 : vector<24x128xf32>
    %cst_12 = arith.constant 2.000000e-01 : f32
    %23 = vector.broadcast %cst_12 : f32 to vector<24x128xf32>
    %24 = arith.mulf %23, %20 : vector<24x128xf32>
    %25 = arith.select %22, %20, %24 : vector<24x128xi1>, vector<24x128xf32>
    %c0_13 = arith.constant 0 : index
    %c0_14 = arith.constant 0 : index
    %26 = vector.load %arg6[%c0_13, %c0_14] : memref<24x128xf32, #tpu.memory_space<vmem>>, vector<24x128xf32>
    tpu.vector_store %arg6[%c0_13, %c0_14], %25 {strides = array<i32>} : memref<24x128xf32, #tpu.memory_space<vmem>>, vector<24x128xf32>,
    return
  }
  func.func @transform_0(%arg0: i32) -> (i32, i32) {
    %c0_i32 = arith.constant 0 : i32
    %c0_i32_0 = arith.constant 0 : i32
    return %arg0, %c0_i32 : i32, i32
  }
  func.func @transform_1(%arg0: i32) -> (i32, i32) {
    %c0_i32 = arith.constant 0 : i32
    %c0_i32_0 = arith.constant 0 : i32
    %c0_i32_1 = arith.constant 0 : i32
    return %c0_i32, %c0_i32_0 : i32, i32
  }
  func.func @transform_2(%arg0: i32) -> (i32, i32) {
    %c0_i32 = arith.constant 0 : i32
    %c0_i32_0 = arith.constant 0 : i32
    %c0_i32_1 = arith.constant 0 : i32
    return %c0_i32, %c0_i32_0 : i32, i32
  }
  func.func @transform_3(%arg0: i32) -> (i32, i32) {
    %c0_i32 = arith.constant 0 : i32
    %c0_i32_0 = arith.constant 0 : i32
    %c0_i32_1 = arith.constant 0 : i32
    return %c0_i32, %c0_i32_0 : i32, i32
  }
  func.func @transform_4(%arg0: i32) -> (i32, i32) {
    %c0_i32 = arith.constant 0 : i32
    %c0_i32_0 = arith.constant 0 : i32
    %c0_i32_1 = arith.constant 0 : i32
    return %c0_i32, %c0_i32_0 : i32, i32
  }
  func.func @transform_5(%arg0: i32) -> (i32, i32) {
    %c0_i32 = arith.constant 0 : i32
    %c0_i32_0 = arith.constant 0 : i32
    return %arg0, %c0_i32 : i32, i32
  }
}

module attributes {stable_mosaic.version = 11 : i64} {
  func.func @_conv_stats_kernel(%arg0: i32, %arg1: memref<24x1024xbf16, #tpu.memory_space<vmem>>, %arg2: memref<1024x128xbf16, #tpu.memory_space<vmem>>, %arg3: memref<24x128xf32, #tpu.memory_space<vmem>>, %arg4: memref<1x128xf32, #tpu.memory_space<vmem>>, %arg5: memref<1x128xf32, #tpu.memory_space<vmem>>) attributes {dimension_semantics = [#tpu.dimension_semantics<arbitrary>], iteration_bounds = array<i64: 1>, scalar_prefetch = 0 : i64, scratch_operands = 0 : i64, tpu.core_type = #tpu.core_type<tc>, window_params = [{transform_indices = @transform_0, window_bounds = array<i64: 24, 1024>}, {pipeline_mode = #tpu.pipeline_mode<synchronous>, transform_indices = @transform_1, window_bounds = array<i64: 1024, 128>}, {transform_indices = @transform_2, window_bounds = array<i64: 24, 128>}, {pipeline_mode = #tpu.pipeline_mode<synchronous>, transform_indices = @transform_3, window_bounds = array<i64: 1, 128>}, {pipeline_mode = #tpu.pipeline_mode<synchronous>, transform_indices = @transform_4, window_bounds = array<i64: 1, 128>}]} {
    %c0_i32 = arith.constant 0 : i32
    %0 = arith.cmpi eq, %arg0, %c0_i32 : i32
    %1 = arith.extui %0 : i1 to i32
    %c0_i32_0 = arith.constant 0 : i32
    %2 = arith.cmpi ne, %1, %c0_i32_0 : i32
    scf.if %2 {
      %cst_16 = arith.constant 0.000000e+00 : f32
      %18 = vector.broadcast %cst_16 : f32 to vector<1x128xf32>
      %c0_17 = arith.constant 0 : index
      %c0_18 = arith.constant 0 : index
      %19 = vector.load %arg4[%c0_17, %c0_18] : memref<1x128xf32, #tpu.memory_space<vmem>>, vector<1x128xf32>
      tpu.vector_store %arg4[%c0_17, %c0_18], %18 {strides = array<i32>} : memref<1x128xf32, #tpu.memory_space<vmem>>, vector<1x128xf32>,
      %cst_19 = arith.constant 0.000000e+00 : f32
      %20 = vector.broadcast %cst_19 : f32 to vector<1x128xf32>
      %c0_20 = arith.constant 0 : index
      %c0_21 = arith.constant 0 : index
      %21 = vector.load %arg5[%c0_20, %c0_21] : memref<1x128xf32, #tpu.memory_space<vmem>>, vector<1x128xf32>
      tpu.vector_store %arg5[%c0_20, %c0_21], %20 {strides = array<i32>} : memref<1x128xf32, #tpu.memory_space<vmem>>, vector<1x128xf32>,
    } else {
    }
    %c0 = arith.constant 0 : index
    %c0_1 = arith.constant 0 : index
    %3 = vector.load %arg1[%c0, %c0_1] : memref<24x1024xbf16, #tpu.memory_space<vmem>>, vector<24x1024xbf16>
    %c0_2 = arith.constant 0 : index
    %c0_3 = arith.constant 0 : index
    %4 = vector.load %arg2[%c0_2, %c0_3] : memref<1024x128xbf16, #tpu.memory_space<vmem>>, vector<1024x128xbf16>
    %cst = arith.constant dense<0.000000e+00> : vector<24x128xf32>
    %5 = tpu.matmul %3, %4, %cst {dimension_numbers = #tpu.dot_dimension_numbers<[1], [0], [0], [1], [0, 0, 1, 1], [], []>} : vector<24x1024xbf16>, vector<1024x128xbf16>, vector<24x128xf32> -> vector<24x128xf32>
    %c0_4 = arith.constant 0 : index
    %c0_5 = arith.constant 0 : index
    %6 = vector.load %arg3[%c0_4, %c0_5] : memref<24x128xf32, #tpu.memory_space<vmem>>, vector<24x128xf32>
    tpu.vector_store %arg3[%c0_4, %c0_5], %5 {strides = array<i32>} : memref<24x128xf32, #tpu.memory_space<vmem>>, vector<24x128xf32>,
    %c0_6 = arith.constant 0 : index
    %c0_7 = arith.constant 0 : index
    %7 = vector.load %arg4[%c0_6, %c0_7] : memref<1x128xf32, #tpu.memory_space<vmem>>, vector<1x128xf32>
    %cst_8 = arith.constant dense<0.000000e+00> : vector<128xf32>
    %8 = vector.multi_reduction <add>, %5, %cst_8 [0] : vector<24x128xf32> to vector<128xf32>
    %9 = vector.shape_cast %8 : vector<128xf32> to vector<1x128xf32>
    %10 = arith.addf %7, %9 : vector<1x128xf32>
    %c0_9 = arith.constant 0 : index
    %c0_10 = arith.constant 0 : index
    %11 = vector.load %arg4[%c0_9, %c0_10] : memref<1x128xf32, #tpu.memory_space<vmem>>, vector<1x128xf32>
    tpu.vector_store %arg4[%c0_9, %c0_10], %10 {strides = array<i32>} : memref<1x128xf32, #tpu.memory_space<vmem>>, vector<1x128xf32>,
    %c0_11 = arith.constant 0 : index
    %c0_12 = arith.constant 0 : index
    %12 = vector.load %arg5[%c0_11, %c0_12] : memref<1x128xf32, #tpu.memory_space<vmem>>, vector<1x128xf32>
    %13 = arith.mulf %5, %5 : vector<24x128xf32>
    %cst_13 = arith.constant dense<0.000000e+00> : vector<128xf32>
    %14 = vector.multi_reduction <add>, %13, %cst_13 [0] : vector<24x128xf32> to vector<128xf32>
    %15 = vector.shape_cast %14 : vector<128xf32> to vector<1x128xf32>
    %16 = arith.addf %12, %15 : vector<1x128xf32>
    %c0_14 = arith.constant 0 : index
    %c0_15 = arith.constant 0 : index
    %17 = vector.load %arg5[%c0_14, %c0_15] : memref<1x128xf32, #tpu.memory_space<vmem>>, vector<1x128xf32>
    tpu.vector_store %arg5[%c0_14, %c0_15], %16 {strides = array<i32>} : memref<1x128xf32, #tpu.memory_space<vmem>>, vector<1x128xf32>,
    return
  }
  func.func @transform_0(%arg0: i32) -> (i32, i32) {
    %c0_i32 = arith.constant 0 : i32
    %c0_i32_0 = arith.constant 0 : i32
    return %arg0, %c0_i32 : i32, i32
  }
  func.func @transform_1(%arg0: i32) -> (i32, i32) {
    %c0_i32 = arith.constant 0 : i32
    %c0_i32_0 = arith.constant 0 : i32
    %c0_i32_1 = arith.constant 0 : i32
    return %c0_i32, %c0_i32_0 : i32, i32
  }
  func.func @transform_2(%arg0: i32) -> (i32, i32) {
    %c0_i32 = arith.constant 0 : i32
    %c0_i32_0 = arith.constant 0 : i32
    return %arg0, %c0_i32 : i32, i32
  }
  func.func @transform_3(%arg0: i32) -> (i32, i32) {
    %c0_i32 = arith.constant 0 : i32
    %c0_i32_0 = arith.constant 0 : i32
    %c0_i32_1 = arith.constant 0 : i32
    return %c0_i32, %c0_i32_0 : i32, i32
  }
  func.func @transform_4(%arg0: i32) -> (i32, i32) {
    %c0_i32 = arith.constant 0 : i32
    %c0_i32_0 = arith.constant 0 : i32
    %c0_i32_1 = arith.constant 0 : i32
    return %c0_i32, %c0_i32_0 : i32, i32
  }
}

module attributes {stable_mosaic.version = 11 : i64} {
  func.func @_conv_bias_act_kernel(%arg0: i32, %arg1: memref<8x2048xbf16, #tpu.memory_space<vmem>>, %arg2: memref<2048x128xbf16, #tpu.memory_space<vmem>>, %arg3: memref<1x128xf32, #tpu.memory_space<vmem>>, %arg4: memref<8x128xf32, #tpu.memory_space<vmem>>) attributes {dimension_semantics = [#tpu.dimension_semantics<parallel>], iteration_bounds = array<i64: 1>, scalar_prefetch = 0 : i64, scratch_operands = 0 : i64, tpu.core_type = #tpu.core_type<tc>, window_params = [{transform_indices = @transform_0, window_bounds = array<i64: 8, 2048>}, {pipeline_mode = #tpu.pipeline_mode<synchronous>, transform_indices = @transform_1, window_bounds = array<i64: 2048, 128>}, {pipeline_mode = #tpu.pipeline_mode<synchronous>, transform_indices = @transform_2, window_bounds = array<i64: 1, 128>}, {transform_indices = @transform_3, window_bounds = array<i64: 8, 128>}]} {
    %c0 = arith.constant 0 : index
    %c0_0 = arith.constant 0 : index
    %0 = vector.load %arg1[%c0, %c0_0] : memref<8x2048xbf16, #tpu.memory_space<vmem>>, vector<8x2048xbf16>
    %c0_1 = arith.constant 0 : index
    %c0_2 = arith.constant 0 : index
    %1 = vector.load %arg2[%c0_1, %c0_2] : memref<2048x128xbf16, #tpu.memory_space<vmem>>, vector<2048x128xbf16>
    %cst = arith.constant dense<0.000000e+00> : vector<8x128xf32>
    %2 = tpu.matmul %0, %1, %cst {dimension_numbers = #tpu.dot_dimension_numbers<[1], [0], [0], [1], [0, 0, 1, 1], [], []>} : vector<8x2048xbf16>, vector<2048x128xbf16>, vector<8x128xf32> -> vector<8x128xf32>
    %c0_3 = arith.constant 0 : index
    %c0_4 = arith.constant 0 : index
    %3 = vector.load %arg3[%c0_3, %c0_4] : memref<1x128xf32, #tpu.memory_space<vmem>>, vector<1x128xf32>
    %4 = vector.broadcast %3 : vector<1x128xf32> to vector<8x128xf32>
    %5 = arith.addf %2, %4 : vector<8x128xf32>
    %c0_5 = arith.constant 0 : index
    %c0_6 = arith.constant 0 : index
    %6 = vector.load %arg4[%c0_5, %c0_6] : memref<8x128xf32, #tpu.memory_space<vmem>>, vector<8x128xf32>
    tpu.vector_store %arg4[%c0_5, %c0_6], %5 {strides = array<i32>} : memref<8x128xf32, #tpu.memory_space<vmem>>, vector<8x128xf32>,
    return
  }
  func.func @transform_0(%arg0: i32) -> (i32, i32) {
    %c0_i32 = arith.constant 0 : i32
    %c0_i32_0 = arith.constant 0 : i32
    return %arg0, %c0_i32 : i32, i32
  }
  func.func @transform_1(%arg0: i32) -> (i32, i32) {
    %c0_i32 = arith.constant 0 : i32
    %c0_i32_0 = arith.constant 0 : i32
    %c0_i32_1 = arith.constant 0 : i32
    return %c0_i32, %c0_i32_0 : i32, i32
  }
  func.func @transform_2(%arg0: i32) -> (i32, i32) {
    %c0_i32 = arith.constant 0 : i32
    %c0_i32_0 = arith.constant 0 : i32
    %c0_i32_1 = arith.constant 0 : i32
    return %c0_i32, %c0_i32_0 : i32, i32
  }
  func.func @transform_3(%arg0: i32) -> (i32, i32) {
    %c0_i32 = arith.constant 0 : i32
    %c0_i32_0 = arith.constant 0 : i32
    return %arg0, %c0_i32 : i32, i32
  }
}

</mosaic_0001>

<llo_original>
// kernel: _lambda_.8
$region0: #{_lambda_.8}
  #allocation0 [shape = 'u32[]', space=smem, size = 0x4, offset = 0x4, fixed_abs, tag = 'smem constant byte address 0x4 - core index']
  #allocation1 [shape = 'u32[144,128]{1,0:T(1,128)}', space=vmem, size = 0x12000, scoped, tag = 'internal scratch']
  %s0 = inlined_call_operand.vmem [shape: bf16[512,128], index: 0, kind: input, shape index: {}]
  %s1 = inlined_call_operand.vmem [shape: bf16[128,128], index: 1, kind: input, shape index: {}]
  %s2 = inlined_call_operand.vmem [shape: f32[1,128], index: 2, kind: input, shape index: {}]
  %s3 = inlined_call_operand.vmem [shape: f32[512,128], index: 3, kind: output, shape index: {}]
  %s4 = sld [smem:[#allocation0]]
  $region45: #{_lambda_.8} parent=0
    _
  %s6 = ssub.s32 1, %s4
  %s7 = scalar_select 0, %s6, %s4
  loop: start=0, step=1, limit=4
  $region2: #{_lambda_.8} parent=0 // loop_pre_header
    _
  $region3: #{_lambda_.8} parent=0 // loop_header
    %s9 = sphi 0, %s13
    %p10 = scmp.ge.s32.totalorder %s9, 4
    %s19 = sphi 0, %s21
    %s22 = sphi 0, %s19
    %s23 = sphi 0, %s22
    %s39 = sphi 0, %s23
    %s43 = sphi 0, %s43
    %s45 = sphi 0, %s43
    %s46 = sphi 0, %s45
    %s60 = sphi 0, %s46
    %s64 = sphi 0, %s64
    %s66 = sphi 0, %s64
    %s67 = sphi 0, %s66
    %s81 = sphi 0, %s67
    %s87 = sphi 0, %s89
    %s90 = sphi 0, %s87
    %s91 = sphi 0, %s90
    %s107 = sphi 0, %s91
  $region4: #{_lambda_.8} parent=0 // loop_header_branch
    %12 = sbr.rel (%p10) target = $region8
  $region5: #{_lambda_.8} parent=0 // loop_body
    %s14 = ssub.s32 %s9, 1
    %s15 = ssub.s32 %s9, 2
    %s16 = sadd.s32 %s9, 1
    %s17 = ssub.s32 %s9, %s16
    %p18 = scmp.eq.s32.totalorder %s17, 0
    %s20 = sadd.s32 %s19, 1
    %s21 = scalar_select %p18, %s19, %s20
    %p24 = pneg %p18
    %p25 = scmp.eq.s32.totalorder %s9, 1
    %p26 = por %p24, %p25
    %p27 = scmp.ne.s32.totalorder %s19, %s22
    %p28 = scmp.eq.s32.totalorder %s9, 0
    %p29 = por %p27, %p28
    %p30 = scmp.ne.s32.totalorder %s19, %s22
    %p31 = scmp.eq.s32.totalorder %s14, 1
    %p32 = por %p30, %p31
    %p33 = scmp.ne.s32.totalorder %s22, %s23
    %p34 = scmp.eq.s32.totalorder %s14, 0
    %p35 = por %p33, %p34
    %p36 = scmp.ne.s32.totalorder %s22, %s23
    %p37 = scmp.eq.s32.totalorder %s15, 1
    %p38 = por %p36, %p37
    %p40 = scmp.ne.s32.totalorder %s23, %s39
    %p41 = scmp.eq.s32.totalorder %s15, 0
    %p42 = por %p40, %p41
    %s44 = sadd.s32 %s43, 1
    %p47 = scmp.eq.s32.totalorder %s9, 1
    %p48 = scmp.ne.s32.totalorder %s43, %s45
    %p49 = scmp.eq.s32.totalorder %s9, 0
    %p50 = por %p48, %p49
    %p51 = scmp.ne.s32.totalorder %s43, %s45
    %p52 = scmp.eq.s32.totalorder %s14, 1
    %p53 = por %p51, %p52
    %p54 = scmp.ne.s32.totalorder %s45, %s46
    %p55 = scmp.eq.s32.totalorder %s14, 0
    %p56 = por %p54, %p55
    %p57 = scmp.ne.s32.totalorder %s45, %s46
    %p58 = scmp.eq.s32.totalorder %s15, 1
    %p59 = por %p57, %p58
    %p61 = scmp.ne.s32.totalorder %s46, %s60
    %p62 = scmp.eq.s32.totalorder %s15, 0
    %p63 = por %p61, %p62
    %s65 = sadd.s32 %s64, 1
    %p68 = scmp.eq.s32.totalorder %s9, 1
    %p69 = scmp.ne.s32.totalorder %s64, %s66
    %p70 = scmp.eq.s32.totalorder %s9, 0
    %p71 = por %p69, %p70
    %p72 = scmp.ne.s32.totalorder %s64, %s66
    %p73 = scmp.eq.s32.totalorder %s14, 1
    %p74 = por %p72, %p73
    %p75 = scmp.ne.s32.totalorder %s66, %s67
    %p76 = scmp.eq.s32.totalorder %s14, 0
    %p77 = por %p75, %p76
    %p78 = scmp.ne.s32.totalorder %s66, %s67
    %p79 = scmp.eq.s32.totalorder %s15, 1
    %p80 = por %p78, %p79
    %p82 = scmp.ne.s32.totalorder %s67, %s81
    %p83 = scmp.eq.s32.totalorder %s15, 0
    %p84 = por %p82, %p83
    %s85 = ssub.s32 %s9, %s16
    %p86 = scmp.eq.s32.totalorder %s85, 0
    %s88 = sadd.s32 %s87, 1
    %s89 = scalar_select %p86, %s87, %s88
    %p92 = pneg %p86
    %p93 = scmp.eq.s32.totalorder %s9, 1
    %p94 = por %p92, %p93
    %p95 = scmp.ne.s32.totalorder %s87, %s90
    %p96 = scmp.eq.s32.totalorder %s9, 0
    %p97 = por %p95, %p96
    %p98 = scmp.ne.s32.totalorder %s87, %s90
    %p99 = scmp.eq.s32.totalorder %s14, 1
    %p100 = por %p98, %p99
    %p101 = scmp.ne.s32.totalorder %s90, %s91
    %p102 = scmp.eq.s32.totalorder %s14, 0
    %p103 = por %p101, %p102
    %p104 = scmp.ne.s32.totalorder %s90, %s91
    %p105 = scmp.eq.s32.totalorder %s15, 1
    %p106 = por %p104, %p105
    %p108 = scmp.ne.s32.totalorder %s91, %s107
    %p109 = scmp.eq.s32.totalorder %s15, 0
    %p110 = por %p108, %p109
    %p111 = scmp.le.s32.totalorder 1, %s9
    %p112 = scmp.lt.s32.totalorder %s9, 3
    %p113 = pnand %p111, %p112
    %p114 = pneg %p113
    // Predicated region
    $region9: #{_lambda_.8} parent=5 // pred_check
      _
    $region10: #{_lambda_.8} parent=5 // pred_check_branch
      %116 = sbr.rel (%p113) target = $region12
    $region11: #{_lambda_.8} parent=5 // pred_region
      %s117 = ssub.s32 %s9, 1
      // Predicated region
      $region13: #{_lambda_.8} parent=11 // pred_check
        %p118 = pneg %p56
      $region14: #{_lambda_.8} parent=11 // pred_check_branch
        %120 = sbr.rel (%p118) target = $region16
      $region15: #{_lambda_.8} parent=11 // pred_region
        _
      $region16: #{_lambda_.8} parent=11 // pred_fallthru
        _
      // Predicated region
      $region17: #{_lambda_.8} parent=11 // pred_check
        %p121 = pneg %p77
      $region18: #{_lambda_.8} parent=11 // pred_check_branch
        %123 = sbr.rel (%p121) target = $region20
      $region19: #{_lambda_.8} parent=11 // pred_region
        _
      $region20: #{_lambda_.8} parent=11 // pred_fallthru
        _
    $region12: #{_lambda_.8} parent=5 // pred_fallthru
      _
    %p124 = scmp.lt.s32.totalorder %s9, 2
    // Predicated region
    $region21: #{_lambda_.8} parent=5 // pred_check
      %p125 = pneg %p124
    $region22: #{_lambda_.8} parent=5 // pred_check_branch
      %127 = sbr.rel (%p125) target = $region24
    $region23: #{_lambda_.8} parent=5 // pred_region
      // Predicated region
      $region25: #{_lambda_.8} parent=23 // pred_check
        %p128 = pneg %p29
      $region26: #{_lambda_.8} parent=23 // pred_check_branch
        %130 = sbr.rel (%p128) target = $region28
      $region27: #{_lambda_.8} parent=23 // pred_region
        %s131 = smul.u32 32, %s9
        %p132 = scmp.lt.s32.totalorder %s131, 63
        %s133 = scalar_select %p132, %s131, 63
        %s134 = smul.addr %s133, 4
        %s135 = scalar_lea.vmem %s0, %s134
        %s136 = smul.u32 32, %s9
      $region28: #{_lambda_.8} parent=23 // pred_fallthru
        _
    $region24: #{_lambda_.8} parent=5 // pred_fallthru
      _
    %p137 = scmp.le.s32.totalorder 1, %s9
    %p138 = scmp.lt.s32.totalorder %s9, 3
    %p139 = pnand %p137, %p138
    %p140 = pneg %p139
    // Predicated region
    $region29: #{_lambda_.8} parent=5 // pred_check
      _
    $region30: #{_lambda_.8} parent=5 // pred_check_branch
      %142 = sbr.rel (%p139) target = $region32
    $region31: #{_lambda_.8} parent=5 // pred_region
      %s143 = ssub.s32 %s9, 1
      %s144 = smul.u32 32, %s14
      %p145 = scmp.lt.s32.totalorder %s144, 63
      %s146 = scalar_select %p145, %s144, 63
      %s147 = smul.addr %s146, 4
      %s148 = scalar_lea.vmem %s0, %s147
      %p149 = pneg %p35
      %p150 = pneg %p32
      %p151 = pneg %p56
      %p152 = pneg %p53
      %p153 = pneg %p77
      %p154 = pneg %p74
      %p155 = pneg %p103
      %p156 = pneg %p100
      %s157 = smul.u32 32, %s14
      %p158 = scmp.lt.s32.totalorder %s157, 63
      %s159 = scalar_select %p158, %s157, 63
      %s160 = smul.addr %s159, 8
      %s161 = scalar_lea.vmem %s3, %s160
      %s162 = smul.u32 32, %s14
      %p163 = scmp.lt.s32.totalorder %s162, 63
      %s164 = scalar_select %p163, %s162, 63
      %s165 = smul.addr %s164, 4
      %s166 = scalar_lea.vmem %s0, %s165
      %s167 = smul.u32 32, %s14
      %s168 = smul.u32 32, %s14
      %p169 = scmp.lt.s32.totalorder %s168, 63
      %s170 = scalar_select %p169, %s168, 63
      %s171 = smul.addr %s170, 8
      %s172 = scalar_lea.vmem %s3, %s171
      %s173 = smul.u32 32, %s14
      %v175 = vld [vmem:[%s166] sm:$0xf]
      %v176 = vld [vmem:[%s166 + $0x4] sm:$0xf]
      %v177 = vld [vmem:[%s166 + $0x8] sm:$0xf]
      %v178 = vld [vmem:[%s166 + $0xc] sm:$0xf]
      %v179 = vld [vmem:[%s166 + $0x10] sm:$0xf]
      %v180 = vld [vmem:[%s166 + $0x14] sm:$0xf]
      %v181 = vld [vmem:[%s166 + $0x18] sm:$0xf]
      %v182 = vld [vmem:[%s166 + $0x1c] sm:$0xf]
      %v183 = vld [vmem:[%s166 + $0x20] sm:$0xf]
      %v184 = vld [vmem:[%s166 + $0x24] sm:$0xf]
      %v185 = vld [vmem:[%s166 + $0x28] sm:$0xf]
      %v186 = vld [vmem:[%s166 + $0x2c] sm:$0xf]
      %v187 = vld [vmem:[%s166 + $0x30] sm:$0xf]
      %v188 = vld [vmem:[%s166 + $0x34] sm:$0xf]
      %v189 = vld [vmem:[%s166 + $0x38] sm:$0xf]
      %v190 = vld [vmem:[%s166 + $0x3c] sm:$0xf]
      %v191 = vld [vmem:[%s166 + $0x40] sm:$0xf]
      %v192 = vld [vmem:[%s166 + $0x44] sm:$0xf]
      %v193 = vld [vmem:[%s166 + $0x48] sm:$0xf]
      %v194 = vld [vmem:[%s166 + $0x4c] sm:$0xf]
      %v195 = vld [vmem:[%s166 + $0x50] sm:$0xf]
      %v196 = vld [vmem:[%s166 + $0x54] sm:$0xf]
      %v197 = vld [vmem:[%s166 + $0x58] sm:$0xf]
      %v198 = vld [vmem:[%s166 + $0x5c] sm:$0xf]
      %v199 = vld [vmem:[%s166 + $0x60] sm:$0xf]
      %v200 = vld [vmem:[%s166 + $0x64] sm:$0xf]
      %v201 = vld [vmem:[%s166 + $0x68] sm:$0xf]
      %v202 = vld [vmem:[%s166 + $0x6c] sm:$0xf]
      %v203 = vld [vmem:[%s166 + $0x70] sm:$0xf]
      %v204 = vld [vmem:[%s166 + $0x74] sm:$0xf]
      %v205 = vld [vmem:[%s166 + $0x78] sm:$0xf]
      %v206 = vld [vmem:[%s166 + $0x7c] sm:$0xf]
      %v207 = vld [vmem:[%s1] sm:$0xf]
      %v208 = vld [vmem:[%s1 + $0x4] sm:$0xf]
      %v209 = vld [vmem:[%s1 + $0x8] sm:$0xf]
      %v210 = vld [vmem:[%s1 + $0xc] sm:$0xf]
      %v211 = vld [vmem:[%s1 + $0x10] sm:$0xf]
      %v212 = vld [vmem:[%s1 + $0x14] sm:$0xf]
      %v213 = vld [vmem:[%s1 + $0x18] sm:$0xf]
      %v214 = vld [vmem:[%s1 + $0x1c] sm:$0xf]
      %v215 = vld [vmem:[%s1 + $0x20] sm:$0xf]
      %v216 = vld [vmem:[%s1 + $0x24] sm:$0xf]
      %v217 = vld [vmem:[%s1 + $0x28] sm:$0xf]
      %v218 = vld [vmem:[%s1 + $0x2c] sm:$0xf]
      %v219 = vld [vmem:[%s1 + $0x30] sm:$0xf]
      %v220 = vld [vmem:[%s1 + $0x34] sm:$0xf]
      %v221 = vld [vmem:[%s1 + $0x38] sm:$0xf]
      %v222 = vld [vmem:[%s1 + $0x3c] sm:$0xf]
      %v223 = vld [vmem:[%s2] sm:$0x1]
      %v225 = vlaneseq
      %v226 = vshrl.u32 %v225, 7
      %v227 = vsub.s32 0, %v226
      %v228 = vrot.slane %v223, %v227
      %v262 = vunpack.c.l.b16 %v175
      %v263 = vunpack.c.l.b16 %v176
      %v264 = vunpack.c.l.b16 %v177
      %v265 = vunpack.c.l.b16 %v178
      %v266 = vunpack.c.l.b16 %v179
      %v267 = vunpack.c.l.b16 %v180
      %v268 = vunpack.c.l.b16 %v181
      %v269 = vunpack.c.l.b16 %v182
      %v270 = vunpack.c.l.b16 %v183
      %v271 = vunpack.c.l.b16 %v184
      %v272 = vunpack.c.l.b16 %v185
      %v273 = vunpack.c.l.b16 %v186
      %v274 = vunpack.c.l.b16 %v187
      %v275 = vunpack.c.l.b16 %v188
      %v276 = vunpack.c.l.b16 %v189
      %v277 = vunpack.c.l.b16 %v190
      %v278 = vunpack.c.l.b16 %v191
      %v279 = vunpack.c.l.b16 %v192
      %v280 = vunpack.c.l.b16 %v193
      %v281 = vunpack.c.l.b16 %v194
      %v282 = vunpack.c.l.b16 %v195
      %v283 = vunpack.c.l.b16 %v196
      %v284 = vunpack.c.l.b16 %v197
      %v285 = vunpack.c.l.b16 %v198
      %v286 = vunpack.c.l.b16 %v199
      %v287 = vunpack.c.l.b16 %v200
      %v288 = vunpack.c.l.b16 %v201
      %v289 = vunpack.c.l.b16 %v202
      %v290 = vunpack.c.l.b16 %v203
      %v291 = vunpack.c.l.b16 %v204
      %v292 = vunpack.c.l.b16 %v205
      %v293 = vunpack.c.l.b16 %v206
      %v294 = vpack.c.b16 %v263, %v262
      %v295 = vpack.c.b16 %v265, %v264
      %v296 = vpack.c.b16 %v267, %v266
      %v297 = vpack.c.b16 %v269, %v268
      %v298 = vpack.c.b16 %v271, %v270
      %v299 = vpack.c.b16 %v273, %v272
      %v300 = vpack.c.b16 %v275, %v274
      %v301 = vpack.c.b16 %v277, %v276
      %v302 = vpack.c.b16 %v279, %v278
      %v303 = vpack.c.b16 %v281, %v280
      %v304 = vpack.c.b16 %v283, %v282
      %v305 = vpack.c.b16 %v285, %v284
      %v306 = vpack.c.b16 %v287, %v286
      %v307 = vpack.c.b16 %v289, %v288
      %v308 = vpack.c.b16 %v291, %v290
      %v309 = vpack.c.b16 %v293, %v292
      %v342 = vunpack.c.l.b16 %v207
      %v343 = vunpack.c.l.b16 %v208
      %v344 = vunpack.c.l.b16 %v209
      %v345 = vunpack.c.l.b16 %v210
      %v346 = vunpack.c.l.b16 %v211
      %v347 = vunpack.c.l.b16 %v212
      %v348 = vunpack.c.l.b16 %v213
      %v349 = vunpack.c.l.b16 %v214
      %v350 = vunpack.c.l.b16 %v215
      %v351 = vunpack.c.l.b16 %v216
      %v352 = vunpack.c.l.b16 %v217
      %v353 = vunpack.c.l.b16 %v218
      %v354 = vunpack.c.l.b16 %v219
      %v355 = vunpack.c.l.b16 %v220
      %v356 = vunpack.c.l.b16 %v221
      %v357 = vunpack.c.l.b16 %v222
      %v358 = vpack.c.b16 %v343, %v342
      %v359 = vpack.c.b16 %v345, %v344
      %v360 = vpack.c.b16 %v347, %v346
      %v361 = vpack.c.b16 %v349, %v348
      %v362 = vpack.c.b16 %v351, %v350
      %v363 = vpack.c.b16 %v353, %v352
      %v364 = vpack.c.b16 %v355, %v354
      %v365 = vpack.c.b16 %v357, %v356
      %374 = vmatprep.subr.bf16.mxu0 0
      %375 = vmatpush1.bf16.msra.mxu0 %v358
      %376 = vmatprep.subr.bf16.mxu0 0
      %377 = vmatpush1.bf16.msra.mxu0 %v359
      %378 = vmatprep.subr.bf16.mxu0 0
      %379 = vmatpush1.bf16.msra.mxu0 %v360
      %380 = vmatprep.subr.bf16.mxu0 0
      %381 = vmatpush1.bf16.msra.mxu0 %v361
      %382 = vmatprep.subr.bf16.mxu0 0
      %383 = vmatpush1.bf16.msra.mxu0 %v362
      %384 = vmatprep.subr.bf16.mxu0 0
      %385 = vmatpush1.bf16.msra.mxu0 %v363
      %386 = vmatprep.subr.bf16.mxu0 0
      %387 = vmatpush1.bf16.msra.mxu0 %v364
      %388 = vmatprep.subr.bf16.mxu0 0
      %389 = vmatpush1.bf16.msra.mxu0 %v365
      %390 = vmatprep.subr.bf16.mxu0 0
      %391 = vmatpush1.bf16.msra.mxu0 0
      %392 = vmatprep.subr.bf16.mxu0 0
      %393 = vmatpush1.bf16.msra.mxu0 0
      %394 = vmatprep.subr.bf16.mxu0 0
      %395 = vmatpush1.bf16.msra.mxu0 0
      %396 = vmatprep.subr.bf16.mxu0 0
      %397 = vmatpush1.bf16.msra.mxu0 0
      %398 = vmatprep.subr.bf16.mxu0 0
      %399 = vmatpush1.bf16.msra.mxu0 0
      %400 = vmatprep.subr.bf16.mxu0 0
      %401 = vmatpush1.bf16.msra.mxu0 0
      %402 = vmatprep.subr.bf16.mxu0 0
      %403 = vmatpush1.bf16.msra.mxu0 0
      %404 = vmatprep.subr.bf16.mxu0 0
      %405 = vmatpush1.bf16.msra.mxu0 0
      %406 = vmatprep.mubr.bf16.mxu0 0
      %407 = vmatmul.mubr.bf16.gmra.mrb[0].mxu0 %v294
      %v408 = vpop.f32.mrb[0].mxu0
      %v409 = vadd.f32 %v228, %v408
      %v410 = vpop.f32.mrb[0].mxu0
      %v411 = vpop.f32.mrb[0].mxu0
      %v412 = vadd.f32 %v228, %v411
      %v413 = vpop.f32.mrb[0].mxu0
      %414 = vmatprep.mubr.bf16.mxu0 0
      %415 = vmatmul.mubr.bf16.gmra.mrb[0].mxu0 %v295
      %v416 = vpop.f32.mrb[0].mxu0
      %v417 = vadd.f32 %v228, %v416
      %v418 = vpop.f32.mrb[0].mxu0
      %v419 = vpop.f32.mrb[0].mxu0
      %v420 = vadd.f32 %v228, %v419
      %v421 = vpop.f32.mrb[0].mxu0
      %422 = vmatprep.mubr.bf16.mxu0 0
      %423 = vmatmul.mubr.bf16.gmra.mrb[0].mxu0 %v296
      %v424 = vpop.f32.mrb[0].mxu0
      %v425 = vadd.f32 %v228, %v424
      %v426 = vpop.f32.mrb[0].mxu0
      %v427 = vpop.f32.mrb[0].mxu0
      %v428 = vadd.f32 %v228, %v427
      %v429 = vpop.f32.mrb[0].mxu0
      %430 = vmatprep.mubr.bf16.mxu0 0
      %431 = vmatmul.mubr.bf16.gmra.mrb[0].mxu0 %v297
      %v432 = vpop.f32.mrb[0].mxu0
      %v433 = vadd.f32 %v228, %v432
      %v434 = vpop.f32.mrb[0].mxu0
      %v435 = vpop.f32.mrb[0].mxu0
      %v436 = vadd.f32 %v228, %v435
      %v437 = vpop.f32.mrb[0].mxu0
      %438 = vmatprep.mubr.bf16.mxu0 0
      %439 = vmatmul.mubr.bf16.gmra.mrb[0].mxu0 %v298
      %v440 = vpop.f32.mrb[0].mxu0
      %v441 = vadd.f32 %v228, %v440
      %v442 = vpop.f32.mrb[0].mxu0
      %v443 = vpop.f32.mrb[0].mxu0
      %v444 = vadd.f32 %v228, %v443
      %v445 = vpop.f32.mrb[0].mxu0
      %446 = vmatprep.mubr.bf16.mxu0 0
      %447 = vmatmul.mubr.bf16.gmra.mrb[0].mxu0 %v299
      %v448 = vpop.f32.mrb[0].mxu0
      %v449 = vadd.f32 %v228, %v448
      %v450 = vpop.f32.mrb[0].mxu0
      %v451 = vpop.f32.mrb[0].mxu0
      %v452 = vadd.f32 %v228, %v451
      %v453 = vpop.f32.mrb[0].mxu0
      %454 = vmatprep.mubr.bf16.mxu0 0
      %455 = vmatmul.mubr.bf16.gmra.mrb[0].mxu0 %v300
      %v456 = vpop.f32.mrb[0].mxu0
      %v457 = vadd.f32 %v228, %v456
      %v458 = vpop.f32.mrb[0].mxu0
      %v459 = vpop.f32.mrb[0].mxu0
      %v460 = vadd.f32 %v228, %v459
      %v461 = vpop.f32.mrb[0].mxu0
      %462 = vmatprep.mubr.bf16.mxu0 0
      %463 = vmatmul.mubr.bf16.gmra.mrb[0].mxu0 %v301
      %v464 = vpop.f32.mrb[0].mxu0
      %v465 = vadd.f32 %v228, %v464
      %v466 = vpop.f32.mrb[0].mxu0
      %v467 = vpop.f32.mrb[0].mxu0
      %v468 = vadd.f32 %v228, %v467
      %v469 = vpop.f32.mrb[0].mxu0
      %470 = vmatprep.mubr.bf16.mxu0 0
      %471 = vmatmul.mubr.bf16.gmra.mrb[0].mxu0 %v302
      %v472 = vpop.f32.mrb[0].mxu0
      %v473 = vadd.f32 %v228, %v472
      %v474 = vpop.f32.mrb[0].mxu0
      %v475 = vpop.f32.mrb[0].mxu0
      %v476 = vadd.f32 %v228, %v475
      %v477 = vpop.f32.mrb[0].mxu0
      %478 = vmatprep.mubr.bf16.mxu0 0
      %479 = vmatmul.mubr.bf16.gmra.mrb[0].mxu0 %v303
      %v480 = vpop.f32.mrb[0].mxu0
      %v481 = vadd.f32 %v228, %v480
      %v482 = vpop.f32.mrb[0].mxu0
      %v483 = vpop.f32.mrb[0].mxu0
      %v484 = vadd.f32 %v228, %v483
      %v485 = vpop.f32.mrb[0].mxu0
      %486 = vmatprep.mubr.bf16.mxu0 0
      %487 = vmatmul.mubr.bf16.gmra.mrb[0].mxu0 %v304
      %v488 = vpop.f32.mrb[0].mxu0
      %v489 = vadd.f32 %v228, %v488
      %v490 = vpop.f32.mrb[0].mxu0
      %v491 = vpop.f32.mrb[0].mxu0
      %v492 = vadd.f32 %v228, %v491
      %v493 = vpop.f32.mrb[0].mxu0
      %494 = vmatprep.mubr.bf16.mxu0 0
      %495 = vmatmul.mubr.bf16.gmra.mrb[0].mxu0 %v305
      %v496 = vpop.f32.mrb[0].mxu0
      %v497 = vadd.f32 %v228, %v496
      %v498 = vpop.f32.mrb[0].mxu0
      %v499 = vpop.f32.mrb[0].mxu0
      %v500 = vadd.f32 %v228, %v499
      %v501 = vpop.f32.mrb[0].mxu0
      %502 = vmatprep.mubr.bf16.mxu0 0
      %503 = vmatmul.mubr.bf16.gmra.mrb[0].mxu0 %v306
      %v504 = vpop.f32.mrb[0].mxu0
      %v505 = vadd.f32 %v228, %v504
      %v506 = vpop.f32.mrb[0].mxu0
      %v507 = vpop.f32.mrb[0].mxu0
      %v508 = vadd.f32 %v228, %v507
      %v509 = vpop.f32.mrb[0].mxu0
      %510 = vmatprep.mubr.bf16.mxu0 0
      %511 = vmatmul.mubr.bf16.gmra.mrb[0].mxu0 %v307
      %v512 = vpop.f32.mrb[0].mxu0
      %v513 = vadd.f32 %v228, %v512
      %v514 = vpop.f32.mrb[0].mxu0
      %v515 = vpop.f32.mrb[0].mxu0
      %v516 = vadd.f32 %v228, %v515
      %v517 = vpop.f32.mrb[0].mxu0
      %518 = vmatprep.mubr.bf16.mxu0 0
      %519 = vmatmul.mubr.bf16.gmra.mrb[0].mxu0 %v308
      %v520 = vpop.f32.mrb[0].mxu0
      %v521 = vadd.f32 %v228, %v520
      %v522 = vpop.f32.mrb[0].mxu0
      %v523 = vpop.f32.mrb[0].mxu0
      %v524 = vadd.f32 %v228, %v523
      %v525 = vpop.f32.mrb[0].mxu0
      %526 = vmatprep.mubr.bf16.mxu0 0
      %527 = vmatmul.mubr.bf16.gmra.mrb[0].mxu0 %v309
      %v528 = vpop.f32.mrb[0].mxu0
      %v529 = vadd.f32 %v228, %v528
      %v530 = vpop.f32.mrb[0].mxu0
      %v531 = vpop.f32.mrb[0].mxu0
      %v532 = vadd.f32 %v228, %v531
      %v533 = vpop.f32.mrb[0].mxu0
      %534 = vdwg.mxu0
      %vm535 = vcmp.ge.f32.partialorder %v409, 0.0
      %vm536 = vcmp.ge.f32.partialorder %v412, 0.0
      %vm537 = vcmp.ge.f32.partialorder %v417, 0.0
      %vm538 = vcmp.ge.f32.partialorder %v420, 0.0
      %vm539 = vcmp.ge.f32.partialorder %v425, 0.0
      %vm540 = vcmp.ge.f32.partialorder %v428, 0.0
      %vm541 = vcmp.ge.f32.partialorder %v433, 0.0
      %vm542 = vcmp.ge.f32.partialorder %v436, 0.0
      %vm543 = vcmp.ge.f32.partialorder %v441, 0.0
      %vm544 = vcmp.ge.f32.partialorder %v444, 0.0
      %vm545 = vcmp.ge.f32.partialorder %v449, 0.0
      %vm546 = vcmp.ge.f32.partialorder %v452, 0.0
      %vm547 = vcmp.ge.f32.partialorder %v457, 0.0
      %vm548 = vcmp.ge.f32.partialorder %v460, 0.0
      %vm549 = vcmp.ge.f32.partialorder %v465, 0.0
      %vm550 = vcmp.ge.f32.partialorder %v468, 0.0
      %vm551 = vcmp.ge.f32.partialorder %v473, 0.0
      %vm552 = vcmp.ge.f32.partialorder %v476, 0.0
      %vm553 = vcmp.ge.f32.partialorder %v481, 0.0
      %vm554 = vcmp.ge.f32.partialorder %v484, 0.0
      %vm555 = vcmp.ge.f32.partialorder %v489, 0.0
      %vm556 = vcmp.ge.f32.partialorder %v492, 0.0
      %vm557 = vcmp.ge.f32.partialorder %v497, 0.0
      %vm558 = vcmp.ge.f32.partialorder %v500, 0.0
      %vm559 = vcmp.ge.f32.partialorder %v505, 0.0
      %vm560 = vcmp.ge.f32.partialorder %v508, 0.0
      %vm561 = vcmp.ge.f32.partialorder %v513, 0.0
      %vm562 = vcmp.ge.f32.partialorder %v516, 0.0
      %vm563 = vcmp.ge.f32.partialorder %v521, 0.0
      %vm564 = vcmp.ge.f32.partialorder %v524, 0.0
      %vm565 = vcmp.ge.f32.partialorder %v529, 0.0
      %vm566 = vcmp.ge.f32.partialorder %v532, 0.0
      %v567 = vmul.f32 %v409, 0.2
      %v568 = vmul.f32 %v412, 0.2
      %v569 = vmul.f32 %v417, 0.2
      %v570 = vmul.f32 %v420, 0.2
      %v571 = vmul.f32 %v425, 0.2
      %v572 = vmul.f32 %v428, 0.2
      %v573 = vmul.f32 %v433, 0.2
      %v574 = vmul.f32 %v436, 0.2
      %v575 = vmul.f32 %v441, 0.2
      %v576 = vmul.f32 %v444, 0.2
      %v577 = vmul.f32 %v449, 0.2
      %v578 = vmul.f32 %v452, 0.2
      %v579 = vmul.f32 %v457, 0.2
      %v580 = vmul.f32 %v460, 0.2
      %v581 = vmul.f32 %v465, 0.2
      %v582 = vmul.f32 %v468, 0.2
      %v583 = vmul.f32 %v473, 0.2
      %v584 = vmul.f32 %v476, 0.2
      %v585 = vmul.f32 %v481, 0.2
      %v586 = vmul.f32 %v484, 0.2
      %v587 = vmul.f32 %v489, 0.2
      %v588 = vmul.f32 %v492, 0.2
      %v589 = vmul.f32 %v497, 0.2
      %v590 = vmul.f32 %v500, 0.2
      %v591 = vmul.f32 %v505, 0.2
      %v592 = vmul.f32 %v508, 0.2
      %v593 = vmul.f32 %v513, 0.2
      %v594 = vmul.f32 %v516, 0.2
      %v595 = vmul.f32 %v521, 0.2
      %v596 = vmul.f32 %v524, 0.2
      %v597 = vmul.f32 %v529, 0.2
      %v598 = vmul.f32 %v532, 0.2
      %v599 = vsel %vm535, %v409, %v567
      %v600 = vsel %vm536, %v412, %v568
      %v601 = vsel %vm537, %v417, %v569
      %v602 = vsel %vm538, %v420, %v570
      %v603 = vsel %vm539, %v425, %v571
      %v604 = vsel %vm540, %v428, %v572
      %v605 = vsel %vm541, %v433, %v573
      %v606 = vsel %vm542, %v436, %v574
      %v607 = vsel %vm543, %v441, %v575
      %v608 = vsel %vm544, %v444, %v576
      %v609 = vsel %vm545, %v449, %v577
      %v610 = vsel %vm546, %v452, %v578
      %v611 = vsel %vm547, %v457, %v579
      %v612 = vsel %vm548, %v460, %v580
      %v613 = vsel %vm549, %v465, %v581
      %v614 = vsel %vm550, %v468, %v582
      %v615 = vsel %vm551, %v473, %v583
      %v616 = vsel %vm552, %v476, %v584
      %v617 = vsel %vm553, %v481, %v585
      %v618 = vsel %vm554, %v484, %v586
      %v619 = vsel %vm555, %v489, %v587
      %v620 = vsel %vm556, %v492, %v588
      %v621 = vsel %vm557, %v497, %v589
      %v622 = vsel %vm558, %v500, %v590
      %v623 = vsel %vm559, %v505, %v591
      %v624 = vsel %vm560, %v508, %v592
      %v625 = vsel %vm561, %v513, %v593
      %v626 = vsel %vm562, %v516, %v594
      %v627 = vsel %vm563, %v521, %v595
      %v628 = vsel %vm564, %v524, %v596
      %v629 = vsel %vm565, %v529, %v597
      %v630 = vsel %vm566, %v532, %v598
      %631 = vst [vmem:[%s172] sm:$0xff] %v599
      %632 = vst [vmem:[%s172 + $0x8] sm:$0xff] %v600
      %633 = vst [vmem:[%s172 + $0x10] sm:$0xff] %v601
      %634 = vst [vmem:[%s172 + $0x18] sm:$0xff] %v602
      %635 = vst [vmem:[%s172 + $0x20] sm:$0xff] %v603
      %636 = vst [vmem:[%s172 + $0x28] sm:$0xff] %v604
      %637 = vst [vmem:[%s172 + $0x30] sm:$0xff] %v605
      %638 = vst [vmem:[%s172 + $0x38] sm:$0xff] %v606
      %639 = vst [vmem:[%s172 + $0x40] sm:$0xff] %v607
      %640 = vst [vmem:[%s172 + $0x48] sm:$0xff] %v608
      %641 = vst [vmem:[%s172 + $0x50] sm:$0xff] %v609
      %642 = vst [vmem:[%s172 + $0x58] sm:$0xff] %v610
      %643 = vst [vmem:[%s172 + $0x60] sm:$0xff] %v611
      %644 = vst [vmem:[%s172 + $0x68] sm:$0xff] %v612
      %645 = vst [vmem:[%s172 + $0x70] sm:$0xff] %v613
      %646 = vst [vmem:[%s172 + $0x78] sm:$0xff] %v614
      %647 = vst [vmem:[%s172 + $0x80] sm:$0xff] %v615
      %648 = vst [vmem:[%s172 + $0x88] sm:$0xff] %v616
      %649 = vst [vmem:[%s172 + $0x90] sm:$0xff] %v617
      %650 = vst [vmem:[%s172 + $0x98] sm:$0xff] %v618
      %651 = vst [vmem:[%s172 + $0xa0] sm:$0xff] %v619
      %652 = vst [vmem:[%s172 + $0xa8] sm:$0xff] %v620
      %653 = vst [vmem:[%s172 + $0xb0] sm:$0xff] %v621
      %654 = vst [vmem:[%s172 + $0xb8] sm:$0xff] %v622
      %655 = vst [vmem:[%s172 + $0xc0] sm:$0xff] %v623
      %656 = vst [vmem:[%s172 + $0xc8] sm:$0xff] %v624
      %657 = vst [vmem:[%s172 + $0xd0] sm:$0xff] %v625
      %658 = vst [vmem:[%s172 + $0xd8] sm:$0xff] %v626
      %659 = vst [vmem:[%s172 + $0xe0] sm:$0xff] %v627
      %660 = vst [vmem:[%s172 + $0xe8] sm:$0xff] %v628
      %661 = vst [vmem:[%s172 + $0xf0] sm:$0xff] %v629
      %662 = vst [vmem:[%s172 + $0xf8] sm:$0xff] %v630
      %s663 = smul.u32 32, %s14
      %p664 = scmp.lt.s32.totalorder %s663, 63
      %s665 = scalar_select %p664, %s663, 63
      %s666 = smul.addr %s665, 8
      %s667 = scalar_lea.vmem %s3, %s666
      // Predicated region
      $region33: #{_lambda_.8} parent=31 // pred_check
        %p668 = pneg %p100
      $region34: #{_lambda_.8} parent=31 // pred_check_branch
        %670 = sbr.rel (%p668) target = $region36
      $region35: #{_lambda_.8} parent=31 // pred_region
        %s671 = smul.u32 32, %s14
      $region36: #{_lambda_.8} parent=31 // pred_fallthru
        _
    $region32: #{_lambda_.8} parent=5 // pred_fallthru
      _
    %p672 = scmp.le.s32.totalorder 2, %s9
    // Predicated region
    $region37: #{_lambda_.8} parent=5 // pred_check
      %p673 = pneg %p672
    $region38: #{_lambda_.8} parent=5 // pred_check_branch
      %675 = sbr.rel (%p673) target = $region40
    $region39: #{_lambda_.8} parent=5 // pred_region
      %s676 = ssub.s32 %s9, 2
      // Predicated region
      $region41: #{_lambda_.8} parent=39 // pred_check
        %p677 = pneg %p106
      $region42: #{_lambda_.8} parent=39 // pred_check_branch
        %679 = sbr.rel (%p677) target = $region44
      $region43: #{_lambda_.8} parent=39 // pred_region
        %s680 = smul.u32 32, %s15
        %p681 = scmp.lt.s32.totalorder %s680, 63
        %s682 = scalar_select %p681, %s680, 63
        %s683 = smul.addr %s682, 8
        %s684 = scalar_lea.vmem %s3, %s683
      $region44: #{_lambda_.8} parent=39 // pred_fallthru
        _
    $region40: #{_lambda_.8} parent=5 // pred_fallthru
      _
  $region6: #{_lambda_.8} parent=0 // loop_footer
    %s13 = sadd.s32 1, %s9
  $region7: #{_lambda_.8} parent=0 // loop_footer_branch
    %8 = sbr.rel target = $region3
  $region8: #{_lambda_.8} parent=0 // loop_exit
    _

// kernel: _lambda_.9
$region0: #{_lambda_.9}
  #allocation0 [shape = 'u32[]', space=smem, size = 0x4, offset = 0x4, fixed_abs, tag = 'smem constant byte address 0x4 - core index']
  #allocation1 [shape = 'u32[144,128]{1,0:T(1,128)}', space=vmem, size = 0x12000, scoped, tag = 'internal scratch']
  %s0 = inlined_call_operand.vmem [shape: bf16[128,256], index: 0, kind: input, shape index: {}]
  %s1 = inlined_call_operand.vmem [shape: bf16[256,128], index: 1, kind: input, shape index: {}]
  %s2 = inlined_call_operand.vmem [shape: f32[128,128], index: 2, kind: output, shape index: {0}]
  %s3 = inlined_call_operand.vmem [shape: f32[1,128], index: 3, kind: output, shape index: {1}]
  %s4 = inlined_call_operand.vmem [shape: f32[1,128], index: 4, kind: output, shape index: {2}]
  %5 = xla_tuple %s2, %s3, %s4
  %s6 = sld [smem:[#allocation0]]
  $region38: #{_lambda_.9} parent=0
    _
  %s8 = ssub.s32 1, %s6
  %s9 = scalar_select 0, %s8, %s6
  // Predicated region
  $region2: #{_lambda_.9} parent=0 // pred_check
    _
  $region3: #{_lambda_.9} parent=0 // pred_check_branch
    %11 = sbr.rel (0) target = $region5
  $region4: #{_lambda_.9} parent=0 // pred_region
    _
  $region5: #{_lambda_.9} parent=0 // pred_fallthru
    _
  // Predicated region
  $region6: #{_lambda_.9} parent=0 // pred_check
    _
  $region7: #{_lambda_.9} parent=0 // pred_check_branch
    %13 = sbr.rel (0) target = $region9
  $region8: #{_lambda_.9} parent=0 // pred_region
    _
  $region9: #{_lambda_.9} parent=0 // pred_fallthru
    _
  %p15 = scmp.eq.s32.totalorder 0, 0
  // Predicated region
  $region10: #{_lambda_.9} parent=0 // pred_check
    %p16 = pneg %p15
  $region11: #{_lambda_.9} parent=0 // pred_check_branch
    %18 = sbr.rel (%p16) target = $region13
  $region12: #{_lambda_.9} parent=0 // pred_region
    %19 = vst [vmem:[%s3] sm:$0x1] 0.0
    %20 = vst [vmem:[%s4] sm:$0x1] 0.0
  $region13: #{_lambda_.9} parent=0 // pred_fallthru
    _
  %v21 = vld [vmem:[%s0] sm:$0xff]
  %v22 = vld [vmem:[%s0 + $0x8] sm:$0xff]
  %v23 = vld [vmem:[%s0 + $0x10] sm:$0xff]
  %v24 = vld [vmem:[%s0 + $0x18] sm:$0xff]
  %v25 = vld [vmem:[%s0 + $0x20] sm:$0xff]
  %v26 = vld [vmem:[%s0 + $0x28] sm:$0xff]
  %v27 = vld [vmem:[%s0 + $0x30] sm:$0xff]
  %v28 = vld [vmem:[%s0 + $0x38] sm:$0xff]
  %v29 = vld [vmem:[%s0 + $0x40] sm:$0xff]
  %v30 = vld [vmem:[%s0 + $0x48] sm:$0xff]
  %v31 = vld [vmem:[%s0 + $0x50] sm:$0xff]
  %v32 = vld [vmem:[%s0 + $0x58] sm:$0xff]
  %v33 = vld [vmem:[%s0 + $0x60] sm:$0xff]
  %v34 = vld [vmem:[%s0 + $0x68] sm:$0xff]
  %v35 = vld [vmem:[%s0 + $0x70] sm:$0xff]
  %v36 = vld [vmem:[%s0 + $0x78] sm:$0xff]
  %v37 = vld [vmem:[%s1] sm:$0xf]
  %v38 = vld [vmem:[%s1 + $0x4] sm:$0xf]
  %v39 = vld [vmem:[%s1 + $0x8] sm:$0xf]
  %v40 = vld [vmem:[%s1 + $0xc] sm:$0xf]
  %v41 = vld [vmem:[%s1 + $0x10] sm:$0xf]
  %v42 = vld [vmem:[%s1 + $0x14] sm:$0xf]
  %v43 = vld [vmem:[%s1 + $0x18] sm:$0xf]
  %v44 = vld [vmem:[%s1 + $0x1c] sm:$0xf]
  %v45 = vld [vmem:[%s1 + $0x20] sm:$0xf]
  %v46 = vld [vmem:[%s1 + $0x24] sm:$0xf]
  %v47 = vld [vmem:[%s1 + $0x28] sm:$0xf]
  %v48 = vld [vmem:[%s1 + $0x2c] sm:$0xf]
  %v49 = vld [vmem:[%s1 + $0x30] sm:$0xf]
  %v50 = vld [vmem:[%s1 + $0x34] sm:$0xf]
  %v51 = vld [vmem:[%s1 + $0x38] sm:$0xf]
  %v52 = vld [vmem:[%s1 + $0x3c] sm:$0xf]
  %v53 = vld [vmem:[%s1 + $0x40] sm:$0xf]
  %v54 = vld [vmem:[%s1 + $0x44] sm:$0xf]
  %v55 = vld [vmem:[%s1 + $0x48] sm:$0xf]
  %v56 = vld [vmem:[%s1 + $0x4c] sm:$0xf]
  %v57 = vld [vmem:[%s1 + $0x50] sm:$0xf]
  %v58 = vld [vmem:[%s1 + $0x54] sm:$0xf]
  %v59 = vld [vmem:[%s1 + $0x58] sm:$0xf]
  %v60 = vld [vmem:[%s1 + $0x5c] sm:$0xf]
  %v61 = vld [vmem:[%s1 + $0x60] sm:$0xf]
  %v62 = vld [vmem:[%s1 + $0x64] sm:$0xf]
  %v63 = vld [vmem:[%s1 + $0x68] sm:$0xf]
  %v64 = vld [vmem:[%s1 + $0x6c] sm:$0xf]
  %v65 = vld [vmem:[%s1 + $0x70] sm:$0xf]
  %v66 = vld [vmem:[%s1 + $0x74] sm:$0xf]
  %v67 = vld [vmem:[%s1 + $0x78] sm:$0xf]
  %v68 = vld [vmem:[%s1 + $0x7c] sm:$0xf]
  %v85 = vunpack.c.l.b16 %v21
  %v86 = vunpack.c.h.b16 %v21
  %v87 = vunpack.c.l.b16 %v22
  %v88 = vunpack.c.h.b16 %v22
  %v89 = vunpack.c.l.b16 %v23
  %v90 = vunpack.c.h.b16 %v23
  %v91 = vunpack.c.l.b16 %v24
  %v92 = vunpack.c.h.b16 %v24
  %v93 = vunpack.c.l.b16 %v25
  %v94 = vunpack.c.h.b16 %v25
  %v95 = vunpack.c.l.b16 %v26
  %v96 = vunpack.c.h.b16 %v26
  %v97 = vunpack.c.l.b16 %v27
  %v98 = vunpack.c.h.b16 %v27
  %v99 = vunpack.c.l.b16 %v28
  %v100 = vunpack.c.h.b16 %v28
  %v101 = vunpack.c.l.b16 %v29
  %v102 = vunpack.c.h.b16 %v29
  %v103 = vunpack.c.l.b16 %v30
  %v104 = vunpack.c.h.b16 %v30
  %v105 = vunpack.c.l.b16 %v31
  %v106 = vunpack.c.h.b16 %v31
  %v107 = vunpack.c.l.b16 %v32
  %v108 = vunpack.c.h.b16 %v32
  %v109 = vunpack.c.l.b16 %v33
  %v110 = vunpack.c.h.b16 %v33
  %v111 = vunpack.c.l.b16 %v34
  %v112 = vunpack.c.h.b16 %v34
  %v113 = vunpack.c.l.b16 %v35
  %v114 = vunpack.c.h.b16 %v35
  %v115 = vunpack.c.l.b16 %v36
  %v116 = vunpack.c.h.b16 %v36
  %v117 = vpack.c.b16 %v87, %v85
  %v118 = vpack.c.b16 %v88, %v86
  %v119 = vpack.c.b16 %v91, %v89
  %v120 = vpack.c.b16 %v92, %v90
  %v121 = vpack.c.b16 %v95, %v93
  %v122 = vpack.c.b16 %v96, %v94
  %v123 = vpack.c.b16 %v99, %v97
  %v124 = vpack.c.b16 %v100, %v98
  %v125 = vpack.c.b16 %v103, %v101
  %v126 = vpack.c.b16 %v104, %v102
  %v127 = vpack.c.b16 %v107, %v105
  %v128 = vpack.c.b16 %v108, %v106
  %v129 = vpack.c.b16 %v111, %v109
  %v130 = vpack.c.b16 %v112, %v110
  %v131 = vpack.c.b16 %v115, %v113
  %v132 = vpack.c.b16 %v116, %v114
  %v181 = vunpack.c.l.b16 %v37
  %v182 = vunpack.c.l.b16 %v38
  %v183 = vunpack.c.l.b16 %v39
  %v184 = vunpack.c.l.b16 %v40
  %v185 = vunpack.c.l.b16 %v41
  %v186 = vunpack.c.l.b16 %v42
  %v187 = vunpack.c.l.b16 %v43
  %v188 = vunpack.c.l.b16 %v44
  %v189 = vunpack.c.l.b16 %v45
  %v190 = vunpack.c.l.b16 %v46
  %v191 = vunpack.c.l.b16 %v47
  %v192 = vunpack.c.l.b16 %v48
  %v193 = vunpack.c.l.b16 %v49
  %v194 = vunpack.c.l.b16 %v50
  %v195 = vunpack.c.l.b16 %v51
  %v196 = vunpack.c.l.b16 %v52
  %v197 = vunpack.c.l.b16 %v53
  %v198 = vunpack.c.l.b16 %v54
  %v199 = vunpack.c.l.b16 %v55
  %v200 = vunpack.c.l.b16 %v56
  %v201 = vunpack.c.l.b16 %v57
  %v202 = vunpack.c.l.b16 %v58
  %v203 = vunpack.c.l.b16 %v59
  %v204 = vunpack.c.l.b16 %v60
  %v205 = vunpack.c.l.b16 %v61
  %v206 = vunpack.c.l.b16 %v62
  %v207 = vunpack.c.l.b16 %v63
  %v208 = vunpack.c.l.b16 %v64
  %v209 = vunpack.c.l.b16 %v65
  %v210 = vunpack.c.l.b16 %v66
  %v211 = vunpack.c.l.b16 %v67
  %v212 = vunpack.c.l.b16 %v68
  %v213 = vpack.c.b16 %v182, %v181
  %v214 = vpack.c.b16 %v184, %v183
  %v215 = vpack.c.b16 %v186, %v185
  %v216 = vpack.c.b16 %v188, %v187
  %v217 = vpack.c.b16 %v190, %v189
  %v218 = vpack.c.b16 %v192, %v191
  %v219 = vpack.c.b16 %v194, %v193
  %v220 = vpack.c.b16 %v196, %v195
  %v221 = vpack.c.b16 %v198, %v197
  %v222 = vpack.c.b16 %v200, %v199
  %v223 = vpack.c.b16 %v202, %v201
  %v224 = vpack.c.b16 %v204, %v203
  %v225 = vpack.c.b16 %v206, %v205
  %v226 = vpack.c.b16 %v208, %v207
  %v227 = vpack.c.b16 %v210, %v209
  %v228 = vpack.c.b16 %v212, %v211
  %245 = vmatprep.subr.bf16.mxu0 0
  %246 = vmatpush1.bf16.msra.mxu0 %v213
  %247 = vmatprep.subr.bf16.mxu0 0
  %248 = vmatpush1.bf16.msra.mxu0 %v214
  %249 = vmatprep.subr.bf16.mxu0 0
  %250 = vmatpush1.bf16.msra.mxu0 %v215
  %251 = vmatprep.subr.bf16.mxu0 0
  %252 = vmatpush1.bf16.msra.mxu0 %v216
  %253 = vmatprep.subr.bf16.mxu0 0
  %254 = vmatpush1.bf16.msra.mxu0 %v217
  %255 = vmatprep.subr.bf16.mxu0 0
  %256 = vmatpush1.bf16.msra.mxu0 %v218
  %257 = vmatprep.subr.bf16.mxu0 0
  %258 = vmatpush1.bf16.msra.mxu0 %v219
  %259 = vmatprep.subr.bf16.mxu0 0
  %260 = vmatpush1.bf16.msra.mxu0 %v220
  %261 = vmatprep.subr.bf16.mxu0 0
  %262 = vmatpush1.bf16.msra.mxu0 %v221
  %263 = vmatprep.subr.bf16.mxu0 0
  %264 = vmatpush1.bf16.msra.mxu0 %v222
  %265 = vmatprep.subr.bf16.mxu0 0
  %266 = vmatpush1.bf16.msra.mxu0 %v223
  %267 = vmatprep.subr.bf16.mxu0 0
  %268 = vmatpush1.bf16.msra.mxu0 %v224
  %269 = vmatprep.subr.bf16.mxu0 0
  %270 = vmatpush1.bf16.msra.mxu0 %v225
  %271 = vmatprep.subr.bf16.mxu0 0
  %272 = vmatpush1.bf16.msra.mxu0 %v226
  %273 = vmatprep.subr.bf16.mxu0 0
  %274 = vmatpush1.bf16.msra.mxu0 %v227
  %275 = vmatprep.subr.bf16.mxu0 0
  %276 = vmatpush1.bf16.msra.mxu0 %v228
  %277 = vmatprep.mubr.bf16.mxu0 %v118
  %278 = vmatmul.mubr.bf16.gmra.mrb[0].mxu0 %v117
  %v279 = vpop.f32.mrb[0].mxu0
  %v280 = vadd.f32 0.0, %v279
  %v281 = vpop.f32.mrb[0].mxu0
  %v282 = vpop.f32.mrb[0].mxu0
  %v283 = vadd.f32 0.0, %v282
  %v284 = vpop.f32.mrb[0].mxu0
  %285 = vmatprep.mubr.bf16.mxu0 %v120
  %286 = vmatmul.mubr.bf16.gmra.mrb[0].mxu0 %v119
  %v287 = vpop.f32.mrb[0].mxu0
  %v288 = vadd.f32 0.0, %v287
  %v289 = vpop.f32.mrb[0].mxu0
  %v290 = vpop.f32.mrb[0].mxu0
  %v291 = vadd.f32 0.0, %v290
  %v292 = vpop.f32.mrb[0].mxu0
  %293 = vmatprep.mubr.bf16.mxu0 %v122
  %294 = vmatmul.mubr.bf16.gmra.mrb[0].mxu0 %v121
  %v295 = vpop.f32.mrb[0].mxu0
  %v296 = vadd.f32 0.0, %v295
  %v297 = vpop.f32.mrb[0].mxu0
  %v298 = vpop.f32.mrb[0].mxu0
  %v299 = vadd.f32 0.0, %v298
  %v300 = vpop.f32.mrb[0].mxu0
  %301 = vmatprep.mubr.bf16.mxu0 %v124
  %302 = vmatmul.mubr.bf16.gmra.mrb[0].mxu0 %v123
  %v303 = vpop.f32.mrb[0].mxu0
  %v304 = vadd.f32 0.0, %v303
  %v305 = vpop.f32.mrb[0].mxu0
  %v306 = vpop.f32.mrb[0].mxu0
  %v307 = vadd.f32 0.0, %v306
  %v308 = vpop.f32.mrb[0].mxu0
  %309 = vmatprep.mubr.bf16.mxu0 %v126
  %310 = vmatmul.mubr.bf16.gmra.mrb[0].mxu0 %v125
  %v311 = vpop.f32.mrb[0].mxu0
  %v312 = vadd.f32 0.0, %v311
  %v313 = vpop.f32.mrb[0].mxu0
  %v314 = vpop.f32.mrb[0].mxu0
  %v315 = vadd.f32 0.0, %v314
  %v316 = vpop.f32.mrb[0].mxu0
  %317 = vmatprep.mubr.bf16.mxu0 %v128
  %318 = vmatmul.mubr.bf16.gmra.mrb[0].mxu0 %v127
  %v319 = vpop.f32.mrb[0].mxu0
  %v320 = vadd.f32 0.0, %v319
  %v321 = vpop.f32.mrb[0].mxu0
  %v322 = vpop.f32.mrb[0].mxu0
  %v323 = vadd.f32 0.0, %v322
  %v324 = vpop.f32.mrb[0].mxu0
  %325 = vmatprep.mubr.bf16.mxu0 %v130
  %326 = vmatmul.mubr.bf16.gmra.mrb[0].mxu0 %v129
  %v327 = vpop.f32.mrb[0].mxu0
  %v328 = vadd.f32 0.0, %v327
  %v329 = vpop.f32.mrb[0].mxu0
  %v330 = vpop.f32.mrb[0].mxu0
  %v331 = vadd.f32 0.0, %v330
  %v332 = vpop.f32.mrb[0].mxu0
  %333 = vmatprep.mubr.bf16.mxu0 %v132
  %334 = vmatmul.mubr.bf16.gmra.mrb[0].mxu0 %v131
  %v335 = vpop.f32.mrb[0].mxu0
  %v336 = vadd.f32 0.0, %v335
  %v337 = vpop.f32.mrb[0].mxu0
  %v338 = vpop.f32.mrb[0].mxu0
  %v339 = vadd.f32 0.0, %v338
  %v340 = vpop.f32.mrb[0].mxu0
  %341 = vdwg.mxu0
  %342 = vst [vmem:[%s2] sm:$0xff] %v280
  %343 = vst [vmem:[%s2 + $0x8] sm:$0xff] %v283
  %344 = vst [vmem:[%s2 + $0x10] sm:$0xff] %v288
  %345 = vst [vmem:[%s2 + $0x18] sm:$0xff] %v291
  %346 = vst [vmem:[%s2 + $0x20] sm:$0xff] %v296
  %347 = vst [vmem:[%s2 + $0x28] sm:$0xff] %v299
  %348 = vst [vmem:[%s2 + $0x30] sm:$0xff] %v304
  %349 = vst [vmem:[%s2 + $0x38] sm:$0xff] %v307
  %350 = vst [vmem:[%s2 + $0x40] sm:$0xff] %v312
  %351 = vst [vmem:[%s2 + $0x48] sm:$0xff] %v315
  %352 = vst [vmem:[%s2 + $0x50] sm:$0xff] %v320
  %353 = vst [vmem:[%s2 + $0x58] sm:$0xff] %v323
  %354 = vst [vmem:[%s2 + $0x60] sm:$0xff] %v328
  %355 = vst [vmem:[%s2 + $0x68] sm:$0xff] %v331
  %356 = vst [vmem:[%s2 + $0x70] sm:$0xff] %v336
  %357 = vst [vmem:[%s2 + $0x78] sm:$0xff] %v339
  %v358 = vld [vmem:[%s3] sm:$0x1]
  %v359 = vadd.f32 %v280, %v283
  %v360 = vadd.f32 %v359, %v288
  %v361 = vadd.f32 %v360, %v291
  %v362 = vadd.f32 %v361, %v296
  %v363 = vadd.f32 %v362, %v299
  %v364 = vadd.f32 %v363, %v304
  %v365 = vadd.f32 %v364, %v307
  %v366 = vadd.f32 %v365, %v312
  %v367 = vadd.f32 %v366, %v315
  %v368 = vadd.f32 %v367, %v320
  %v369 = vadd.f32 %v368, %v323
  %v370 = vadd.f32 %v369, %v328
  %v371 = vadd.f32 %v370, %v331
  %v372 = vadd.f32 %v371, %v336
  %v373 = vadd.f32 %v372, %v339
  %v374 = vrot.slane %v373, 4
  %v375 = vadd.f32 %v373, %v374
  %v376 = vrot.slane %v375, 2
  %v377 = vadd.f32 %v375, %v376
  %v378 = vrot.slane %v377, 1
  %v379 = vadd.f32 %v377, %v378
  %v380 = vadd.f32 %v358, %v379
  %381 = vst [vmem:[%s3] sm:$0x1] %v380
  %v382 = vld [vmem:[%s4] sm:$0x1]
  %v383 = vmul.f32 %v280, %v280
  %v384 = vmul.f32 %v283, %v283
  %v385 = vmul.f32 %v288, %v288
  %v386 = vmul.f32 %v291, %v291
  %v387 = vmul.f32 %v296, %v296
  %v388 = vmul.f32 %v299, %v299
  %v389 = vmul.f32 %v304, %v304
  %v390 = vmul.f32 %v307, %v307
  %v391 = vmul.f32 %v312, %v312
  %v392 = vmul.f32 %v315, %v315
  %v393 = vmul.f32 %v320, %v320
  %v394 = vmul.f32 %v323, %v323
  %v395 = vmul.f32 %v328, %v328
  %v396 = vmul.f32 %v331, %v331
  %v397 = vmul.f32 %v336, %v336
  %v398 = vmul.f32 %v339, %v339
  %v399 = vadd.f32 %v383, %v384
  %v400 = vadd.f32 %v399, %v385
  %v401 = vadd.f32 %v400, %v386
  %v402 = vadd.f32 %v401, %v387
  %v403 = vadd.f32 %v402, %v388
  %v404 = vadd.f32 %v403, %v389
  %v405 = vadd.f32 %v404, %v390
  %v406 = vadd.f32 %v405, %v391
  %v407 = vadd.f32 %v406, %v392
  %v408 = vadd.f32 %v407, %v393
  %v409 = vadd.f32 %v408, %v394
  %v410 = vadd.f32 %v409, %v395
  %v411 = vadd.f32 %v410, %v396
  %v412 = vadd.f32 %v411, %v397
  %v413 = vadd.f32 %v412, %v398
  %v414 = vrot.slane %v413, 4
  %v415 = vadd.f32 %v413, %v414
  %v416 = vrot.slane %v415, 2
  %v417 = vadd.f32 %v415, %v416
  %v418 = vrot.slane %v417, 1
  %v419 = vadd.f32 %v417, %v418
  %v420 = vadd.f32 %v382, %v419
  %421 = vst [vmem:[%s4] sm:$0x1] %v420
  // Predicated region
  $region14: #{_lambda_.9} parent=0 // pred_check
    _
  $region15: #{_lambda_.9} parent=0 // pred_check_branch
    %423 = sbr.rel (0) target = $region17
  $region16: #{_lambda_.9} parent=0 // pred_region
    _
  $region17: #{_lambda_.9} parent=0 // pred_fallthru
    _
  // Predicated region
  $region18: #{_lambda_.9} parent=0 // pred_check
    _
  $region19: #{_lambda_.9} parent=0 // pred_check_branch
    %425 = sbr.rel (0) target = $region21
  $region20: #{_lambda_.9} parent=0 // pred_region
    _
  $region21: #{_lambda_.9} parent=0 // pred_fallthru
    _
  // Predicated region
  $region22: #{_lambda_.9} parent=0 // pred_check
    _
  $region23: #{_lambda_.9} parent=0 // pred_check_branch
    %427 = sbr.rel (0) target = $region25
  $region24: #{_lambda_.9} parent=0 // pred_region
    _
  $region25: #{_lambda_.9} parent=0 // pred_fallthru
    _
  // Predicated region
  $region26: #{_lambda_.9} parent=0 // pred_check
    _
  $region27: #{_lambda_.9} parent=0 // pred_check_branch
    %429 = sbr.rel (0) target = $region29
  $region28: #{_lambda_.9} parent=0 // pred_region
    _
  $region29: #{_lambda_.9} parent=0 // pred_fallthru
    _
  // Predicated region
  $region30: #{_lambda_.9} parent=0 // pred_check
    _
  $region31: #{_lambda_.9} parent=0 // pred_check_branch
    %431 = sbr.rel (0) target = $region33
  $region32: #{_lambda_.9} parent=0 // pred_region
    _
  $region33: #{_lambda_.9} parent=0 // pred_fallthru
    _
  // Predicated region
  $region34: #{_lambda_.9} parent=0 // pred_check
    _
  $region35: #{_lambda_.9} parent=0 // pred_check_branch
    %433 = sbr.rel (0) target = $region37
  $region36: #{_lambda_.9} parent=0 // pred_region
    _
  $region37: #{_lambda_.9} parent=0 // pred_fallthru
    _

// kernel: _lambda_.10
$region0: #{_lambda_.10}
  #allocation0 [shape = 'u32[]', space=smem, size = 0x4, offset = 0x4, fixed_abs, tag = 'smem constant byte address 0x4 - core index']
  #allocation1 [shape = 'u32[144,128]{1,0:T(1,128)}', space=vmem, size = 0x12000, scoped, tag = 'internal scratch']
  %s0 = inlined_call_operand.vmem [shape: f32[128,128], index: 0, kind: input, shape index: {}]
  %s1 = inlined_call_operand.vmem [shape: f32[1,128], index: 1, kind: input, shape index: {}]
  %s2 = inlined_call_operand.vmem [shape: f32[1,128], index: 2, kind: input, shape index: {}]
  %s3 = inlined_call_operand.vmem [shape: f32[1,128], index: 3, kind: input, shape index: {}]
  %s4 = inlined_call_operand.vmem [shape: f32[1,128], index: 4, kind: input, shape index: {}]
  %s5 = inlined_call_operand.vmem [shape: f32[128,128], index: 5, kind: output, shape index: {}]
  %s6 = sld [smem:[#allocation0]]
  $region30: #{_lambda_.10} parent=0
    _
  %s8 = ssub.s32 1, %s6
  %s9 = scalar_select 0, %s8, %s6
  // Predicated region
  $region2: #{_lambda_.10} parent=0 // pred_check
    _
  $region3: #{_lambda_.10} parent=0 // pred_check_branch
    %11 = sbr.rel (0) target = $region5
  $region4: #{_lambda_.10} parent=0 // pred_region
    _
  $region5: #{_lambda_.10} parent=0 // pred_fallthru
    _
  // Predicated region
  $region6: #{_lambda_.10} parent=0 // pred_check
    _
  $region7: #{_lambda_.10} parent=0 // pred_check_branch
    %13 = sbr.rel (0) target = $region9
  $region8: #{_lambda_.10} parent=0 // pred_region
    _
  $region9: #{_lambda_.10} parent=0 // pred_fallthru
    _
  // Predicated region
  $region10: #{_lambda_.10} parent=0 // pred_check
    _
  $region11: #{_lambda_.10} parent=0 // pred_check_branch
    %15 = sbr.rel (0) target = $region13
  $region12: #{_lambda_.10} parent=0 // pred_region
    _
  $region13: #{_lambda_.10} parent=0 // pred_fallthru
    _
  // Predicated region
  $region14: #{_lambda_.10} parent=0 // pred_check
    _
  $region15: #{_lambda_.10} parent=0 // pred_check_branch
    %17 = sbr.rel (0) target = $region17
  $region16: #{_lambda_.10} parent=0 // pred_region
    _
  $region17: #{_lambda_.10} parent=0 // pred_fallthru
    _
  // Predicated region
  $region18: #{_lambda_.10} parent=0 // pred_check
    _
  $region19: #{_lambda_.10} parent=0 // pred_check_branch
    %19 = sbr.rel (0) target = $region21
  $region20: #{_lambda_.10} parent=0 // pred_region
    _
  $region21: #{_lambda_.10} parent=0 // pred_fallthru
    _
  %v20 = vld [vmem:[%s1] sm:$0x1]
  %v21 = vmul.f32 %v20, 0.0078125
  %v22 = vld [vmem:[%s2] sm:$0x1]
  %v23 = vmul.f32 %v22, 0.0078125
  %v24 = vmul.f32 %v21, %v21
  %v25 = vsub.f32 %v23, %v24
  %v26 = vld [vmem:[%s3] sm:$0x1]
  %v27 = vadd.f32 %v25, 1e-05
  %v28 = vrsqrt.pop %v27
  %v29 = vmul.f32 %v26, %v28
  %v30 = vld [vmem:[%s4] sm:$0x1]
  %v31 = vmul.f32 %v21, %v29
  %v32 = vsub.f32 %v30, %v31
  %v33 = vld [vmem:[%s0] sm:$0xff]
  %v34 = vld [vmem:[%s0 + $0x8] sm:$0xff]
  %v35 = vld [vmem:[%s0 + $0x10] sm:$0xff]
  %v36 = vld [vmem:[%s0 + $0x18] sm:$0xff]
  %v37 = vld [vmem:[%s0 + $0x20] sm:$0xff]
  %v38 = vld [vmem:[%s0 + $0x28] sm:$0xff]
  %v39 = vld [vmem:[%s0 + $0x30] sm:$0xff]
  %v40 = vld [vmem:[%s0 + $0x38] sm:$0xff]
  %v41 = vld [vmem:[%s0 + $0x40] sm:$0xff]
  %v42 = vld [vmem:[%s0 + $0x48] sm:$0xff]
  %v43 = vld [vmem:[%s0 + $0x50] sm:$0xff]
  %v44 = vld [vmem:[%s0 + $0x58] sm:$0xff]
  %v45 = vld [vmem:[%s0 + $0x60] sm:$0xff]
  %v46 = vld [vmem:[%s0 + $0x68] sm:$0xff]
  %v47 = vld [vmem:[%s0 + $0x70] sm:$0xff]
  %v48 = vld [vmem:[%s0 + $0x78] sm:$0xff]
  %v50 = vlaneseq
  %v51 = vshrl.u32 %v50, 7
  %v52 = vsub.s32 0, %v51
  %v53 = vrot.slane %v29, %v52
  %v55 = vmul.f32 %v33, %v53
  %v56 = vmul.f32 %v34, %v53
  %v57 = vmul.f32 %v35, %v53
  %v58 = vmul.f32 %v36, %v53
  %v59 = vmul.f32 %v37, %v53
  %v60 = vmul.f32 %v38, %v53
  %v61 = vmul.f32 %v39, %v53
  %v62 = vmul.f32 %v40, %v53
  %v63 = vmul.f32 %v41, %v53
  %v64 = vmul.f32 %v42, %v53
  %v65 = vmul.f32 %v43, %v53
  %v66 = vmul.f32 %v44, %v53
  %v67 = vmul.f32 %v45, %v53
  %v68 = vmul.f32 %v46, %v53
  %v69 = vmul.f32 %v47, %v53
  %v70 = vmul.f32 %v48, %v53
  %v72 = vlaneseq
  %v73 = vshrl.u32 %v72, 7
  %v74 = vsub.s32 0, %v73
  %v75 = vrot.slane %v32, %v74
  %v77 = vadd.f32 %v55, %v75
  %v78 = vadd.f32 %v56, %v75
  %v79 = vadd.f32 %v57, %v75
  %v80 = vadd.f32 %v58, %v75
  %v81 = vadd.f32 %v59, %v75
  %v82 = vadd.f32 %v60, %v75
  %v83 = vadd.f32 %v61, %v75
  %v84 = vadd.f32 %v62, %v75
  %v85 = vadd.f32 %v63, %v75
  %v86 = vadd.f32 %v64, %v75
  %v87 = vadd.f32 %v65, %v75
  %v88 = vadd.f32 %v66, %v75
  %v89 = vadd.f32 %v67, %v75
  %v90 = vadd.f32 %v68, %v75
  %v91 = vadd.f32 %v69, %v75
  %v92 = vadd.f32 %v70, %v75
  %vm93 = vcmp.ge.f32.partialorder %v77, 0.0
  %vm94 = vcmp.ge.f32.partialorder %v78, 0.0
  %vm95 = vcmp.ge.f32.partialorder %v79, 0.0
  %vm96 = vcmp.ge.f32.partialorder %v80, 0.0
  %vm97 = vcmp.ge.f32.partialorder %v81, 0.0
  %vm98 = vcmp.ge.f32.partialorder %v82, 0.0
  %vm99 = vcmp.ge.f32.partialorder %v83, 0.0
  %vm100 = vcmp.ge.f32.partialorder %v84, 0.0
  %vm101 = vcmp.ge.f32.partialorder %v85, 0.0
  %vm102 = vcmp.ge.f32.partialorder %v86, 0.0
  %vm103 = vcmp.ge.f32.partialorder %v87, 0.0
  %vm104 = vcmp.ge.f32.partialorder %v88, 0.0
  %vm105 = vcmp.ge.f32.partialorder %v89, 0.0
  %vm106 = vcmp.ge.f32.partialorder %v90, 0.0
  %vm107 = vcmp.ge.f32.partialorder %v91, 0.0
  %vm108 = vcmp.ge.f32.partialorder %v92, 0.0
  %v109 = vmul.f32 %v77, 0.2
  %v110 = vmul.f32 %v78, 0.2
  %v111 = vmul.f32 %v79, 0.2
  %v112 = vmul.f32 %v80, 0.2
  %v113 = vmul.f32 %v81, 0.2
  %v114 = vmul.f32 %v82, 0.2
  %v115 = vmul.f32 %v83, 0.2
  %v116 = vmul.f32 %v84, 0.2
  %v117 = vmul.f32 %v85, 0.2
  %v118 = vmul.f32 %v86, 0.2
  %v119 = vmul.f32 %v87, 0.2
  %v120 = vmul.f32 %v88, 0.2
  %v121 = vmul.f32 %v89, 0.2
  %v122 = vmul.f32 %v90, 0.2
  %v123 = vmul.f32 %v91, 0.2
  %v124 = vmul.f32 %v92, 0.2
  %v125 = vsel %vm93, %v77, %v109
  %v126 = vsel %vm94, %v78, %v110
  %v127 = vsel %vm95, %v79, %v111
  %v128 = vsel %vm96, %v80, %v112
  %v129 = vsel %vm97, %v81, %v113
  %v130 = vsel %vm98, %v82, %v114
  %v131 = vsel %vm99, %v83, %v115
  %v132 = vsel %vm100, %v84, %v116
  %v133 = vsel %vm101, %v85, %v117
  %v134 = vsel %vm102, %v86, %v118
  %v135 = vsel %vm103, %v87, %v119
  %v136 = vsel %vm104, %v88, %v120
  %v137 = vsel %vm105, %v89, %v121
  %v138 = vsel %vm106, %v90, %v122
  %v139 = vsel %vm107, %v91, %v123
  %v140 = vsel %vm108, %v92, %v124
  %141 = vst [vmem:[%s5] sm:$0xff] %v125
  %142 = vst [vmem:[%s5 + $0x8] sm:$0xff] %v126
  %143 = vst [vmem:[%s5 + $0x10] sm:$0xff] %v127
  %144 = vst [vmem:[%s5 + $0x18] sm:$0xff] %v128
  %145 = vst [vmem:[%s5 + $0x20] sm:$0xff] %v129
  %146 = vst [vmem:[%s5 + $0x28] sm:$0xff] %v130
  %147 = vst [vmem:[%s5 + $0x30] sm:$0xff] %v131
  %148 = vst [vmem:[%s5 + $0x38] sm:$0xff] %v132
  %149 = vst [vmem:[%s5 + $0x40] sm:$0xff] %v133
  %150 = vst [vmem:[%s5 + $0x48] sm:$0xff] %v134
  %151 = vst [vmem:[%s5 + $0x50] sm:$0xff] %v135
  %152 = vst [vmem:[%s5 + $0x58] sm:$0xff] %v136
  %153 = vst [vmem:[%s5 + $0x60] sm:$0xff] %v137
  %154 = vst [vmem:[%s5 + $0x68] sm:$0xff] %v138
  %155 = vst [vmem:[%s5 + $0x70] sm:$0xff] %v139
  %156 = vst [vmem:[%s5 + $0x78] sm:$0xff] %v140
  // Predicated region
  $region22: #{_lambda_.10} parent=0 // pred_check
    _
  $region23: #{_lambda_.10} parent=0 // pred_check_branch
    %158 = sbr.rel (0) target = $region25
  $region24: #{_lambda_.10} parent=0 // pred_region
    _
  $region25: #{_lambda_.10} parent=0 // pred_fallthru
    _
  // Predicated region
  $region26: #{_lambda_.10} parent=0 // pred_check
    _
  $region27: #{_lambda_.10} parent=0 // pred_check_branch
    %160 = sbr.rel (0) target = $region29
  $region28: #{_lambda_.10} parent=0 // pred_region
    _
  $region29: #{_lambda_.10} parent=0 // pred_fallthru
    _

// kernel: _lambda_.12
$region0: #{_lambda_.12}
  #allocation0 [shape = 'u32[]', space=smem, size = 0x4, offset = 0x4, fixed_abs, tag = 'smem constant byte address 0x4 - core index']
  #allocation1 [shape = 'u32[144,128]{1,0:T(1,128)}', space=vmem, size = 0x12000, scoped, tag = 'internal scratch']
  %s0 = inlined_call_operand.vmem [shape: f32[32,128], index: 0, kind: input, shape index: {}]
  %s1 = inlined_call_operand.vmem [shape: f32[1,128], index: 1, kind: input, shape index: {}]
  %s2 = inlined_call_operand.vmem [shape: f32[1,128], index: 2, kind: input, shape index: {}]
  %s3 = inlined_call_operand.vmem [shape: f32[1,128], index: 3, kind: input, shape index: {}]
  %s4 = inlined_call_operand.vmem [shape: f32[1,128], index: 4, kind: input, shape index: {}]
  %s5 = inlined_call_operand.vmem [shape: f32[32,128], index: 5, kind: output, shape index: {}]
  %s6 = sld [smem:[#allocation0]]
  $region30: #{_lambda_.12} parent=0
    _
  %s8 = ssub.s32 1, %s6
  %s9 = scalar_select 0, %s8, %s6
  // Predicated region
  $region2: #{_lambda_.12} parent=0 // pred_check
    _
  $region3: #{_lambda_.12} parent=0 // pred_check_branch
    %11 = sbr.rel (0) target = $region5
  $region4: #{_lambda_.12} parent=0 // pred_region
    _
  $region5: #{_lambda_.12} parent=0 // pred_fallthru
    _
  // Predicated region
  $region6: #{_lambda_.12} parent=0 // pred_check
    _
  $region7: #{_lambda_.12} parent=0 // pred_check_branch
    %13 = sbr.rel (0) target = $region9
  $region8: #{_lambda_.12} parent=0 // pred_region
    _
  $region9: #{_lambda_.12} parent=0 // pred_fallthru
    _
  // Predicated region
  $region10: #{_lambda_.12} parent=0 // pred_check
    _
  $region11: #{_lambda_.12} parent=0 // pred_check_branch
    %15 = sbr.rel (0) target = $region13
  $region12: #{_lambda_.12} parent=0 // pred_region
    _
  $region13: #{_lambda_.12} parent=0 // pred_fallthru
    _
  // Predicated region
  $region14: #{_lambda_.12} parent=0 // pred_check
    _
  $region15: #{_lambda_.12} parent=0 // pred_check_branch
    %17 = sbr.rel (0) target = $region17
  $region16: #{_lambda_.12} parent=0 // pred_region
    _
  $region17: #{_lambda_.12} parent=0 // pred_fallthru
    _
  // Predicated region
  $region18: #{_lambda_.12} parent=0 // pred_check
    _
  $region19: #{_lambda_.12} parent=0 // pred_check_branch
    %19 = sbr.rel (0) target = $region21
  $region20: #{_lambda_.12} parent=0 // pred_region
    _
  $region21: #{_lambda_.12} parent=0 // pred_fallthru
    _
  %v20 = vld [vmem:[%s1] sm:$0x1]
  %v21 = vmul.f32 %v20, 0.03125
  %v22 = vld [vmem:[%s2] sm:$0x1]
  %v23 = vmul.f32 %v22, 0.03125
  %v24 = vmul.f32 %v21, %v21
  %v25 = vsub.f32 %v23, %v24
  %v26 = vld [vmem:[%s3] sm:$0x1]
  %v27 = vadd.f32 %v25, 1e-05
  %v28 = vrsqrt.pop %v27
  %v29 = vmul.f32 %v26, %v28
  %v30 = vld [vmem:[%s4] sm:$0x1]
  %v31 = vmul.f32 %v21, %v29
  %v32 = vsub.f32 %v30, %v31
  %v33 = vld [vmem:[%s0] sm:$0xff]
  %v34 = vld [vmem:[%s0 + $0x8] sm:$0xff]
  %v35 = vld [vmem:[%s0 + $0x10] sm:$0xff]
  %v36 = vld [vmem:[%s0 + $0x18] sm:$0xff]
  %v38 = vlaneseq
  %v39 = vshrl.u32 %v38, 7
  %v40 = vsub.s32 0, %v39
  %v41 = vrot.slane %v29, %v40
  %v43 = vmul.f32 %v33, %v41
  %v44 = vmul.f32 %v34, %v41
  %v45 = vmul.f32 %v35, %v41
  %v46 = vmul.f32 %v36, %v41
  %v48 = vlaneseq
  %v49 = vshrl.u32 %v48, 7
  %v50 = vsub.s32 0, %v49
  %v51 = vrot.slane %v32, %v50
  %v53 = vadd.f32 %v43, %v51
  %v54 = vadd.f32 %v44, %v51
  %v55 = vadd.f32 %v45, %v51
  %v56 = vadd.f32 %v46, %v51
  %vm57 = vcmp.ge.f32.partialorder %v53, 0.0
  %vm58 = vcmp.ge.f32.partialorder %v54, 0.0
  %vm59 = vcmp.ge.f32.partialorder %v55, 0.0
  %vm60 = vcmp.ge.f32.partialorder %v56, 0.0
  %v61 = vmul.f32 %v53, 0.2
  %v62 = vmul.f32 %v54, 0.2
  %v63 = vmul.f32 %v55, 0.2
  %v64 = vmul.f32 %v56, 0.2
  %v65 = vsel %vm57, %v53, %v61
  %v66 = vsel %vm58, %v54, %v62
  %v67 = vsel %vm59, %v55, %v63
  %v68 = vsel %vm60, %v56, %v64
  %69 = vst [vmem:[%s5] sm:$0xff] %v65
  %70 = vst [vmem:[%s5 + $0x8] sm:$0xff] %v66
  %71 = vst [vmem:[%s5 + $0x10] sm:$0xff] %v67
  %72 = vst [vmem:[%s5 + $0x18] sm:$0xff] %v68
  // Predicated region
  $region22: #{_lambda_.12} parent=0 // pred_check
    _
  $region23: #{_lambda_.12} parent=0 // pred_check_branch
    %74 = sbr.rel (0) target = $region25
  $region24: #{_lambda_.12} parent=0 // pred_region
    _
  $region25: #{_lambda_.12} parent=0 // pred_fallthru
    _
  // Predicated region
  $region26: #{_lambda_.12} parent=0 // pred_check
    _
  $region27: #{_lambda_.12} parent=0 // pred_check_branch
    %76 = sbr.rel (0) target = $region29
  $region28: #{_lambda_.12} parent=0 // pred_region
    _
  $region29: #{_lambda_.12} parent=0 // pred_fallthru
    _

// kernel: _lambda_.11
$region0: #{_lambda_.11}
  #allocation0 [shape = 'u32[]', space=smem, size = 0x4, offset = 0x4, fixed_abs, tag = 'smem constant byte address 0x4 - core index']
  #allocation1 [shape = 'u32[144,128]{1,0:T(1,128)}', space=vmem, size = 0x12000, scoped, tag = 'internal scratch']
  %s0 = inlined_call_operand.vmem [shape: bf16[32,512], index: 0, kind: input, shape index: {}]
  %s1 = inlined_call_operand.vmem [shape: bf16[512,128], index: 1, kind: input, shape index: {}]
  %s2 = inlined_call_operand.vmem [shape: f32[32,128], index: 2, kind: output, shape index: {0}]
  %s3 = inlined_call_operand.vmem [shape: f32[1,128], index: 3, kind: output, shape index: {1}]
  %s4 = inlined_call_operand.vmem [shape: f32[1,128], index: 4, kind: output, shape index: {2}]
  %5 = xla_tuple %s2, %s3, %s4
  %s6 = sld [smem:[#allocation0]]
  $region38: #{_lambda_.11} parent=0
    _
  %s8 = ssub.s32 1, %s6
  %s9 = scalar_select 0, %s8, %s6
  // Predicated region
  $region2: #{_lambda_.11} parent=0 // pred_check
    _
  $region3: #{_lambda_.11} parent=0 // pred_check_branch
    %11 = sbr.rel (0) target = $region5
  $region4: #{_lambda_.11} parent=0 // pred_region
    _
  $region5: #{_lambda_.11} parent=0 // pred_fallthru
    _
  // Predicated region
  $region6: #{_lambda_.11} parent=0 // pred_check
    _
  $region7: #{_lambda_.11} parent=0 // pred_check_branch
    %13 = sbr.rel (0) target = $region9
  $region8: #{_lambda_.11} parent=0 // pred_region
    _
  $region9: #{_lambda_.11} parent=0 // pred_fallthru
    _
  %p15 = scmp.eq.s32.totalorder 0, 0
  // Predicated region
  $region10: #{_lambda_.11} parent=0 // pred_check
    %p16 = pneg %p15
  $region11: #{_lambda_.11} parent=0 // pred_check_branch
    %18 = sbr.rel (%p16) target = $region13
  $region12: #{_lambda_.11} parent=0 // pred_region
    %19 = vst [vmem:[%s3] sm:$0x1] 0.0
    %20 = vst [vmem:[%s4] sm:$0x1] 0.0
  $region13: #{_lambda_.11} parent=0 // pred_fallthru
    _
  %v21 = vld [vmem:[%s0] sm:$0xff]
  %v22 = vld [vmem:[%s0 + $0x8] sm:$0xff]
  %v23 = vld [vmem:[%s0 + $0x10] sm:$0xff]
  %v24 = vld [vmem:[%s0 + $0x18] sm:$0xff]
  %v25 = vld [vmem:[%s0 + $0x20] sm:$0xff]
  %v26 = vld [vmem:[%s0 + $0x28] sm:$0xff]
  %v27 = vld [vmem:[%s0 + $0x30] sm:$0xff]
  %v28 = vld [vmem:[%s0 + $0x38] sm:$0xff]
  %v29 = vld [vmem:[%s1] sm:$0xf]
  %v30 = vld [vmem:[%s1 + $0x4] sm:$0xf]
  %v31 = vld [vmem:[%s1 + $0x8] sm:$0xf]
  %v32 = vld [vmem:[%s1 + $0xc] sm:$0xf]
  %v33 = vld [vmem:[%s1 + $0x10] sm:$0xf]
  %v34 = vld [vmem:[%s1 + $0x14] sm:$0xf]
  %v35 = vld [vmem:[%s1 + $0x18] sm:$0xf]
  %v36 = vld [vmem:[%s1 + $0x1c] sm:$0xf]
  %v37 = vld [vmem:[%s1 + $0x20] sm:$0xf]
  %v38 = vld [vmem:[%s1 + $0x24] sm:$0xf]
  %v39 = vld [vmem:[%s1 + $0x28] sm:$0xf]
  %v40 = vld [vmem:[%s1 + $0x2c] sm:$0xf]
  %v41 = vld [vmem:[%s1 + $0x30] sm:$0xf]
  %v42 = vld [vmem:[%s1 + $0x34] sm:$0xf]
  %v43 = vld [vmem:[%s1 + $0x38] sm:$0xf]
  %v44 = vld [vmem:[%s1 + $0x3c] sm:$0xf]
  %v45 = vld [vmem:[%s1 + $0x40] sm:$0xf]
  %v46 = vld [vmem:[%s1 + $0x44] sm:$0xf]
  %v47 = vld [vmem:[%s1 + $0x48] sm:$0xf]
  %v48 = vld [vmem:[%s1 + $0x4c] sm:$0xf]
  %v49 = vld [vmem:[%s1 + $0x50] sm:$0xf]
  %v50 = vld [vmem:[%s1 + $0x54] sm:$0xf]
  %v51 = vld [vmem:[%s1 + $0x58] sm:$0xf]
  %v52 = vld [vmem:[%s1 + $0x5c] sm:$0xf]
  %v53 = vld [vmem:[%s1 + $0x60] sm:$0xf]
  %v54 = vld [vmem:[%s1 + $0x64] sm:$0xf]
  %v55 = vld [vmem:[%s1 + $0x68] sm:$0xf]
  %v56 = vld [vmem:[%s1 + $0x6c] sm:$0xf]
  %v57 = vld [vmem:[%s1 + $0x70] sm:$0xf]
  %v58 = vld [vmem:[%s1 + $0x74] sm:$0xf]
  %v59 = vld [vmem:[%s1 + $0x78] sm:$0xf]
  %v60 = vld [vmem:[%s1 + $0x7c] sm:$0xf]
  %v61 = vld [vmem:[%s1 + $0x80] sm:$0xf]
  %v62 = vld [vmem:[%s1 + $0x84] sm:$0xf]
  %v63 = vld [vmem:[%s1 + $0x88] sm:$0xf]
  %v64 = vld [vmem:[%s1 + $0x8c] sm:$0xf]
  %v65 = vld [vmem:[%s1 + $0x90] sm:$0xf]
  %v66 = vld [vmem:[%s1 + $0x94] sm:$0xf]
  %v67 = vld [vmem:[%s1 + $0x98] sm:$0xf]
  %v68 = vld [vmem:[%s1 + $0x9c] sm:$0xf]
  %v69 = vld [vmem:[%s1 + $0xa0] sm:$0xf]
  %v70 = vld [vmem:[%s1 + $0xa4] sm:$0xf]
  %v71 = vld [vmem:[%s1 + $0xa8] sm:$0xf]
  %v72 = vld [vmem:[%s1 + $0xac] sm:$0xf]
  %v73 = vld [vmem:[%s1 + $0xb0] sm:$0xf]
  %v74 = vld [vmem:[%s1 + $0xb4] sm:$0xf]
  %v75 = vld [vmem:[%s1 + $0xb8] sm:$0xf]
  %v76 = vld [vmem:[%s1 + $0xbc] sm:$0xf]
  %v77 = vld [vmem:[%s1 + $0xc0] sm:$0xf]
  %v78 = vld [vmem:[%s1 + $0xc4] sm:$0xf]
  %v79 = vld [vmem:[%s1 + $0xc8] sm:$0xf]
  %v80 = vld [vmem:[%s1 + $0xcc] sm:$0xf]
  %v81 = vld [vmem:[%s1 + $0xd0] sm:$0xf]
  %v82 = vld [vmem:[%s1 + $0xd4] sm:$0xf]
  %v83 = vld [vmem:[%s1 + $0xd8] sm:$0xf]
  %v84 = vld [vmem:[%s1 + $0xdc] sm:$0xf]
  %v85 = vld [vmem:[%s1 + $0xe0] sm:$0xf]
  %v86 = vld [vmem:[%s1 + $0xe4] sm:$0xf]
  %v87 = vld [vmem:[%s1 + $0xe8] sm:$0xf]
  %v88 = vld [vmem:[%s1 + $0xec] sm:$0xf]
  %v89 = vld [vmem:[%s1 + $0xf0] sm:$0xf]
  %v90 = vld [vmem:[%s1 + $0xf4] sm:$0xf]
  %v91 = vld [vmem:[%s1 + $0xf8] sm:$0xf]
  %v92 = vld [vmem:[%s1 + $0xfc] sm:$0xf]
  %v101 = vunpack.c.l.b16 %v21
  %v102 = vunpack.c.h.b16 %v21
  %v103 = vunpack.c.l.b16 %v22
  %v104 = vunpack.c.h.b16 %v22
  %v105 = vunpack.c.l.b16 %v23
  %v106 = vunpack.c.h.b16 %v23
  %v107 = vunpack.c.l.b16 %v24
  %v108 = vunpack.c.h.b16 %v24
  %v109 = vunpack.c.l.b16 %v25
  %v110 = vunpack.c.h.b16 %v25
  %v111 = vunpack.c.l.b16 %v26
  %v112 = vunpack.c.h.b16 %v26
  %v113 = vunpack.c.l.b16 %v27
  %v114 = vunpack.c.h.b16 %v27
  %v115 = vunpack.c.l.b16 %v28
  %v116 = vunpack.c.h.b16 %v28
  %v117 = vpack.c.b16 %v105, %v101
  %v118 = vpack.c.b16 %v106, %v102
  %v119 = vpack.c.b16 %v107, %v103
  %v120 = vpack.c.b16 %v108, %v104
  %v121 = vpack.c.b16 %v113, %v109
  %v122 = vpack.c.b16 %v114, %v110
  %v123 = vpack.c.b16 %v115, %v111
  %v124 = vpack.c.b16 %v116, %v112
  %v197 = vunpack.c.l.b16 %v29
  %v198 = vunpack.c.l.b16 %v30
  %v199 = vunpack.c.l.b16 %v31
  %v200 = vunpack.c.l.b16 %v32
  %v201 = vunpack.c.l.b16 %v33
  %v202 = vunpack.c.l.b16 %v34
  %v203 = vunpack.c.l.b16 %v35
  %v204 = vunpack.c.l.b16 %v36
  %v205 = vunpack.c.l.b16 %v37
  %v206 = vunpack.c.l.b16 %v38
  %v207 = vunpack.c.l.b16 %v39
  %v208 = vunpack.c.l.b16 %v40
  %v209 = vunpack.c.l.b16 %v41
  %v210 = vunpack.c.l.b16 %v42
  %v211 = vunpack.c.l.b16 %v43
  %v212 = vunpack.c.l.b16 %v44
  %v213 = vunpack.c.l.b16 %v45
  %v214 = vunpack.c.l.b16 %v46
  %v215 = vunpack.c.l.b16 %v47
  %v216 = vunpack.c.l.b16 %v48
  %v217 = vunpack.c.l.b16 %v49
  %v218 = vunpack.c.l.b16 %v50
  %v219 = vunpack.c.l.b16 %v51
  %v220 = vunpack.c.l.b16 %v52
  %v221 = vunpack.c.l.b16 %v53
  %v222 = vunpack.c.l.b16 %v54
  %v223 = vunpack.c.l.b16 %v55
  %v224 = vunpack.c.l.b16 %v56
  %v225 = vunpack.c.l.b16 %v57
  %v226 = vunpack.c.l.b16 %v58
  %v227 = vunpack.c.l.b16 %v59
  %v228 = vunpack.c.l.b16 %v60
  %v229 = vunpack.c.l.b16 %v61
  %v230 = vunpack.c.l.b16 %v62
  %v231 = vunpack.c.l.b16 %v63
  %v232 = vunpack.c.l.b16 %v64
  %v233 = vunpack.c.l.b16 %v65
  %v234 = vunpack.c.l.b16 %v66
  %v235 = vunpack.c.l.b16 %v67
  %v236 = vunpack.c.l.b16 %v68
  %v237 = vunpack.c.l.b16 %v69
  %v238 = vunpack.c.l.b16 %v70
  %v239 = vunpack.c.l.b16 %v71
  %v240 = vunpack.c.l.b16 %v72
  %v241 = vunpack.c.l.b16 %v73
  %v242 = vunpack.c.l.b16 %v74
  %v243 = vunpack.c.l.b16 %v75
  %v244 = vunpack.c.l.b16 %v76
  %v245 = vunpack.c.l.b16 %v77
  %v246 = vunpack.c.l.b16 %v78
  %v247 = vunpack.c.l.b16 %v79
  %v248 = vunpack.c.l.b16 %v80
  %v249 = vunpack.c.l.b16 %v81
  %v250 = vunpack.c.l.b16 %v82
  %v251 = vunpack.c.l.b16 %v83
  %v252 = vunpack.c.l.b16 %v84
  %v253 = vunpack.c.l.b16 %v85
  %v254 = vunpack.c.l.b16 %v86
  %v255 = vunpack.c.l.b16 %v87
  %v256 = vunpack.c.l.b16 %v88
  %v257 = vunpack.c.l.b16 %v89
  %v258 = vunpack.c.l.b16 %v90
  %v259 = vunpack.c.l.b16 %v91
  %v260 = vunpack.c.l.b16 %v92
  %v261 = vpack.c.b16 %v198, %v197
  %v262 = vpack.c.b16 %v200, %v199
  %v263 = vpack.c.b16 %v202, %v201
  %v264 = vpack.c.b16 %v204, %v203
  %v265 = vpack.c.b16 %v206, %v205
  %v266 = vpack.c.b16 %v208, %v207
  %v267 = vpack.c.b16 %v210, %v209
  %v268 = vpack.c.b16 %v212, %v211
  %v269 = vpack.c.b16 %v214, %v213
  %v270 = vpack.c.b16 %v216, %v215
  %v271 = vpack.c.b16 %v218, %v217
  %v272 = vpack.c.b16 %v220, %v219
  %v273 = vpack.c.b16 %v222, %v221
  %v274 = vpack.c.b16 %v224, %v223
  %v275 = vpack.c.b16 %v226, %v225
  %v276 = vpack.c.b16 %v228, %v227
  %v277 = vpack.c.b16 %v230, %v229
  %v278 = vpack.c.b16 %v232, %v231
  %v279 = vpack.c.b16 %v234, %v233
  %v280 = vpack.c.b16 %v236, %v235
  %v281 = vpack.c.b16 %v238, %v237
  %v282 = vpack.c.b16 %v240, %v239
  %v283 = vpack.c.b16 %v242, %v241
  %v284 = vpack.c.b16 %v244, %v243
  %v285 = vpack.c.b16 %v246, %v245
  %v286 = vpack.c.b16 %v248, %v247
  %v287 = vpack.c.b16 %v250, %v249
  %v288 = vpack.c.b16 %v252, %v251
  %v289 = vpack.c.b16 %v254, %v253
  %v290 = vpack.c.b16 %v256, %v255
  %v291 = vpack.c.b16 %v258, %v257
  %v292 = vpack.c.b16 %v260, %v259
  %325 = vmatprep.subr.bf16.mxu0 0
  %326 = vmatpush1.bf16.msra.mxu0 %v261
  %327 = vmatprep.subr.bf16.mxu0 0
  %328 = vmatpush1.bf16.msra.mxu0 %v262
  %329 = vmatprep.subr.bf16.mxu0 0
  %330 = vmatpush1.bf16.msra.mxu0 %v263
  %331 = vmatprep.subr.bf16.mxu0 0
  %332 = vmatpush1.bf16.msra.mxu0 %v264
  %333 = vmatprep.subr.bf16.mxu0 0
  %334 = vmatpush1.bf16.msra.mxu0 %v265
  %335 = vmatprep.subr.bf16.mxu0 0
  %336 = vmatpush1.bf16.msra.mxu0 %v266
  %337 = vmatprep.subr.bf16.mxu0 0
  %338 = vmatpush1.bf16.msra.mxu0 %v267
  %339 = vmatprep.subr.bf16.mxu0 0
  %340 = vmatpush1.bf16.msra.mxu0 %v268
  %341 = vmatprep.subr.bf16.mxu0 0
  %342 = vmatpush1.bf16.msra.mxu0 %v269
  %343 = vmatprep.subr.bf16.mxu0 0
  %344 = vmatpush1.bf16.msra.mxu0 %v270
  %345 = vmatprep.subr.bf16.mxu0 0
  %346 = vmatpush1.bf16.msra.mxu0 %v271
  %347 = vmatprep.subr.bf16.mxu0 0
  %348 = vmatpush1.bf16.msra.mxu0 %v272
  %349 = vmatprep.subr.bf16.mxu0 0
  %350 = vmatpush1.bf16.msra.mxu0 %v273
  %351 = vmatprep.subr.bf16.mxu0 0
  %352 = vmatpush1.bf16.msra.mxu0 %v274
  %353 = vmatprep.subr.bf16.mxu0 0
  %354 = vmatpush1.bf16.msra.mxu0 %v275
  %355 = vmatprep.subr.bf16.mxu0 0
  %356 = vmatpush1.bf16.msra.mxu0 %v276
  %357 = vmatprep.mubr.bf16.mxu0 %v118
  %358 = vmatmul.mubr.bf16.gmra.mrb[0].mxu0 %v117
  %v359 = vpop.f32.mrb[0].mxu0
  %v360 = vadd.f32 0.0, %v359
  %v361 = vpop.f32.mrb[0].mxu0
  %v362 = vpop.f32.mrb[0].mxu0
  %v363 = vadd.f32 0.0, %v362
  %v364 = vpop.f32.mrb[0].mxu0
  %365 = vmatprep.mubr.bf16.mxu0 %v122
  %366 = vmatmul.mubr.bf16.gmra.mrb[0].mxu0 %v121
  %v367 = vpop.f32.mrb[0].mxu0
  %v368 = vadd.f32 0.0, %v367
  %v369 = vpop.f32.mrb[0].mxu0
  %v370 = vpop.f32.mrb[0].mxu0
  %v371 = vadd.f32 0.0, %v370
  %v372 = vpop.f32.mrb[0].mxu0
  %373 = vdwg.mxu0
  %374 = vmatprep.subr.bf16.mxu0 0
  %375 = vmatpush1.bf16.msra.mxu0 %v277
  %376 = vmatprep.subr.bf16.mxu0 0
  %377 = vmatpush1.bf16.msra.mxu0 %v278
  %378 = vmatprep.subr.bf16.mxu0 0
  %379 = vmatpush1.bf16.msra.mxu0 %v279
  %380 = vmatprep.subr.bf16.mxu0 0
  %381 = vmatpush1.bf16.msra.mxu0 %v280
  %382 = vmatprep.subr.bf16.mxu0 0
  %383 = vmatpush1.bf16.msra.mxu0 %v281
  %384 = vmatprep.subr.bf16.mxu0 0
  %385 = vmatpush1.bf16.msra.mxu0 %v282
  %386 = vmatprep.subr.bf16.mxu0 0
  %387 = vmatpush1.bf16.msra.mxu0 %v283
  %388 = vmatprep.subr.bf16.mxu0 0
  %389 = vmatpush1.bf16.msra.mxu0 %v284
  %390 = vmatprep.subr.bf16.mxu0 0
  %391 = vmatpush1.bf16.msra.mxu0 %v285
  %392 = vmatprep.subr.bf16.mxu0 0
  %393 = vmatpush1.bf16.msra.mxu0 %v286
  %394 = vmatprep.subr.bf16.mxu0 0
  %395 = vmatpush1.bf16.msra.mxu0 %v287
  %396 = vmatprep.subr.bf16.mxu0 0
  %397 = vmatpush1.bf16.msra.mxu0 %v288
  %398 = vmatprep.subr.bf16.mxu0 0
  %399 = vmatpush1.bf16.msra.mxu0 %v289
  %400 = vmatprep.subr.bf16.mxu0 0
  %401 = vmatpush1.bf16.msra.mxu0 %v290
  %402 = vmatprep.subr.bf16.mxu0 0
  %403 = vmatpush1.bf16.msra.mxu0 %v291
  %404 = vmatprep.subr.bf16.mxu0 0
  %405 = vmatpush1.bf16.msra.mxu0 %v292
  %406 = vmatprep.mubr.bf16.mxu0 %v120
  %407 = vmatmul.mubr.bf16.gmra.mrb[0].mxu0 %v119
  %v408 = vpop.f32.mrb[0].mxu0
  %v409 = vadd.f32 %v360, %v408
  %v410 = vpop.f32.mrb[0].mxu0
  %v411 = vpop.f32.mrb[0].mxu0
  %v412 = vadd.f32 %v363, %v411
  %v413 = vpop.f32.mrb[0].mxu0
  %414 = vmatprep.mubr.bf16.mxu0 %v124
  %415 = vmatmul.mubr.bf16.gmra.mrb[0].mxu0 %v123
  %v416 = vpop.f32.mrb[0].mxu0
  %v417 = vadd.f32 %v368, %v416
  %v418 = vpop.f32.mrb[0].mxu0
  %v419 = vpop.f32.mrb[0].mxu0
  %v420 = vadd.f32 %v371, %v419
  %v421 = vpop.f32.mrb[0].mxu0
  %422 = vdwg.mxu0
  %423 = vst [vmem:[%s2] sm:$0xff] %v409
  %424 = vst [vmem:[%s2 + $0x8] sm:$0xff] %v412
  %425 = vst [vmem:[%s2 + $0x10] sm:$0xff] %v417
  %426 = vst [vmem:[%s2 + $0x18] sm:$0xff] %v420
  %v427 = vld [vmem:[%s3] sm:$0x1]
  %v428 = vadd.f32 %v409, %v412
  %v429 = vadd.f32 %v428, %v417
  %v430 = vadd.f32 %v429, %v420
  %v431 = vrot.slane %v430, 4
  %v432 = vadd.f32 %v430, %v431
  %v433 = vrot.slane %v432, 2
  %v434 = vadd.f32 %v432, %v433
  %v435 = vrot.slane %v434, 1
  %v436 = vadd.f32 %v434, %v435
  %v437 = vadd.f32 %v427, %v436
  %438 = vst [vmem:[%s3] sm:$0x1] %v437
  %v439 = vld [vmem:[%s4] sm:$0x1]
  %v440 = vmul.f32 %v409, %v409
  %v441 = vmul.f32 %v412, %v412
  %v442 = vmul.f32 %v417, %v417
  %v443 = vmul.f32 %v420, %v420
  %v444 = vadd.f32 %v440, %v441
  %v445 = vadd.f32 %v444, %v442
  %v446 = vadd.f32 %v445, %v443
  %v447 = vrot.slane %v446, 4
  %v448 = vadd.f32 %v446, %v447
  %v449 = vrot.slane %v448, 2
  %v450 = vadd.f32 %v448, %v449
  %v451 = vrot.slane %v450, 1
  %v452 = vadd.f32 %v450, %v451
  %v453 = vadd.f32 %v439, %v452
  %454 = vst [vmem:[%s4] sm:$0x1] %v453
  // Predicated region
  $region14: #{_lambda_.11} parent=0 // pred_check
    _
  $region15: #{_lambda_.11} parent=0 // pred_check_branch
    %456 = sbr.rel (0) target = $region17
  $region16: #{_lambda_.11} parent=0 // pred_region
    _
  $region17: #{_lambda_.11} parent=0 // pred_fallthru
    _
  // Predicated region
  $region18: #{_lambda_.11} parent=0 // pred_check
    _
  $region19: #{_lambda_.11} parent=0 // pred_check_branch
    %458 = sbr.rel (0) target = $region21
  $region20: #{_lambda_.11} parent=0 // pred_region
    _
  $region21: #{_lambda_.11} parent=0 // pred_fallthru
    _
  // Predicated region
  $region22: #{_lambda_.11} parent=0 // pred_check
    _
  $region23: #{_lambda_.11} parent=0 // pred_check_branch
    %460 = sbr.rel (0) target = $region25
  $region24: #{_lambda_.11} parent=0 // pred_region
    _
  $region25: #{_lambda_.11} parent=0 // pred_fallthru
    _
  // Predicated region
  $region26: #{_lambda_.11} parent=0 // pred_check
    _
  $region27: #{_lambda_.11} parent=0 // pred_check_branch
    %462 = sbr.rel (0) target = $region29
  $region28: #{_lambda_.11} parent=0 // pred_region
    _
  $region29: #{_lambda_.11} parent=0 // pred_fallthru
    _
  // Predicated region
  $region30: #{_lambda_.11} parent=0 // pred_check
    _
  $region31: #{_lambda_.11} parent=0 // pred_check_branch
    %464 = sbr.rel (0) target = $region33
  $region32: #{_lambda_.11} parent=0 // pred_region
    _
  $region33: #{_lambda_.11} parent=0 // pred_fallthru
    _
  // Predicated region
  $region34: #{_lambda_.11} parent=0 // pred_check
    _
  $region35: #{_lambda_.11} parent=0 // pred_check_branch
    %466 = sbr.rel (0) target = $region37
  $region36: #{_lambda_.11} parent=0 // pred_region
    _
  $region37: #{_lambda_.11} parent=0 // pred_fallthru
    _

// kernel: _lambda_.14
$region0: #{_lambda_.14}
  #allocation0 [shape = 'u32[]', space=smem, size = 0x4, offset = 0x4, fixed_abs, tag = 'smem constant byte address 0x4 - core index']
  #allocation1 [shape = 'u32[144,128]{1,0:T(1,128)}', space=vmem, size = 0x12000, scoped, tag = 'internal scratch']
  %s0 = inlined_call_operand.vmem [shape: f32[24,128], index: 0, kind: input, shape index: {}]
  %s1 = inlined_call_operand.vmem [shape: f32[1,128], index: 1, kind: input, shape index: {}]
  %s2 = inlined_call_operand.vmem [shape: f32[1,128], index: 2, kind: input, shape index: {}]
  %s3 = inlined_call_operand.vmem [shape: f32[1,128], index: 3, kind: input, shape index: {}]
  %s4 = inlined_call_operand.vmem [shape: f32[1,128], index: 4, kind: input, shape index: {}]
  %s5 = inlined_call_operand.vmem [shape: f32[24,128], index: 5, kind: output, shape index: {}]
  %s6 = sld [smem:[#allocation0]]
  $region30: #{_lambda_.14} parent=0
    _
  %s8 = ssub.s32 1, %s6
  %s9 = scalar_select 0, %s8, %s6
  // Predicated region
  $region2: #{_lambda_.14} parent=0 // pred_check
    _
  $region3: #{_lambda_.14} parent=0 // pred_check_branch
    %11 = sbr.rel (0) target = $region5
  $region4: #{_lambda_.14} parent=0 // pred_region
    _
  $region5: #{_lambda_.14} parent=0 // pred_fallthru
    _
  // Predicated region
  $region6: #{_lambda_.14} parent=0 // pred_check
    _
  $region7: #{_lambda_.14} parent=0 // pred_check_branch
    %13 = sbr.rel (0) target = $region9
  $region8: #{_lambda_.14} parent=0 // pred_region
    _
  $region9: #{_lambda_.14} parent=0 // pred_fallthru
    _
  // Predicated region
  $region10: #{_lambda_.14} parent=0 // pred_check
    _
  $region11: #{_lambda_.14} parent=0 // pred_check_branch
    %15 = sbr.rel (0) target = $region13
  $region12: #{_lambda_.14} parent=0 // pred_region
    _
  $region13: #{_lambda_.14} parent=0 // pred_fallthru
    _
  // Predicated region
  $region14: #{_lambda_.14} parent=0 // pred_check
    _
  $region15: #{_lambda_.14} parent=0 // pred_check_branch
    %17 = sbr.rel (0) target = $region17
  $region16: #{_lambda_.14} parent=0 // pred_region
    _
  $region17: #{_lambda_.14} parent=0 // pred_fallthru
    _
  // Predicated region
  $region18: #{_lambda_.14} parent=0 // pred_check
    _
  $region19: #{_lambda_.14} parent=0 // pred_check_branch
    %19 = sbr.rel (0) target = $region21
  $region20: #{_lambda_.14} parent=0 // pred_region
    _
  $region21: #{_lambda_.14} parent=0 // pred_fallthru
    _
  %v20 = vld [vmem:[%s1] sm:$0x1]
  %v21 = vmul.f32 %v20, 0.055555556
  %v22 = vld [vmem:[%s2] sm:$0x1]
  %v23 = vmul.f32 %v22, 0.055555556
  %v24 = vmul.f32 %v21, %v21
  %v25 = vsub.f32 %v23, %v24
  %v26 = vld [vmem:[%s3] sm:$0x1]
  %v27 = vadd.f32 %v25, 1e-05
  %v28 = vrsqrt.pop %v27
  %v29 = vmul.f32 %v26, %v28
  %v30 = vld [vmem:[%s4] sm:$0x1]
  %v31 = vmul.f32 %v21, %v29
  %v32 = vsub.f32 %v30, %v31
  %v33 = vld [vmem:[%s0] sm:$0xff]
  %v34 = vld [vmem:[%s0 + $0x8] sm:$0xff]
  %v35 = vld [vmem:[%s0 + $0x10] sm:$0xff]
  %v37 = vlaneseq
  %v38 = vshrl.u32 %v37, 7
  %v39 = vsub.s32 0, %v38
  %v40 = vrot.slane %v29, %v39
  %v42 = vmul.f32 %v33, %v40
  %v43 = vmul.f32 %v34, %v40
  %v44 = vmul.f32 %v35, %v40
  %v46 = vlaneseq
  %v47 = vshrl.u32 %v46, 7
  %v48 = vsub.s32 0, %v47
  %v49 = vrot.slane %v32, %v48
  %v51 = vadd.f32 %v42, %v49
  %v52 = vadd.f32 %v43, %v49
  %v53 = vadd.f32 %v44, %v49
  %vm54 = vcmp.ge.f32.partialorder %v51, 0.0
  %vm55 = vcmp.ge.f32.partialorder %v52, 0.0
  %vm56 = vcmp.ge.f32.partialorder %v53, 0.0
  %v57 = vmul.f32 %v51, 0.2
  %v58 = vmul.f32 %v52, 0.2
  %v59 = vmul.f32 %v53, 0.2
  %v60 = vsel %vm54, %v51, %v57
  %v61 = vsel %vm55, %v52, %v58
  %v62 = vsel %vm56, %v53, %v59
  %63 = vst [vmem:[%s5] sm:$0xff] %v60
  %64 = vst [vmem:[%s5 + $0x8] sm:$0xff] %v61
  %65 = vst [vmem:[%s5 + $0x10] sm:$0xff] %v62
  // Predicated region
  $region22: #{_lambda_.14} parent=0 // pred_check
    _
  $region23: #{_lambda_.14} parent=0 // pred_check_branch
    %67 = sbr.rel (0) target = $region25
  $region24: #{_lambda_.14} parent=0 // pred_region
    _
  $region25: #{_lambda_.14} parent=0 // pred_fallthru
    _
  // Predicated region
  $region26: #{_lambda_.14} parent=0 // pred_check
    _
  $region27: #{_lambda_.14} parent=0 // pred_check_branch
    %69 = sbr.rel (0) target = $region29
  $region28: #{_lambda_.14} parent=0 // pred_region
    _
  $region29: #{_lambda_.14} parent=0 // pred_fallthru
    _

// kernel: _lambda_.13
$region0: #{_lambda_.13}
  #allocation0 [shape = 'u32[]', space=smem, size = 0x4, offset = 0x4, fixed_abs, tag = 'smem constant byte address 0x4 - core index']
  #allocation1 [shape = 'u32[144,128]{1,0:T(1,128)}', space=vmem, size = 0x12000, scoped, tag = 'internal scratch']
  %s0 = inlined_call_operand.vmem [shape: bf16[24,1024], index: 0, kind: input, shape index: {}]
  %s1 = inlined_call_operand.vmem [shape: bf16[1024,128], index: 1, kind: input, shape index: {}]
  %s2 = inlined_call_operand.vmem [shape: f32[24,128], index: 2, kind: output, shape index: {0}]
  %s3 = inlined_call_operand.vmem [shape: f32[1,128], index: 3, kind: output, shape index: {1}]
  %s4 = inlined_call_operand.vmem [shape: f32[1,128], index: 4, kind: output, shape index: {2}]
  %5 = xla_tuple %s2, %s3, %s4
  %s6 = sld [smem:[#allocation0]]
  $region38: #{_lambda_.13} parent=0
    _
  %s8 = ssub.s32 1, %s6
  %s9 = scalar_select 0, %s8, %s6
  // Predicated region
  $region2: #{_lambda_.13} parent=0 // pred_check
    _
  $region3: #{_lambda_.13} parent=0 // pred_check_branch
    %11 = sbr.rel (0) target = $region5
  $region4: #{_lambda_.13} parent=0 // pred_region
    _
  $region5: #{_lambda_.13} parent=0 // pred_fallthru
    _
  // Predicated region
  $region6: #{_lambda_.13} parent=0 // pred_check
    _
  $region7: #{_lambda_.13} parent=0 // pred_check_branch
    %13 = sbr.rel (0) target = $region9
  $region8: #{_lambda_.13} parent=0 // pred_region
    _
  $region9: #{_lambda_.13} parent=0 // pred_fallthru
    _
  %p15 = scmp.eq.s32.totalorder 0, 0
  // Predicated region
  $region10: #{_lambda_.13} parent=0 // pred_check
    %p16 = pneg %p15
  $region11: #{_lambda_.13} parent=0 // pred_check_branch
    %18 = sbr.rel (%p16) target = $region13
  $region12: #{_lambda_.13} parent=0 // pred_region
    %19 = vst [vmem:[%s3] sm:$0x1] 0.0
    %20 = vst [vmem:[%s4] sm:$0x1] 0.0
  $region13: #{_lambda_.13} parent=0 // pred_fallthru
    _
  %v21 = vld [vmem:[%s0] sm:$0xff]
  %v22 = vld [vmem:[%s0 + $0x8] sm:$0xff]
  %v23 = vld [vmem:[%s0 + $0x10] sm:$0xff]
  %v24 = vld [vmem:[%s0 + $0x18] sm:$0xff]
  %v25 = vld [vmem:[%s0 + $0x20] sm:$0xff]
  %v26 = vld [vmem:[%s0 + $0x28] sm:$0xff]
  %v27 = vld [vmem:[%s0 + $0x30] sm:$0xff]
  %v28 = vld [vmem:[%s0 + $0x38] sm:$0xff]
  %v29 = vld [vmem:[%s0 + $0x40] sm:$0xff]
  %v30 = vld [vmem:[%s0 + $0x48] sm:$0xff]
  %v31 = vld [vmem:[%s0 + $0x50] sm:$0xff]
  %v32 = vld [vmem:[%s0 + $0x58] sm:$0xff]
  %v33 = vld [vmem:[%s1] sm:$0xf]
  %v34 = vld [vmem:[%s1 + $0x4] sm:$0xf]
  %v35 = vld [vmem:[%s1 + $0x8] sm:$0xf]
  %v36 = vld [vmem:[%s1 + $0xc] sm:$0xf]
  %v37 = vld [vmem:[%s1 + $0x10] sm:$0xf]
  %v38 = vld [vmem:[%s1 + $0x14] sm:$0xf]
  %v39 = vld [vmem:[%s1 + $0x18] sm:$0xf]
  %v40 = vld [vmem:[%s1 + $0x1c] sm:$0xf]
  %v41 = vld [vmem:[%s1 + $0x20] sm:$0xf]
  %v42 = vld [vmem:[%s1 + $0x24] sm:$0xf]
  %v43 = vld [vmem:[%s1 + $0x28] sm:$0xf]
  %v44 = vld [vmem:[%s1 + $0x2c] sm:$0xf]
  %v45 = vld [vmem:[%s1 + $0x30] sm:$0xf]
  %v46 = vld [vmem:[%s1 + $0x34] sm:$0xf]
  %v47 = vld [vmem:[%s1 + $0x38] sm:$0xf]
  %v48 = vld [vmem:[%s1 + $0x3c] sm:$0xf]
  %v49 = vld [vmem:[%s1 + $0x40] sm:$0xf]
  %v50 = vld [vmem:[%s1 + $0x44] sm:$0xf]
  %v51 = vld [vmem:[%s1 + $0x48] sm:$0xf]
  %v52 = vld [vmem:[%s1 + $0x4c] sm:$0xf]
  %v53 = vld [vmem:[%s1 + $0x50] sm:$0xf]
  %v54 = vld [vmem:[%s1 + $0x54] sm:$0xf]
  %v55 = vld [vmem:[%s1 + $0x58] sm:$0xf]
  %v56 = vld [vmem:[%s1 + $0x5c] sm:$0xf]
  %v57 = vld [vmem:[%s1 + $0x60] sm:$0xf]
  %v58 = vld [vmem:[%s1 + $0x64] sm:$0xf]
  %v59 = vld [vmem:[%s1 + $0x68] sm:$0xf]
  %v60 = vld [vmem:[%s1 + $0x6c] sm:$0xf]
  %v61 = vld [vmem:[%s1 + $0x70] sm:$0xf]
  %v62 = vld [vmem:[%s1 + $0x74] sm:$0xf]
  %v63 = vld [vmem:[%s1 + $0x78] sm:$0xf]
  %v64 = vld [vmem:[%s1 + $0x7c] sm:$0xf]
  %v65 = vld [vmem:[%s1 + $0x80] sm:$0xf]
  %v66 = vld [vmem:[%s1 + $0x84] sm:$0xf]
  %v67 = vld [vmem:[%s1 + $0x88] sm:$0xf]
  %v68 = vld [vmem:[%s1 + $0x8c] sm:$0xf]
  %v69 = vld [vmem:[%s1 + $0x90] sm:$0xf]
  %v70 = vld [vmem:[%s1 + $0x94] sm:$0xf]
  %v71 = vld [vmem:[%s1 + $0x98] sm:$0xf]
  %v72 = vld [vmem:[%s1 + $0x9c] sm:$0xf]
  %v73 = vld [vmem:[%s1 + $0xa0] sm:$0xf]
  %v74 = vld [vmem:[%s1 + $0xa4] sm:$0xf]
  %v75 = vld [vmem:[%s1 + $0xa8] sm:$0xf]
  %v76 = vld [vmem:[%s1 + $0xac] sm:$0xf]
  %v77 = vld [vmem:[%s1 + $0xb0] sm:$0xf]
  %v78 = vld [vmem:[%s1 + $0xb4] sm:$0xf]
  %v79 = vld [vmem:[%s1 + $0xb8] sm:$0xf]
  %v80 = vld [vmem:[%s1 + $0xbc] sm:$0xf]
  %v81 = vld [vmem:[%s1 + $0xc0] sm:$0xf]
  %v82 = vld [vmem:[%s1 + $0xc4] sm:$0xf]
  %v83 = vld [vmem:[%s1 + $0xc8] sm:$0xf]
  %v84 = vld [vmem:[%s1 + $0xcc] sm:$0xf]
  %v85 = vld [vmem:[%s1 + $0xd0] sm:$0xf]
  %v86 = vld [vmem:[%s1 + $0xd4] sm:$0xf]
  %v87 = vld [vmem:[%s1 + $0xd8] sm:$0xf]
  %v88 = vld [vmem:[%s1 + $0xdc] sm:$0xf]
  %v89 = vld [vmem:[%s1 + $0xe0] sm:$0xf]
  %v90 = vld [vmem:[%s1 + $0xe4] sm:$0xf]
  %v91 = vld [vmem:[%s1 + $0xe8] sm:$0xf]
  %v92 = vld [vmem:[%s1 + $0xec] sm:$0xf]
  %v93 = vld [vmem:[%s1 + $0xf0] sm:$0xf]
  %v94 = vld [vmem:[%s1 + $0xf4] sm:$0xf]
  %v95 = vld [vmem:[%s1 + $0xf8] sm:$0xf]
  %v96 = vld [vmem:[%s1 + $0xfc] sm:$0xf]
  %v97 = vld [vmem:[%s1 + $0x100] sm:$0xf]
  %v98 = vld [vmem:[%s1 + $0x104] sm:$0xf]
  %v99 = vld [vmem:[%s1 + $0x108] sm:$0xf]
  %v100 = vld [vmem:[%s1 + $0x10c] sm:$0xf]
  %v101 = vld [vmem:[%s1 + $0x110] sm:$0xf]
  %v102 = vld [vmem:[%s1 + $0x114] sm:$0xf]
  %v103 = vld [vmem:[%s1 + $0x118] sm:$0xf]
  %v104 = vld [vmem:[%s1 + $0x11c] sm:$0xf]
  %v105 = vld [vmem:[%s1 + $0x120] sm:$0xf]
  %v106 = vld [vmem:[%s1 + $0x124] sm:$0xf]
  %v107 = vld [vmem:[%s1 + $0x128] sm:$0xf]
  %v108 = vld [vmem:[%s1 + $0x12c] sm:$0xf]
  %v109 = vld [vmem:[%s1 + $0x130] sm:$0xf]
  %v110 = vld [vmem:[%s1 + $0x134] sm:$0xf]
  %v111 = vld [vmem:[%s1 + $0x138] sm:$0xf]
  %v112 = vld [vmem:[%s1 + $0x13c] sm:$0xf]
  %v113 = vld [vmem:[%s1 + $0x140] sm:$0xf]
  %v114 = vld [vmem:[%s1 + $0x144] sm:$0xf]
  %v115 = vld [vmem:[%s1 + $0x148] sm:$0xf]
  %v116 = vld [vmem:[%s1 + $0x14c] sm:$0xf]
  %v117 = vld [vmem:[%s1 + $0x150] sm:$0xf]
  %v118 = vld [vmem:[%s1 + $0x154] sm:$0xf]
  %v119 = vld [vmem:[%s1 + $0x158] sm:$0xf]
  %v120 = vld [vmem:[%s1 + $0x15c] sm:$0xf]
  %v121 = vld [vmem:[%s1 + $0x160] sm:$0xf]
  %v122 = vld [vmem:[%s1 + $0x164] sm:$0xf]
  %v123 = vld [vmem:[%s1 + $0x168] sm:$0xf]
  %v124 = vld [vmem:[%s1 + $0x16c] sm:$0xf]
  %v125 = vld [vmem:[%s1 + $0x170] sm:$0xf]
  %v126 = vld [vmem:[%s1 + $0x174] sm:$0xf]
  %v127 = vld [vmem:[%s1 + $0x178] sm:$0xf]
  %v128 = vld [vmem:[%s1 + $0x17c] sm:$0xf]
  %v129 = vld [vmem:[%s1 + $0x180] sm:$0xf]
  %v130 = vld [vmem:[%s1 + $0x184] sm:$0xf]
  %v131 = vld [vmem:[%s1 + $0x188] sm:$0xf]
  %v132 = vld [vmem:[%s1 + $0x18c] sm:$0xf]
  %v133 = vld [vmem:[%s1 + $0x190] sm:$0xf]
  %v134 = vld [vmem:[%s1 + $0x194] sm:$0xf]
  %v135 = vld [vmem:[%s1 + $0x198] sm:$0xf]
  %v136 = vld [vmem:[%s1 + $0x19c] sm:$0xf]
  %v137 = vld [vmem:[%s1 + $0x1a0] sm:$0xf]
  %v138 = vld [vmem:[%s1 + $0x1a4] sm:$0xf]
  %v139 = vld [vmem:[%s1 + $0x1a8] sm:$0xf]
  %v140 = vld [vmem:[%s1 + $0x1ac] sm:$0xf]
  %v141 = vld [vmem:[%s1 + $0x1b0] sm:$0xf]
  %v142 = vld [vmem:[%s1 + $0x1b4] sm:$0xf]
  %v143 = vld [vmem:[%s1 + $0x1b8] sm:$0xf]
  %v144 = vld [vmem:[%s1 + $0x1bc] sm:$0xf]
  %v145 = vld [vmem:[%s1 + $0x1c0] sm:$0xf]
  %v146 = vld [vmem:[%s1 + $0x1c4] sm:$0xf]
  %v147 = vld [vmem:[%s1 + $0x1c8] sm:$0xf]
  %v148 = vld [vmem:[%s1 + $0x1cc] sm:$0xf]
  %v149 = vld [vmem:[%s1 + $0x1d0] sm:$0xf]
  %v150 = vld [vmem:[%s1 + $0x1d4] sm:$0xf]
  %v151 = vld [vmem:[%s1 + $0x1d8] sm:$0xf]
  %v152 = vld [vmem:[%s1 + $0x1dc] sm:$0xf]
  %v153 = vld [vmem:[%s1 + $0x1e0] sm:$0xf]
  %v154 = vld [vmem:[%s1 + $0x1e4] sm:$0xf]
  %v155 = vld [vmem:[%s1 + $0x1e8] sm:$0xf]
  %v156 = vld [vmem:[%s1 + $0x1ec] sm:$0xf]
  %v157 = vld [vmem:[%s1 + $0x1f0] sm:$0xf]
  %v158 = vld [vmem:[%s1 + $0x1f4] sm:$0xf]
  %v159 = vld [vmem:[%s1 + $0x1f8] sm:$0xf]
  %v160 = vld [vmem:[%s1 + $0x1fc] sm:$0xf]
  %v173 = vunpack.c.l.b16 %v21
  %v174 = vunpack.c.h.b16 %v21
  %v175 = vunpack.c.l.b16 %v22
  %v176 = vunpack.c.h.b16 %v22
  %v177 = vunpack.c.l.b16 %v23
  %v178 = vunpack.c.h.b16 %v23
  %v179 = vunpack.c.l.b16 %v24
  %v180 = vunpack.c.h.b16 %v24
  %v181 = vunpack.c.l.b16 %v25
  %v182 = vunpack.c.h.b16 %v25
  %v183 = vunpack.c.l.b16 %v26
  %v184 = vunpack.c.h.b16 %v26
  %v185 = vunpack.c.l.b16 %v27
  %v186 = vunpack.c.h.b16 %v27
  %v187 = vunpack.c.l.b16 %v28
  %v188 = vunpack.c.h.b16 %v28
  %v189 = vunpack.c.l.b16 %v29
  %v190 = vunpack.c.h.b16 %v29
  %v191 = vunpack.c.l.b16 %v30
  %v192 = vunpack.c.h.b16 %v30
  %v193 = vunpack.c.l.b16 %v31
  %v194 = vunpack.c.h.b16 %v31
  %v195 = vunpack.c.l.b16 %v32
  %v196 = vunpack.c.h.b16 %v32
  %v197 = vpack.c.b16 %v181, %v173
  %v198 = vpack.c.b16 %v182, %v174
  %v199 = vpack.c.b16 %v183, %v175
  %v200 = vpack.c.b16 %v184, %v176
  %v201 = vpack.c.b16 %v185, %v177
  %v202 = vpack.c.b16 %v186, %v178
  %v203 = vpack.c.b16 %v187, %v179
  %v204 = vpack.c.b16 %v188, %v180
  %v205 = vpack.c.b16 %v189, %v189
  %v206 = vpack.c.b16 %v190, %v190
  %v207 = vpack.c.b16 %v191, %v191
  %v208 = vpack.c.b16 %v192, %v192
  %v209 = vpack.c.b16 %v193, %v193
  %v210 = vpack.c.b16 %v194, %v194
  %v211 = vpack.c.b16 %v195, %v195
  %v212 = vpack.c.b16 %v196, %v196
  %v357 = vunpack.c.l.b16 %v33
  %v358 = vunpack.c.l.b16 %v34
  %v359 = vunpack.c.l.b16 %v35
  %v360 = vunpack.c.l.b16 %v36
  %v361 = vunpack.c.l.b16 %v37
  %v362 = vunpack.c.l.b16 %v38
  %v363 = vunpack.c.l.b16 %v39
  %v364 = vunpack.c.l.b16 %v40
  %v365 = vunpack.c.l.b16 %v41
  %v366 = vunpack.c.l.b16 %v42
  %v367 = vunpack.c.l.b16 %v43
  %v368 = vunpack.c.l.b16 %v44
  %v369 = vunpack.c.l.b16 %v45
  %v370 = vunpack.c.l.b16 %v46
  %v371 = vunpack.c.l.b16 %v47
  %v372 = vunpack.c.l.b16 %v48
  %v373 = vunpack.c.l.b16 %v49
  %v374 = vunpack.c.l.b16 %v50
  %v375 = vunpack.c.l.b16 %v51
  %v376 = vunpack.c.l.b16 %v52
  %v377 = vunpack.c.l.b16 %v53
  %v378 = vunpack.c.l.b16 %v54
  %v379 = vunpack.c.l.b16 %v55
  %v380 = vunpack.c.l.b16 %v56
  %v381 = vunpack.c.l.b16 %v57
  %v382 = vunpack.c.l.b16 %v58
  %v383 = vunpack.c.l.b16 %v59
  %v384 = vunpack.c.l.b16 %v60
  %v385 = vunpack.c.l.b16 %v61
  %v386 = vunpack.c.l.b16 %v62
  %v387 = vunpack.c.l.b16 %v63
  %v388 = vunpack.c.l.b16 %v64
  %v389 = vunpack.c.l.b16 %v65
  %v390 = vunpack.c.l.b16 %v66
  %v391 = vunpack.c.l.b16 %v67
  %v392 = vunpack.c.l.b16 %v68
  %v393 = vunpack.c.l.b16 %v69
  %v394 = vunpack.c.l.b16 %v70
  %v395 = vunpack.c.l.b16 %v71
  %v396 = vunpack.c.l.b16 %v72
  %v397 = vunpack.c.l.b16 %v73
  %v398 = vunpack.c.l.b16 %v74
  %v399 = vunpack.c.l.b16 %v75
  %v400 = vunpack.c.l.b16 %v76
  %v401 = vunpack.c.l.b16 %v77
  %v402 = vunpack.c.l.b16 %v78
  %v403 = vunpack.c.l.b16 %v79
  %v404 = vunpack.c.l.b16 %v80
  %v405 = vunpack.c.l.b16 %v81
  %v406 = vunpack.c.l.b16 %v82
  %v407 = vunpack.c.l.b16 %v83
  %v408 = vunpack.c.l.b16 %v84
  %v409 = vunpack.c.l.b16 %v85
  %v410 = vunpack.c.l.b16 %v86
  %v411 = vunpack.c.l.b16 %v87
  %v412 = vunpack.c.l.b16 %v88
  %v413 = vunpack.c.l.b16 %v89
  %v414 = vunpack.c.l.b16 %v90
  %v415 = vunpack.c.l.b16 %v91
  %v416 = vunpack.c.l.b16 %v92
  %v417 = vunpack.c.l.b16 %v93
  %v418 = vunpack.c.l.b16 %v94
  %v419 = vunpack.c.l.b16 %v95
  %v420 = vunpack.c.l.b16 %v96
  %v421 = vunpack.c.l.b16 %v97
  %v422 = vunpack.c.l.b16 %v98
  %v423 = vunpack.c.l.b16 %v99
  %v424 = vunpack.c.l.b16 %v100
  %v425 = vunpack.c.l.b16 %v101
  %v426 = vunpack.c.l.b16 %v102
  %v427 = vunpack.c.l.b16 %v103
  %v428 = vunpack.c.l.b16 %v104
  %v429 = vunpack.c.l.b16 %v105
  %v430 = vunpack.c.l.b16 %v106
  %v431 = vunpack.c.l.b16 %v107
  %v432 = vunpack.c.l.b16 %v108
  %v433 = vunpack.c.l.b16 %v109
  %v434 = vunpack.c.l.b16 %v110
  %v435 = vunpack.c.l.b16 %v111
  %v436 = vunpack.c.l.b16 %v112
  %v437 = vunpack.c.l.b16 %v113
  %v438 = vunpack.c.l.b16 %v114
  %v439 = vunpack.c.l.b16 %v115
  %v440 = vunpack.c.l.b16 %v116
  %v441 = vunpack.c.l.b16 %v117
  %v442 = vunpack.c.l.b16 %v118
  %v443 = vunpack.c.l.b16 %v119
  %v444 = vunpack.c.l.b16 %v120
  %v445 = vunpack.c.l.b16 %v121
  %v446 = vunpack.c.l.b16 %v122
  %v447 = vunpack.c.l.b16 %v123
  %v448 = vunpack.c.l.b16 %v124
  %v449 = vunpack.c.l.b16 %v125
  %v450 = vunpack.c.l.b16 %v126
  %v451 = vunpack.c.l.b16 %v127
  %v452 = vunpack.c.l.b16 %v128
  %v453 = vunpack.c.l.b16 %v129
  %v454 = vunpack.c.l.b16 %v130
  %v455 = vunpack.c.l.b16 %v131
  %v456 = vunpack.c.l.b16 %v132
  %v457 = vunpack.c.l.b16 %v133
  %v458 = vunpack.c.l.b16 %v134
  %v459 = vunpack.c.l.b16 %v135
  %v460 = vunpack.c.l.b16 %v136
  %v461 = vunpack.c.l.b16 %v137
  %v462 = vunpack.c.l.b16 %v138
  %v463 = vunpack.c.l.b16 %v139
  %v464 = vunpack.c.l.b16 %v140
  %v465 = vunpack.c.l.b16 %v141
  %v466 = vunpack.c.l.b16 %v142
  %v467 = vunpack.c.l.b16 %v143
  %v468 = vunpack.c.l.b16 %v144
  %v469 = vunpack.c.l.b16 %v145
  %v470 = vunpack.c.l.b16 %v146
  %v471 = vunpack.c.l.b16 %v147
  %v472 = vunpack.c.l.b16 %v148
  %v473 = vunpack.c.l.b16 %v149
  %v474 = vunpack.c.l.b16 %v150
  %v475 = vunpack.c.l.b16 %v151
  %v476 = vunpack.c.l.b16 %v152
  %v477 = vunpack.c.l.b16 %v153
  %v478 = vunpack.c.l.b16 %v154
  %v479 = vunpack.c.l.b16 %v155
  %v480 = vunpack.c.l.b16 %v156
  %v481 = vunpack.c.l.b16 %v157
  %v482 = vunpack.c.l.b16 %v158
  %v483 = vunpack.c.l.b16 %v159
  %v484 = vunpack.c.l.b16 %v160
  %v485 = vpack.c.b16 %v358, %v357
  %v486 = vpack.c.b16 %v360, %v359
  %v487 = vpack.c.b16 %v362, %v361
  %v488 = vpack.c.b16 %v364, %v363
  %v489 = vpack.c.b16 %v366, %v365
  %v490 = vpack.c.b16 %v368, %v367
  %v491 = vpack.c.b16 %v370, %v369
  %v492 = vpack.c.b16 %v372, %v371
  %v493 = vpack.c.b16 %v374, %v373
  %v494 = vpack.c.b16 %v376, %v375
  %v495 = vpack.c.b16 %v378, %v377
  %v496 = vpack.c.b16 %v380, %v379
  %v497 = vpack.c.b16 %v382, %v381
  %v498 = vpack.c.b16 %v384, %v383
  %v499 = vpack.c.b16 %v386, %v385
  %v500 = vpack.c.b16 %v388, %v387
  %v501 = vpack.c.b16 %v390, %v389
  %v502 = vpack.c.b16 %v392, %v391
  %v503 = vpack.c.b16 %v394, %v393
  %v504 = vpack.c.b16 %v396, %v395
  %v505 = vpack.c.b16 %v398, %v397
  %v506 = vpack.c.b16 %v400, %v399
  %v507 = vpack.c.b16 %v402, %v401
  %v508 = vpack.c.b16 %v404, %v403
  %v509 = vpack.c.b16 %v406, %v405
  %v510 = vpack.c.b16 %v408, %v407
  %v511 = vpack.c.b16 %v410, %v409
  %v512 = vpack.c.b16 %v412, %v411
  %v513 = vpack.c.b16 %v414, %v413
  %v514 = vpack.c.b16 %v416, %v415
  %v515 = vpack.c.b16 %v418, %v417
  %v516 = vpack.c.b16 %v420, %v419
  %v517 = vpack.c.b16 %v422, %v421
  %v518 = vpack.c.b16 %v424, %v423
  %v519 = vpack.c.b16 %v426, %v425
  %v520 = vpack.c.b16 %v428, %v427
  %v521 = vpack.c.b16 %v430, %v429
  %v522 = vpack.c.b16 %v432, %v431
  %v523 = vpack.c.b16 %v434, %v433
  %v524 = vpack.c.b16 %v436, %v435
  %v525 = vpack.c.b16 %v438, %v437
  %v526 = vpack.c.b16 %v440, %v439
  %v527 = vpack.c.b16 %v442, %v441
  %v528 = vpack.c.b16 %v444, %v443
  %v529 = vpack.c.b16 %v446, %v445
  %v530 = vpack.c.b16 %v448, %v447
  %v531 = vpack.c.b16 %v450, %v449
  %v532 = vpack.c.b16 %v452, %v451
  %v533 = vpack.c.b16 %v454, %v453
  %v534 = vpack.c.b16 %v456, %v455
  %v535 = vpack.c.b16 %v458, %v457
  %v536 = vpack.c.b16 %v460, %v459
  %v537 = vpack.c.b16 %v462, %v461
  %v538 = vpack.c.b16 %v464, %v463
  %v539 = vpack.c.b16 %v466, %v465
  %v540 = vpack.c.b16 %v468, %v467
  %v541 = vpack.c.b16 %v470, %v469
  %v542 = vpack.c.b16 %v472, %v471
  %v543 = vpack.c.b16 %v474, %v473
  %v544 = vpack.c.b16 %v476, %v475
  %v545 = vpack.c.b16 %v478, %v477
  %v546 = vpack.c.b16 %v480, %v479
  %v547 = vpack.c.b16 %v482, %v481
  %v548 = vpack.c.b16 %v484, %v483
  %613 = vmatprep.subr.bf16.mxu0 0
  %614 = vmatpush1.bf16.msra.mxu0 %v485
  %615 = vmatprep.subr.bf16.mxu0 0
  %616 = vmatpush1.bf16.msra.mxu0 %v486
  %617 = vmatprep.subr.bf16.mxu0 0
  %618 = vmatpush1.bf16.msra.mxu0 %v487
  %619 = vmatprep.subr.bf16.mxu0 0
  %620 = vmatpush1.bf16.msra.mxu0 %v488
  %621 = vmatprep.subr.bf16.mxu0 0
  %622 = vmatpush1.bf16.msra.mxu0 %v489
  %623 = vmatprep.subr.bf16.mxu0 0
  %624 = vmatpush1.bf16.msra.mxu0 %v490
  %625 = vmatprep.subr.bf16.mxu0 0
  %626 = vmatpush1.bf16.msra.mxu0 %v491
  %627 = vmatprep.subr.bf16.mxu0 0
  %628 = vmatpush1.bf16.msra.mxu0 %v492
  %629 = vmatprep.subr.bf16.mxu0 0
  %630 = vmatpush1.bf16.msra.mxu0 %v493
  %631 = vmatprep.subr.bf16.mxu0 0
  %632 = vmatpush1.bf16.msra.mxu0 %v494
  %633 = vmatprep.subr.bf16.mxu0 0
  %634 = vmatpush1.bf16.msra.mxu0 %v495
  %635 = vmatprep.subr.bf16.mxu0 0
  %636 = vmatpush1.bf16.msra.mxu0 %v496
  %637 = vmatprep.subr.bf16.mxu0 0
  %638 = vmatpush1.bf16.msra.mxu0 %v497
  %639 = vmatprep.subr.bf16.mxu0 0
  %640 = vmatpush1.bf16.msra.mxu0 %v498
  %641 = vmatprep.subr.bf16.mxu0 0
  %642 = vmatpush1.bf16.msra.mxu0 %v499
  %643 = vmatprep.subr.bf16.mxu0 0
  %644 = vmatpush1.bf16.msra.mxu0 %v500
  %645 = vmatprep.mubr.bf16.mxu0 %v198
  %646 = vmatmul.mubr.bf16.gmra.mrb[0].mxu0 %v197
  %v647 = vpop.f32.mrb[0].mxu0
  %v648 = vadd.f32 0.0, %v647
  %v649 = vpop.f32.mrb[0].mxu0
  %v650 = vpop.f32.mrb[0].mxu0
  %v651 = vadd.f32 0.0, %v650
  %v652 = vpop.f32.mrb[0].mxu0
  %653 = vmatprep.mubr.bf16.mxu0 %v206
  %654 = vmatmul.mubr.bf16.gmra.mrb[0].mxu0 %v205
  %v655 = vpop.f32.mrb[0].mxu0
  %v656 = vadd.f32 0.0, %v655
  %v657 = vpop.f32.mrb[0].mxu0
  %v658 = vpop.f32.mrb[0].mxu0
  %v659 = vpop.f32.mrb[0].mxu0
  %660 = vdwg.mxu0
  %661 = vmatprep.subr.bf16.mxu0 0
  %662 = vmatpush1.bf16.msra.mxu0 %v501
  %663 = vmatprep.subr.bf16.mxu0 0
  %664 = vmatpush1.bf16.msra.mxu0 %v502
  %665 = vmatprep.subr.bf16.mxu0 0
  %666 = vmatpush1.bf16.msra.mxu0 %v503
  %667 = vmatprep.subr.bf16.mxu0 0
  %668 = vmatpush1.bf16.msra.mxu0 %v504
  %669 = vmatprep.subr.bf16.mxu0 0
  %670 = vmatpush1.bf16.msra.mxu0 %v505
  %671 = vmatprep.subr.bf16.mxu0 0
  %672 = vmatpush1.bf16.msra.mxu0 %v506
  %673 = vmatprep.subr.bf16.mxu0 0
  %674 = vmatpush1.bf16.msra.mxu0 %v507
  %675 = vmatprep.subr.bf16.mxu0 0
  %676 = vmatpush1.bf16.msra.mxu0 %v508
  %677 = vmatprep.subr.bf16.mxu0 0
  %678 = vmatpush1.bf16.msra.mxu0 %v509
  %679 = vmatprep.subr.bf16.mxu0 0
  %680 = vmatpush1.bf16.msra.mxu0 %v510
  %681 = vmatprep.subr.bf16.mxu0 0
  %682 = vmatpush1.bf16.msra.mxu0 %v511
  %683 = vmatprep.subr.bf16.mxu0 0
  %684 = vmatpush1.bf16.msra.mxu0 %v512
  %685 = vmatprep.subr.bf16.mxu0 0
  %686 = vmatpush1.bf16.msra.mxu0 %v513
  %687 = vmatprep.subr.bf16.mxu0 0
  %688 = vmatpush1.bf16.msra.mxu0 %v514
  %689 = vmatprep.subr.bf16.mxu0 0
  %690 = vmatpush1.bf16.msra.mxu0 %v515
  %691 = vmatprep.subr.bf16.mxu0 0
  %692 = vmatpush1.bf16.msra.mxu0 %v516
  %693 = vmatprep.mubr.bf16.mxu0 %v200
  %694 = vmatmul.mubr.bf16.gmra.mrb[0].mxu0 %v199
  %v695 = vpop.f32.mrb[0].mxu0
  %v696 = vadd.f32 %v648, %v695
  %v697 = vpop.f32.mrb[0].mxu0
  %v698 = vpop.f32.mrb[0].mxu0
  %v699 = vadd.f32 %v651, %v698
  %v700 = vpop.f32.mrb[0].mxu0
  %701 = vmatprep.mubr.bf16.mxu0 %v208
  %702 = vmatmul.mubr.bf16.gmra.mrb[0].mxu0 %v207
  %v703 = vpop.f32.mrb[0].mxu0
  %v704 = vadd.f32 %v656, %v703
  %v705 = vpop.f32.mrb[0].mxu0
  %v706 = vpop.f32.mrb[0].mxu0
  %v707 = vpop.f32.mrb[0].mxu0
  %708 = vdwg.mxu0
  %709 = vmatprep.subr.bf16.mxu0 0
  %710 = vmatpush1.bf16.msra.mxu0 %v517
  %711 = vmatprep.subr.bf16.mxu0 0
  %712 = vmatpush1.bf16.msra.mxu0 %v518
  %713 = vmatprep.subr.bf16.mxu0 0
  %714 = vmatpush1.bf16.msra.mxu0 %v519
  %715 = vmatprep.subr.bf16.mxu0 0
  %716 = vmatpush1.bf16.msra.mxu0 %v520
  %717 = vmatprep.subr.bf16.mxu0 0
  %718 = vmatpush1.bf16.msra.mxu0 %v521
  %719 = vmatprep.subr.bf16.mxu0 0
  %720 = vmatpush1.bf16.msra.mxu0 %v522
  %721 = vmatprep.subr.bf16.mxu0 0
  %722 = vmatpush1.bf16.msra.mxu0 %v523
  %723 = vmatprep.subr.bf16.mxu0 0
  %724 = vmatpush1.bf16.msra.mxu0 %v524
  %725 = vmatprep.subr.bf16.mxu0 0
  %726 = vmatpush1.bf16.msra.mxu0 %v525
  %727 = vmatprep.subr.bf16.mxu0 0
  %728 = vmatpush1.bf16.msra.mxu0 %v526
  %729 = vmatprep.subr.bf16.mxu0 0
  %730 = vmatpush1.bf16.msra.mxu0 %v527
  %731 = vmatprep.subr.bf16.mxu0 0
  %732 = vmatpush1.bf16.msra.mxu0 %v528
  %733 = vmatprep.subr.bf16.mxu0 0
  %734 = vmatpush1.bf16.msra.mxu0 %v529
  %735 = vmatprep.subr.bf16.mxu0 0
  %736 = vmatpush1.bf16.msra.mxu0 %v530
  %737 = vmatprep.subr.bf16.mxu0 0
  %738 = vmatpush1.bf16.msra.mxu0 %v531
  %739 = vmatprep.subr.bf16.mxu0 0
  %740 = vmatpush1.bf16.msra.mxu0 %v532
  %741 = vmatprep.mubr.bf16.mxu0 %v202
  %742 = vmatmul.mubr.bf16.gmra.mrb[0].mxu0 %v201
  %v743 = vpop.f32.mrb[0].mxu0
  %v744 = vadd.f32 %v696, %v743
  %v745 = vpop.f32.mrb[0].mxu0
  %v746 = vpop.f32.mrb[0].mxu0
  %v747 = vadd.f32 %v699, %v746
  %v748 = vpop.f32.mrb[0].mxu0
  %749 = vmatprep.mubr.bf16.mxu0 %v210
  %750 = vmatmul.mubr.bf16.gmra.mrb[0].mxu0 %v209
  %v751 = vpop.f32.mrb[0].mxu0
  %v752 = vadd.f32 %v704, %v751
  %v753 = vpop.f32.mrb[0].mxu0
  %v754 = vpop.f32.mrb[0].mxu0
  %v755 = vpop.f32.mrb[0].mxu0
  %756 = vdwg.mxu0
  %757 = vmatprep.subr.bf16.mxu0 0
  %758 = vmatpush1.bf16.msra.mxu0 %v533
  %759 = vmatprep.subr.bf16.mxu0 0
  %760 = vmatpush1.bf16.msra.mxu0 %v534
  %761 = vmatprep.subr.bf16.mxu0 0
  %762 = vmatpush1.bf16.msra.mxu0 %v535
  %763 = vmatprep.subr.bf16.mxu0 0
  %764 = vmatpush1.bf16.msra.mxu0 %v536
  %765 = vmatprep.subr.bf16.mxu0 0
  %766 = vmatpush1.bf16.msra.mxu0 %v537
  %767 = vmatprep.subr.bf16.mxu0 0
  %768 = vmatpush1.bf16.msra.mxu0 %v538
  %769 = vmatprep.subr.bf16.mxu0 0
  %770 = vmatpush1.bf16.msra.mxu0 %v539
  %771 = vmatprep.subr.bf16.mxu0 0
  %772 = vmatpush1.bf16.msra.mxu0 %v540
  %773 = vmatprep.subr.bf16.mxu0 0
  %774 = vmatpush1.bf16.msra.mxu0 %v541
  %775 = vmatprep.subr.bf16.mxu0 0
  %776 = vmatpush1.bf16.msra.mxu0 %v542
  %777 = vmatprep.subr.bf16.mxu0 0
  %778 = vmatpush1.bf16.msra.mxu0 %v543
  %779 = vmatprep.subr.bf16.mxu0 0
  %780 = vmatpush1.bf16.msra.mxu0 %v544
  %781 = vmatprep.subr.bf16.mxu0 0
  %782 = vmatpush1.bf16.msra.mxu0 %v545
  %783 = vmatprep.subr.bf16.mxu0 0
  %784 = vmatpush1.bf16.msra.mxu0 %v546
  %785 = vmatprep.subr.bf16.mxu0 0
  %786 = vmatpush1.bf16.msra.mxu0 %v547
  %787 = vmatprep.subr.bf16.mxu0 0
  %788 = vmatpush1.bf16.msra.mxu0 %v548
  %789 = vmatprep.mubr.bf16.mxu0 %v204
  %790 = vmatmul.mubr.bf16.gmra.mrb[0].mxu0 %v203
  %v791 = vpop.f32.mrb[0].mxu0
  %v792 = vadd.f32 %v744, %v791
  %v793 = vpop.f32.mrb[0].mxu0
  %v794 = vpop.f32.mrb[0].mxu0
  %v795 = vadd.f32 %v747, %v794
  %v796 = vpop.f32.mrb[0].mxu0
  %797 = vmatprep.mubr.bf16.mxu0 %v212
  %798 = vmatmul.mubr.bf16.gmra.mrb[0].mxu0 %v211
  %v799 = vpop.f32.mrb[0].mxu0
  %v800 = vadd.f32 %v752, %v799
  %v801 = vpop.f32.mrb[0].mxu0
  %v802 = vpop.f32.mrb[0].mxu0
  %v803 = vpop.f32.mrb[0].mxu0
  %804 = vdwg.mxu0
  %805 = vst [vmem:[%s2] sm:$0xff] %v792
  %806 = vst [vmem:[%s2 + $0x8] sm:$0xff] %v795
  %807 = vst [vmem:[%s2 + $0x10] sm:$0xff] %v800
  %v808 = vld [vmem:[%s3] sm:$0x1]
  %v809 = vadd.f32 %v792, %v795
  %v810 = vadd.f32 %v809, %v800
  %v811 = vrot.slane %v810, 4
  %v812 = vadd.f32 %v810, %v811
  %v813 = vrot.slane %v812, 2
  %v814 = vadd.f32 %v812, %v813
  %v815 = vrot.slane %v814, 1
  %v816 = vadd.f32 %v814, %v815
  %v817 = vadd.f32 %v808, %v816
  %818 = vst [vmem:[%s3] sm:$0x1] %v817
  %v819 = vld [vmem:[%s4] sm:$0x1]
  %v820 = vmul.f32 %v792, %v792
  %v821 = vmul.f32 %v795, %v795
  %v822 = vmul.f32 %v800, %v800
  %v823 = vadd.f32 %v820, %v821
  %v824 = vadd.f32 %v823, %v822
  %v825 = vrot.slane %v824, 4
  %v826 = vadd.f32 %v824, %v825
  %v827 = vrot.slane %v826, 2
  %v828 = vadd.f32 %v826, %v827
  %v829 = vrot.slane %v828, 1
  %v830 = vadd.f32 %v828, %v829
  %v831 = vadd.f32 %v819, %v830
  %832 = vst [vmem:[%s4] sm:$0x1] %v831
  // Predicated region
  $region14: #{_lambda_.13} parent=0 // pred_check
    _
  $region15: #{_lambda_.13} parent=0 // pred_check_branch
    %834 = sbr.rel (0) target = $region17
  $region16: #{_lambda_.13} parent=0 // pred_region
    _
  $region17: #{_lambda_.13} parent=0 // pred_fallthru
    _
  // Predicated region
  $region18: #{_lambda_.13} parent=0 // pred_check
    _
  $region19: #{_lambda_.13} parent=0 // pred_check_branch
    %836 = sbr.rel (0) target = $region21
  $region20: #{_lambda_.13} parent=0 // pred_region
    _
  $region21: #{_lambda_.13} parent=0 // pred_fallthru
    _
  // Predicated region
  $region22: #{_lambda_.13} parent=0 // pred_check
    _
  $region23: #{_lambda_.13} parent=0 // pred_check_branch
    %838 = sbr.rel (0) target = $region25
  $region24: #{_lambda_.13} parent=0 // pred_region
    _
  $region25: #{_lambda_.13} parent=0 // pred_fallthru
    _
  // Predicated region
  $region26: #{_lambda_.13} parent=0 // pred_check
    _
  $region27: #{_lambda_.13} parent=0 // pred_check_branch
    %840 = sbr.rel (0) target = $region29
  $region28: #{_lambda_.13} parent=0 // pred_region
    _
  $region29: #{_lambda_.13} parent=0 // pred_fallthru
    _
  // Predicated region
  $region30: #{_lambda_.13} parent=0 // pred_check
    _
  $region31: #{_lambda_.13} parent=0 // pred_check_branch
    %842 = sbr.rel (0) target = $region33
  $region32: #{_lambda_.13} parent=0 // pred_region
    _
  $region33: #{_lambda_.13} parent=0 // pred_fallthru
    _
  // Predicated region
  $region34: #{_lambda_.13} parent=0 // pred_check
    _
  $region35: #{_lambda_.13} parent=0 // pred_check_branch
    %844 = sbr.rel (0) target = $region37
  $region36: #{_lambda_.13} parent=0 // pred_region
    _
  $region37: #{_lambda_.13} parent=0 // pred_fallthru
    _

// kernel: _lambda_.15
$region0: #{_lambda_.15}
  #allocation0 [shape = 'u32[]', space=smem, size = 0x4, offset = 0x4, fixed_abs, tag = 'smem constant byte address 0x4 - core index']
  #allocation1 [shape = 'u32[144,128]{1,0:T(1,128)}', space=vmem, size = 0x12000, scoped, tag = 'internal scratch']
  %s0 = inlined_call_operand.vmem [shape: bf16[8,2048], index: 0, kind: input, shape index: {}]
  %s1 = inlined_call_operand.vmem [shape: bf16[2048,128], index: 1, kind: input, shape index: {}]
  %s2 = inlined_call_operand.vmem [shape: f32[1,128], index: 2, kind: input, shape index: {}]
  %s3 = inlined_call_operand.vmem [shape: f32[8,128], index: 3, kind: output, shape index: {}]
  %s4 = sld [smem:[#allocation0]]
  $region22: #{_lambda_.15} parent=0
    _
  %s6 = ssub.s32 1, %s4
  %s7 = scalar_select 0, %s6, %s4
  // Predicated region
  $region2: #{_lambda_.15} parent=0 // pred_check
    _
  $region3: #{_lambda_.15} parent=0 // pred_check_branch
    %9 = sbr.rel (0) target = $region5
  $region4: #{_lambda_.15} parent=0 // pred_region
    _
  $region5: #{_lambda_.15} parent=0 // pred_fallthru
    _
  // Predicated region
  $region6: #{_lambda_.15} parent=0 // pred_check
    _
  $region7: #{_lambda_.15} parent=0 // pred_check_branch
    %11 = sbr.rel (0) target = $region9
  $region8: #{_lambda_.15} parent=0 // pred_region
    _
  $region9: #{_lambda_.15} parent=0 // pred_fallthru
    _
  // Predicated region
  $region10: #{_lambda_.15} parent=0 // pred_check
    _
  $region11: #{_lambda_.15} parent=0 // pred_check_branch
    %13 = sbr.rel (0) target = $region13
  $region12: #{_lambda_.15} parent=0 // pred_region
    _
  $region13: #{_lambda_.15} parent=0 // pred_fallthru
    _
  %v15 = vld [vmem:[%s0] sm:$0xff]
  %v16 = vld [vmem:[%s0 + $0x8] sm:$0xff]
  %v17 = vld [vmem:[%s0 + $0x10] sm:$0xff]
  %v18 = vld [vmem:[%s0 + $0x18] sm:$0xff]
  %v19 = vld [vmem:[%s0 + $0x20] sm:$0xff]
  %v20 = vld [vmem:[%s0 + $0x28] sm:$0xff]
  %v21 = vld [vmem:[%s0 + $0x30] sm:$0xff]
  %v22 = vld [vmem:[%s0 + $0x38] sm:$0xff]
  %v23 = vld [vmem:[%s1] sm:$0xf]
  %v24 = vld [vmem:[%s1 + $0x4] sm:$0xf]
  %v25 = vld [vmem:[%s1 + $0x8] sm:$0xf]
  %v26 = vld [vmem:[%s1 + $0xc] sm:$0xf]
  %v27 = vld [vmem:[%s1 + $0x10] sm:$0xf]
  %v28 = vld [vmem:[%s1 + $0x14] sm:$0xf]
  %v29 = vld [vmem:[%s1 + $0x18] sm:$0xf]
  %v30 = vld [vmem:[%s1 + $0x1c] sm:$0xf]
  %v31 = vld [vmem:[%s1 + $0x20] sm:$0xf]
  %v32 = vld [vmem:[%s1 + $0x24] sm:$0xf]
  %v33 = vld [vmem:[%s1 + $0x28] sm:$0xf]
  %v34 = vld [vmem:[%s1 + $0x2c] sm:$0xf]
  %v35 = vld [vmem:[%s1 + $0x30] sm:$0xf]
  %v36 = vld [vmem:[%s1 + $0x34] sm:$0xf]
  %v37 = vld [vmem:[%s1 + $0x38] sm:$0xf]
  %v38 = vld [vmem:[%s1 + $0x3c] sm:$0xf]
  %v39 = vld [vmem:[%s1 + $0x40] sm:$0xf]
  %v40 = vld [vmem:[%s1 + $0x44] sm:$0xf]
  %v41 = vld [vmem:[%s1 + $0x48] sm:$0xf]
  %v42 = vld [vmem:[%s1 + $0x4c] sm:$0xf]
  %v43 = vld [vmem:[%s1 + $0x50] sm:$0xf]
  %v44 = vld [vmem:[%s1 + $0x54] sm:$0xf]
  %v45 = vld [vmem:[%s1 + $0x58] sm:$0xf]
  %v46 = vld [vmem:[%s1 + $0x5c] sm:$0xf]
  %v47 = vld [vmem:[%s1 + $0x60] sm:$0xf]
  %v48 = vld [vmem:[%s1 + $0x64] sm:$0xf]
  %v49 = vld [vmem:[%s1 + $0x68] sm:$0xf]
  %v50 = vld [vmem:[%s1 + $0x6c] sm:$0xf]
  %v51 = vld [vmem:[%s1 + $0x70] sm:$0xf]
  %v52 = vld [vmem:[%s1 + $0x74] sm:$0xf]
  %v53 = vld [vmem:[%s1 + $0x78] sm:$0xf]
  %v54 = vld [vmem:[%s1 + $0x7c] sm:$0xf]
  %v55 = vld [vmem:[%s1 + $0x80] sm:$0xf]
  %v56 = vld [vmem:[%s1 + $0x84] sm:$0xf]
  %v57 = vld [vmem:[%s1 + $0x88] sm:$0xf]
  %v58 = vld [vmem:[%s1 + $0x8c] sm:$0xf]
  %v59 = vld [vmem:[%s1 + $0x90] sm:$0xf]
  %v60 = vld [vmem:[%s1 + $0x94] sm:$0xf]
  %v61 = vld [vmem:[%s1 + $0x98] sm:$0xf]
  %v62 = vld [vmem:[%s1 + $0x9c] sm:$0xf]
  %v63 = vld [vmem:[%s1 + $0xa0] sm:$0xf]
  %v64 = vld [vmem:[%s1 + $0xa4] sm:$0xf]
  %v65 = vld [vmem:[%s1 + $0xa8] sm:$0xf]
  %v66 = vld [vmem:[%s1 + $0xac] sm:$0xf]
  %v67 = vld [vmem:[%s1 + $0xb0] sm:$0xf]
  %v68 = vld [vmem:[%s1 + $0xb4] sm:$0xf]
  %v69 = vld [vmem:[%s1 + $0xb8] sm:$0xf]
  %v70 = vld [vmem:[%s1 + $0xbc] sm:$0xf]
  %v71 = vld [vmem:[%s1 + $0xc0] sm:$0xf]
  %v72 = vld [vmem:[%s1 + $0xc4] sm:$0xf]
  %v73 = vld [vmem:[%s1 + $0xc8] sm:$0xf]
  %v74 = vld [vmem:[%s1 + $0xcc] sm:$0xf]
  %v75 = vld [vmem:[%s1 + $0xd0] sm:$0xf]
  %v76 = vld [vmem:[%s1 + $0xd4] sm:$0xf]
  %v77 = vld [vmem:[%s1 + $0xd8] sm:$0xf]
  %v78 = vld [vmem:[%s1 + $0xdc] sm:$0xf]
  %v79 = vld [vmem:[%s1 + $0xe0] sm:$0xf]
  %v80 = vld [vmem:[%s1 + $0xe4] sm:$0xf]
  %v81 = vld [vmem:[%s1 + $0xe8] sm:$0xf]
  %v82 = vld [vmem:[%s1 + $0xec] sm:$0xf]
  %v83 = vld [vmem:[%s1 + $0xf0] sm:$0xf]
  %v84 = vld [vmem:[%s1 + $0xf4] sm:$0xf]
  %v85 = vld [vmem:[%s1 + $0xf8] sm:$0xf]
  %v86 = vld [vmem:[%s1 + $0xfc] sm:$0xf]
  %v87 = vld [vmem:[%s1 + $0x100] sm:$0xf]
  %v88 = vld [vmem:[%s1 + $0x104] sm:$0xf]
  %v89 = vld [vmem:[%s1 + $0x108] sm:$0xf]
  %v90 = vld [vmem:[%s1 + $0x10c] sm:$0xf]
  %v91 = vld [vmem:[%s1 + $0x110] sm:$0xf]
  %v92 = vld [vmem:[%s1 + $0x114] sm:$0xf]
  %v93 = vld [vmem:[%s1 + $0x118] sm:$0xf]
  %v94 = vld [vmem:[%s1 + $0x11c] sm:$0xf]
  %v95 = vld [vmem:[%s1 + $0x120] sm:$0xf]
  %v96 = vld [vmem:[%s1 + $0x124] sm:$0xf]
  %v97 = vld [vmem:[%s1 + $0x128] sm:$0xf]
  %v98 = vld [vmem:[%s1 + $0x12c] sm:$0xf]
  %v99 = vld [vmem:[%s1 + $0x130] sm:$0xf]
  %v100 = vld [vmem:[%s1 + $0x134] sm:$0xf]
  %v101 = vld [vmem:[%s1 + $0x138] sm:$0xf]
  %v102 = vld [vmem:[%s1 + $0x13c] sm:$0xf]
  %v103 = vld [vmem:[%s1 + $0x140] sm:$0xf]
  %v104 = vld [vmem:[%s1 + $0x144] sm:$0xf]
  %v105 = vld [vmem:[%s1 + $0x148] sm:$0xf]
  %v106 = vld [vmem:[%s1 + $0x14c] sm:$0xf]
  %v107 = vld [vmem:[%s1 + $0x150] sm:$0xf]
  %v108 = vld [vmem:[%s1 + $0x154] sm:$0xf]
  %v109 = vld [vmem:[%s1 + $0x158] sm:$0xf]
  %v110 = vld [vmem:[%s1 + $0x15c] sm:$0xf]
  %v111 = vld [vmem:[%s1 + $0x160] sm:$0xf]
  %v112 = vld [vmem:[%s1 + $0x164] sm:$0xf]
  %v113 = vld [vmem:[%s1 + $0x168] sm:$0xf]
  %v114 = vld [vmem:[%s1 + $0x16c] sm:$0xf]
  %v115 = vld [vmem:[%s1 + $0x170] sm:$0xf]
  %v116 = vld [vmem:[%s1 + $0x174] sm:$0xf]
  %v117 = vld [vmem:[%s1 + $0x178] sm:$0xf]
  %v118 = vld [vmem:[%s1 + $0x17c] sm:$0xf]
  %v119 = vld [vmem:[%s1 + $0x180] sm:$0xf]
  %v120 = vld [vmem:[%s1 + $0x184] sm:$0xf]
  %v121 = vld [vmem:[%s1 + $0x188] sm:$0xf]
  %v122 = vld [vmem:[%s1 + $0x18c] sm:$0xf]
  %v123 = vld [vmem:[%s1 + $0x190] sm:$0xf]
  %v124 = vld [vmem:[%s1 + $0x194] sm:$0xf]
  %v125 = vld [vmem:[%s1 + $0x198] sm:$0xf]
  %v126 = vld [vmem:[%s1 + $0x19c] sm:$0xf]
  %v127 = vld [vmem:[%s1 + $0x1a0] sm:$0xf]
  %v128 = vld [vmem:[%s1 + $0x1a4] sm:$0xf]
  %v129 = vld [vmem:[%s1 + $0x1a8] sm:$0xf]
  %v130 = vld [vmem:[%s1 + $0x1ac] sm:$0xf]
  %v131 = vld [vmem:[%s1 + $0x1b0] sm:$0xf]
  %v132 = vld [vmem:[%s1 + $0x1b4] sm:$0xf]
  %v133 = vld [vmem:[%s1 + $0x1b8] sm:$0xf]
  %v134 = vld [vmem:[%s1 + $0x1bc] sm:$0xf]
  %v135 = vld [vmem:[%s1 + $0x1c0] sm:$0xf]
  %v136 = vld [vmem:[%s1 + $0x1c4] sm:$0xf]
  %v137 = vld [vmem:[%s1 + $0x1c8] sm:$0xf]
  %v138 = vld [vmem:[%s1 + $0x1cc] sm:$0xf]
  %v139 = vld [vmem:[%s1 + $0x1d0] sm:$0xf]
  %v140 = vld [vmem:[%s1 + $0x1d4] sm:$0xf]
  %v141 = vld [vmem:[%s1 + $0x1d8] sm:$0xf]
  %v142 = vld [vmem:[%s1 + $0x1dc] sm:$0xf]
  %v143 = vld [vmem:[%s1 + $0x1e0] sm:$0xf]
  %v144 = vld [vmem:[%s1 + $0x1e4] sm:$0xf]
  %v145 = vld [vmem:[%s1 + $0x1e8] sm:$0xf]
  %v146 = vld [vmem:[%s1 + $0x1ec] sm:$0xf]
  %v147 = vld [vmem:[%s1 + $0x1f0] sm:$0xf]
  %v148 = vld [vmem:[%s1 + $0x1f4] sm:$0xf]
  %v149 = vld [vmem:[%s1 + $0x1f8] sm:$0xf]
  %v150 = vld [vmem:[%s1 + $0x1fc] sm:$0xf]
  %v151 = vld [vmem:[%s1 + $0x200] sm:$0xf]
  %v152 = vld [vmem:[%s1 + $0x204] sm:$0xf]
  %v153 = vld [vmem:[%s1 + $0x208] sm:$0xf]
  %v154 = vld [vmem:[%s1 + $0x20c] sm:$0xf]
  %v155 = vld [vmem:[%s1 + $0x210] sm:$0xf]
  %v156 = vld [vmem:[%s1 + $0x214] sm:$0xf]
  %v157 = vld [vmem:[%s1 + $0x218] sm:$0xf]
  %v158 = vld [vmem:[%s1 + $0x21c] sm:$0xf]
  %v159 = vld [vmem:[%s1 + $0x220] sm:$0xf]
  %v160 = vld [vmem:[%s1 + $0x224] sm:$0xf]
  %v161 = vld [vmem:[%s1 + $0x228] sm:$0xf]
  %v162 = vld [vmem:[%s1 + $0x22c] sm:$0xf]
  %v163 = vld [vmem:[%s1 + $0x230] sm:$0xf]
  %v164 = vld [vmem:[%s1 + $0x234] sm:$0xf]
  %v165 = vld [vmem:[%s1 + $0x238] sm:$0xf]
  %v166 = vld [vmem:[%s1 + $0x23c] sm:$0xf]
  %v167 = vld [vmem:[%s1 + $0x240] sm:$0xf]
  %v168 = vld [vmem:[%s1 + $0x244] sm:$0xf]
  %v169 = vld [vmem:[%s1 + $0x248] sm:$0xf]
  %v170 = vld [vmem:[%s1 + $0x24c] sm:$0xf]
  %v171 = vld [vmem:[%s1 + $0x250] sm:$0xf]
  %v172 = vld [vmem:[%s1 + $0x254] sm:$0xf]
  %v173 = vld [vmem:[%s1 + $0x258] sm:$0xf]
  %v174 = vld [vmem:[%s1 + $0x25c] sm:$0xf]
  %v175 = vld [vmem:[%s1 + $0x260] sm:$0xf]
  %v176 = vld [vmem:[%s1 + $0x264] sm:$0xf]
  %v177 = vld [vmem:[%s1 + $0x268] sm:$0xf]
  %v178 = vld [vmem:[%s1 + $0x26c] sm:$0xf]
  %v179 = vld [vmem:[%s1 + $0x270] sm:$0xf]
  %v180 = vld [vmem:[%s1 + $0x274] sm:$0xf]
  %v181 = vld [vmem:[%s1 + $0x278] sm:$0xf]
  %v182 = vld [vmem:[%s1 + $0x27c] sm:$0xf]
  %v183 = vld [vmem:[%s1 + $0x280] sm:$0xf]
  %v184 = vld [vmem:[%s1 + $0x284] sm:$0xf]
  %v185 = vld [vmem:[%s1 + $0x288] sm:$0xf]
  %v186 = vld [vmem:[%s1 + $0x28c] sm:$0xf]
  %v187 = vld [vmem:[%s1 + $0x290] sm:$0xf]
  %v188 = vld [vmem:[%s1 + $0x294] sm:$0xf]
  %v189 = vld [vmem:[%s1 + $0x298] sm:$0xf]
  %v190 = vld [vmem:[%s1 + $0x29c] sm:$0xf]
  %v191 = vld [vmem:[%s1 + $0x2a0] sm:$0xf]
  %v192 = vld [vmem:[%s1 + $0x2a4] sm:$0xf]
  %v193 = vld [vmem:[%s1 + $0x2a8] sm:$0xf]
  %v194 = vld [vmem:[%s1 + $0x2ac] sm:$0xf]
  %v195 = vld [vmem:[%s1 + $0x2b0] sm:$0xf]
  %v196 = vld [vmem:[%s1 + $0x2b4] sm:$0xf]
  %v197 = vld [vmem:[%s1 + $0x2b8] sm:$0xf]
  %v198 = vld [vmem:[%s1 + $0x2bc] sm:$0xf]
  %v199 = vld [vmem:[%s1 + $0x2c0] sm:$0xf]
  %v200 = vld [vmem:[%s1 + $0x2c4] sm:$0xf]
  %v201 = vld [vmem:[%s1 + $0x2c8] sm:$0xf]
  %v202 = vld [vmem:[%s1 + $0x2cc] sm:$0xf]
  %v203 = vld [vmem:[%s1 + $0x2d0] sm:$0xf]
  %v204 = vld [vmem:[%s1 + $0x2d4] sm:$0xf]
  %v205 = vld [vmem:[%s1 + $0x2d8] sm:$0xf]
  %v206 = vld [vmem:[%s1 + $0x2dc] sm:$0xf]
  %v207 = vld [vmem:[%s1 + $0x2e0] sm:$0xf]
  %v208 = vld [vmem:[%s1 + $0x2e4] sm:$0xf]
  %v209 = vld [vmem:[%s1 + $0x2e8] sm:$0xf]
  %v210 = vld [vmem:[%s1 + $0x2ec] sm:$0xf]
  %v211 = vld [vmem:[%s1 + $0x2f0] sm:$0xf]
  %v212 = vld [vmem:[%s1 + $0x2f4] sm:$0xf]
  %v213 = vld [vmem:[%s1 + $0x2f8] sm:$0xf]
  %v214 = vld [vmem:[%s1 + $0x2fc] sm:$0xf]
  %v215 = vld [vmem:[%s1 + $0x300] sm:$0xf]
  %v216 = vld [vmem:[%s1 + $0x304] sm:$0xf]
  %v217 = vld [vmem:[%s1 + $0x308] sm:$0xf]
  %v218 = vld [vmem:[%s1 + $0x30c] sm:$0xf]
  %v219 = vld [vmem:[%s1 + $0x310] sm:$0xf]
  %v220 = vld [vmem:[%s1 + $0x314] sm:$0xf]
  %v221 = vld [vmem:[%s1 + $0x318] sm:$0xf]
  %v222 = vld [vmem:[%s1 + $0x31c] sm:$0xf]
  %v223 = vld [vmem:[%s1 + $0x320] sm:$0xf]
  %v224 = vld [vmem:[%s1 + $0x324] sm:$0xf]
  %v225 = vld [vmem:[%s1 + $0x328] sm:$0xf]
  %v226 = vld [vmem:[%s1 + $0x32c] sm:$0xf]
  %v227 = vld [vmem:[%s1 + $0x330] sm:$0xf]
  %v228 = vld [vmem:[%s1 + $0x334] sm:$0xf]
  %v229 = vld [vmem:[%s1 + $0x338] sm:$0xf]
  %v230 = vld [vmem:[%s1 + $0x33c] sm:$0xf]
  %v231 = vld [vmem:[%s1 + $0x340] sm:$0xf]
  %v232 = vld [vmem:[%s1 + $0x344] sm:$0xf]
  %v233 = vld [vmem:[%s1 + $0x348] sm:$0xf]
  %v234 = vld [vmem:[%s1 + $0x34c] sm:$0xf]
  %v235 = vld [vmem:[%s1 + $0x350] sm:$0xf]
  %v236 = vld [vmem:[%s1 + $0x354] sm:$0xf]
  %v237 = vld [vmem:[%s1 + $0x358] sm:$0xf]
  %v238 = vld [vmem:[%s1 + $0x35c] sm:$0xf]
  %v239 = vld [vmem:[%s1 + $0x360] sm:$0xf]
  %v240 = vld [vmem:[%s1 + $0x364] sm:$0xf]
  %v241 = vld [vmem:[%s1 + $0x368] sm:$0xf]
  %v242 = vld [vmem:[%s1 + $0x36c] sm:$0xf]
  %v243 = vld [vmem:[%s1 + $0x370] sm:$0xf]
  %v244 = vld [vmem:[%s1 + $0x374] sm:$0xf]
  %v245 = vld [vmem:[%s1 + $0x378] sm:$0xf]
  %v246 = vld [vmem:[%s1 + $0x37c] sm:$0xf]
  %v247 = vld [vmem:[%s1 + $0x380] sm:$0xf]
  %v248 = vld [vmem:[%s1 + $0x384] sm:$0xf]
  %v249 = vld [vmem:[%s1 + $0x388] sm:$0xf]
  %v250 = vld [vmem:[%s1 + $0x38c] sm:$0xf]
  %v251 = vld [vmem:[%s1 + $0x390] sm:$0xf]
  %v252 = vld [vmem:[%s1 + $0x394] sm:$0xf]
  %v253 = vld [vmem:[%s1 + $0x398] sm:$0xf]
  %v254 = vld [vmem:[%s1 + $0x39c] sm:$0xf]
  %v255 = vld [vmem:[%s1 + $0x3a0] sm:$0xf]
  %v256 = vld [vmem:[%s1 + $0x3a4] sm:$0xf]
  %v257 = vld [vmem:[%s1 + $0x3a8] sm:$0xf]
  %v258 = vld [vmem:[%s1 + $0x3ac] sm:$0xf]
  %v259 = vld [vmem:[%s1 + $0x3b0] sm:$0xf]
  %v260 = vld [vmem:[%s1 + $0x3b4] sm:$0xf]
  %v261 = vld [vmem:[%s1 + $0x3b8] sm:$0xf]
  %v262 = vld [vmem:[%s1 + $0x3bc] sm:$0xf]
  %v263 = vld [vmem:[%s1 + $0x3c0] sm:$0xf]
  %v264 = vld [vmem:[%s1 + $0x3c4] sm:$0xf]
  %v265 = vld [vmem:[%s1 + $0x3c8] sm:$0xf]
  %v266 = vld [vmem:[%s1 + $0x3cc] sm:$0xf]
  %v267 = vld [vmem:[%s1 + $0x3d0] sm:$0xf]
  %v268 = vld [vmem:[%s1 + $0x3d4] sm:$0xf]
  %v269 = vld [vmem:[%s1 + $0x3d8] sm:$0xf]
  %v270 = vld [vmem:[%s1 + $0x3dc] sm:$0xf]
  %v271 = vld [vmem:[%s1 + $0x3e0] sm:$0xf]
  %v272 = vld [vmem:[%s1 + $0x3e4] sm:$0xf]
  %v273 = vld [vmem:[%s1 + $0x3e8] sm:$0xf]
  %v274 = vld [vmem:[%s1 + $0x3ec] sm:$0xf]
  %v275 = vld [vmem:[%s1 + $0x3f0] sm:$0xf]
  %v276 = vld [vmem:[%s1 + $0x3f4] sm:$0xf]
  %v277 = vld [vmem:[%s1 + $0x3f8] sm:$0xf]
  %v278 = vld [vmem:[%s1 + $0x3fc] sm:$0xf]
  %v279 = vld [vmem:[%s2] sm:$0x1]
  %v281 = vlaneseq
  %v282 = vshrl.u32 %v281, 7
  %v283 = vsub.s32 0, %v282
  %v284 = vrot.slane %v279, %v283
  %v294 = vunpack.c.l.b16 %v15
  %v295 = vunpack.c.h.b16 %v15
  %v296 = vunpack.c.l.b16 %v16
  %v297 = vunpack.c.h.b16 %v16
  %v298 = vunpack.c.l.b16 %v17
  %v299 = vunpack.c.h.b16 %v17
  %v300 = vunpack.c.l.b16 %v18
  %v301 = vunpack.c.h.b16 %v18
  %v302 = vunpack.c.l.b16 %v19
  %v303 = vunpack.c.h.b16 %v19
  %v304 = vunpack.c.l.b16 %v20
  %v305 = vunpack.c.h.b16 %v20
  %v306 = vunpack.c.l.b16 %v21
  %v307 = vunpack.c.h.b16 %v21
  %v308 = vunpack.c.l.b16 %v22
  %v309 = vunpack.c.h.b16 %v22
  %v310 = vpack.c.b16 %v294, %v294
  %v311 = vpack.c.b16 %v295, %v295
  %v312 = vpack.c.b16 %v296, %v296
  %v313 = vpack.c.b16 %v297, %v297
  %v314 = vpack.c.b16 %v298, %v298
  %v315 = vpack.c.b16 %v299, %v299
  %v316 = vpack.c.b16 %v300, %v300
  %v317 = vpack.c.b16 %v301, %v301
  %v318 = vpack.c.b16 %v302, %v302
  %v319 = vpack.c.b16 %v303, %v303
  %v320 = vpack.c.b16 %v304, %v304
  %v321 = vpack.c.b16 %v305, %v305
  %v322 = vpack.c.b16 %v306, %v306
  %v323 = vpack.c.b16 %v307, %v307
  %v324 = vpack.c.b16 %v308, %v308
  %v325 = vpack.c.b16 %v309, %v309
  %v598 = vunpack.c.l.b16 %v23
  %v599 = vunpack.c.l.b16 %v24
  %v600 = vunpack.c.l.b16 %v25
  %v601 = vunpack.c.l.b16 %v26
  %v602 = vunpack.c.l.b16 %v27
  %v603 = vunpack.c.l.b16 %v28
  %v604 = vunpack.c.l.b16 %v29
  %v605 = vunpack.c.l.b16 %v30
  %v606 = vunpack.c.l.b16 %v31
  %v607 = vunpack.c.l.b16 %v32
  %v608 = vunpack.c.l.b16 %v33
  %v609 = vunpack.c.l.b16 %v34
  %v610 = vunpack.c.l.b16 %v35
  %v611 = vunpack.c.l.b16 %v36
  %v612 = vunpack.c.l.b16 %v37
  %v613 = vunpack.c.l.b16 %v38
  %v614 = vunpack.c.l.b16 %v39
  %v615 = vunpack.c.l.b16 %v40
  %v616 = vunpack.c.l.b16 %v41
  %v617 = vunpack.c.l.b16 %v42
  %v618 = vunpack.c.l.b16 %v43
  %v619 = vunpack.c.l.b16 %v44
  %v620 = vunpack.c.l.b16 %v45
  %v621 = vunpack.c.l.b16 %v46
  %v622 = vunpack.c.l.b16 %v47
  %v623 = vunpack.c.l.b16 %v48
  %v624 = vunpack.c.l.b16 %v49
  %v625 = vunpack.c.l.b16 %v50
  %v626 = vunpack.c.l.b16 %v51
  %v627 = vunpack.c.l.b16 %v52
  %v628 = vunpack.c.l.b16 %v53
  %v629 = vunpack.c.l.b16 %v54
  %v630 = vunpack.c.l.b16 %v55
  %v631 = vunpack.c.l.b16 %v56
  %v632 = vunpack.c.l.b16 %v57
  %v633 = vunpack.c.l.b16 %v58
  %v634 = vunpack.c.l.b16 %v59
  %v635 = vunpack.c.l.b16 %v60
  %v636 = vunpack.c.l.b16 %v61
  %v637 = vunpack.c.l.b16 %v62
  %v638 = vunpack.c.l.b16 %v63
  %v639 = vunpack.c.l.b16 %v64
  %v640 = vunpack.c.l.b16 %v65
  %v641 = vunpack.c.l.b16 %v66
  %v642 = vunpack.c.l.b16 %v67
  %v643 = vunpack.c.l.b16 %v68
  %v644 = vunpack.c.l.b16 %v69
  %v645 = vunpack.c.l.b16 %v70
  %v646 = vunpack.c.l.b16 %v71
  %v647 = vunpack.c.l.b16 %v72
  %v648 = vunpack.c.l.b16 %v73
  %v649 = vunpack.c.l.b16 %v74
  %v650 = vunpack.c.l.b16 %v75
  %v651 = vunpack.c.l.b16 %v76
  %v652 = vunpack.c.l.b16 %v77
  %v653 = vunpack.c.l.b16 %v78
  %v654 = vunpack.c.l.b16 %v79
  %v655 = vunpack.c.l.b16 %v80
  %v656 = vunpack.c.l.b16 %v81
  %v657 = vunpack.c.l.b16 %v82
  %v658 = vunpack.c.l.b16 %v83
  %v659 = vunpack.c.l.b16 %v84
  %v660 = vunpack.c.l.b16 %v85
  %v661 = vunpack.c.l.b16 %v86
  %v662 = vunpack.c.l.b16 %v87
  %v663 = vunpack.c.l.b16 %v88
  %v664 = vunpack.c.l.b16 %v89
  %v665 = vunpack.c.l.b16 %v90
  %v666 = vunpack.c.l.b16 %v91
  %v667 = vunpack.c.l.b16 %v92
  %v668 = vunpack.c.l.b16 %v93
  %v669 = vunpack.c.l.b16 %v94
  %v670 = vunpack.c.l.b16 %v95
  %v671 = vunpack.c.l.b16 %v96
  %v672 = vunpack.c.l.b16 %v97
  %v673 = vunpack.c.l.b16 %v98
  %v674 = vunpack.c.l.b16 %v99
  %v675 = vunpack.c.l.b16 %v100
  %v676 = vunpack.c.l.b16 %v101
  %v677 = vunpack.c.l.b16 %v102
  %v678 = vunpack.c.l.b16 %v103
  %v679 = vunpack.c.l.b16 %v104
  %v680 = vunpack.c.l.b16 %v105
  %v681 = vunpack.c.l.b16 %v106
  %v682 = vunpack.c.l.b16 %v107
  %v683 = vunpack.c.l.b16 %v108
  %v684 = vunpack.c.l.b16 %v109
  %v685 = vunpack.c.l.b16 %v110
  %v686 = vunpack.c.l.b16 %v111
  %v687 = vunpack.c.l.b16 %v112
  %v688 = vunpack.c.l.b16 %v113
  %v689 = vunpack.c.l.b16 %v114
  %v690 = vunpack.c.l.b16 %v115
  %v691 = vunpack.c.l.b16 %v116
  %v692 = vunpack.c.l.b16 %v117
  %v693 = vunpack.c.l.b16 %v118
  %v694 = vunpack.c.l.b16 %v119
  %v695 = vunpack.c.l.b16 %v120
  %v696 = vunpack.c.l.b16 %v121
  %v697 = vunpack.c.l.b16 %v122
  %v698 = vunpack.c.l.b16 %v123
  %v699 = vunpack.c.l.b16 %v124
  %v700 = vunpack.c.l.b16 %v125
  %v701 = vunpack.c.l.b16 %v126
  %v702 = vunpack.c.l.b16 %v127
  %v703 = vunpack.c.l.b16 %v128
  %v704 = vunpack.c.l.b16 %v129
  %v705 = vunpack.c.l.b16 %v130
  %v706 = vunpack.c.l.b16 %v131
  %v707 = vunpack.c.l.b16 %v132
  %v708 = vunpack.c.l.b16 %v133
  %v709 = vunpack.c.l.b16 %v134
  %v710 = vunpack.c.l.b16 %v135
  %v711 = vunpack.c.l.b16 %v136
  %v712 = vunpack.c.l.b16 %v137
  %v713 = vunpack.c.l.b16 %v138
  %v714 = vunpack.c.l.b16 %v139
  %v715 = vunpack.c.l.b16 %v140
  %v716 = vunpack.c.l.b16 %v141
  %v717 = vunpack.c.l.b16 %v142
  %v718 = vunpack.c.l.b16 %v143
  %v719 = vunpack.c.l.b16 %v144
  %v720 = vunpack.c.l.b16 %v145
  %v721 = vunpack.c.l.b16 %v146
  %v722 = vunpack.c.l.b16 %v147
  %v723 = vunpack.c.l.b16 %v148
  %v724 = vunpack.c.l.b16 %v149
  %v725 = vunpack.c.l.b16 %v150
  %v726 = vunpack.c.l.b16 %v151
  %v727 = vunpack.c.l.b16 %v152
  %v728 = vunpack.c.l.b16 %v153
  %v729 = vunpack.c.l.b16 %v154
  %v730 = vunpack.c.l.b16 %v155
  %v731 = vunpack.c.l.b16 %v156
  %v732 = vunpack.c.l.b16 %v157
  %v733 = vunpack.c.l.b16 %v158
  %v734 = vunpack.c.l.b16 %v159
  %v735 = vunpack.c.l.b16 %v160
  %v736 = vunpack.c.l.b16 %v161
  %v737 = vunpack.c.l.b16 %v162
  %v738 = vunpack.c.l.b16 %v163
  %v739 = vunpack.c.l.b16 %v164
  %v740 = vunpack.c.l.b16 %v165
  %v741 = vunpack.c.l.b16 %v166
  %v742 = vunpack.c.l.b16 %v167
  %v743 = vunpack.c.l.b16 %v168
  %v744 = vunpack.c.l.b16 %v169
  %v745 = vunpack.c.l.b16 %v170
  %v746 = vunpack.c.l.b16 %v171
  %v747 = vunpack.c.l.b16 %v172
  %v748 = vunpack.c.l.b16 %v173
  %v749 = vunpack.c.l.b16 %v174
  %v750 = vunpack.c.l.b16 %v175
  %v751 = vunpack.c.l.b16 %v176
  %v752 = vunpack.c.l.b16 %v177
  %v753 = vunpack.c.l.b16 %v178
  %v754 = vunpack.c.l.b16 %v179
  %v755 = vunpack.c.l.b16 %v180
  %v756 = vunpack.c.l.b16 %v181
  %v757 = vunpack.c.l.b16 %v182
  %v758 = vunpack.c.l.b16 %v183
  %v759 = vunpack.c.l.b16 %v184
  %v760 = vunpack.c.l.b16 %v185
  %v761 = vunpack.c.l.b16 %v186
  %v762 = vunpack.c.l.b16 %v187
  %v763 = vunpack.c.l.b16 %v188
  %v764 = vunpack.c.l.b16 %v189
  %v765 = vunpack.c.l.b16 %v190
  %v766 = vunpack.c.l.b16 %v191
  %v767 = vunpack.c.l.b16 %v192
  %v768 = vunpack.c.l.b16 %v193
  %v769 = vunpack.c.l.b16 %v194
  %v770 = vunpack.c.l.b16 %v195
  %v771 = vunpack.c.l.b16 %v196
  %v772 = vunpack.c.l.b16 %v197
  %v773 = vunpack.c.l.b16 %v198
  %v774 = vunpack.c.l.b16 %v199
  %v775 = vunpack.c.l.b16 %v200
  %v776 = vunpack.c.l.b16 %v201
  %v777 = vunpack.c.l.b16 %v202
  %v778 = vunpack.c.l.b16 %v203
  %v779 = vunpack.c.l.b16 %v204
  %v780 = vunpack.c.l.b16 %v205
  %v781 = vunpack.c.l.b16 %v206
  %v782 = vunpack.c.l.b16 %v207
  %v783 = vunpack.c.l.b16 %v208
  %v784 = vunpack.c.l.b16 %v209
  %v785 = vunpack.c.l.b16 %v210
  %v786 = vunpack.c.l.b16 %v211
  %v787 = vunpack.c.l.b16 %v212
  %v788 = vunpack.c.l.b16 %v213
  %v789 = vunpack.c.l.b16 %v214
  %v790 = vunpack.c.l.b16 %v215
  %v791 = vunpack.c.l.b16 %v216
  %v792 = vunpack.c.l.b16 %v217
  %v793 = vunpack.c.l.b16 %v218
  %v794 = vunpack.c.l.b16 %v219
  %v795 = vunpack.c.l.b16 %v220
  %v796 = vunpack.c.l.b16 %v221
  %v797 = vunpack.c.l.b16 %v222
  %v798 = vunpack.c.l.b16 %v223
  %v799 = vunpack.c.l.b16 %v224
  %v800 = vunpack.c.l.b16 %v225
  %v801 = vunpack.c.l.b16 %v226
  %v802 = vunpack.c.l.b16 %v227
  %v803 = vunpack.c.l.b16 %v228
  %v804 = vunpack.c.l.b16 %v229
  %v805 = vunpack.c.l.b16 %v230
  %v806 = vunpack.c.l.b16 %v231
  %v807 = vunpack.c.l.b16 %v232
  %v808 = vunpack.c.l.b16 %v233
  %v809 = vunpack.c.l.b16 %v234
  %v810 = vunpack.c.l.b16 %v235
  %v811 = vunpack.c.l.b16 %v236
  %v812 = vunpack.c.l.b16 %v237
  %v813 = vunpack.c.l.b16 %v238
  %v814 = vunpack.c.l.b16 %v239
  %v815 = vunpack.c.l.b16 %v240
  %v816 = vunpack.c.l.b16 %v241
  %v817 = vunpack.c.l.b16 %v242
  %v818 = vunpack.c.l.b16 %v243
  %v819 = vunpack.c.l.b16 %v244
  %v820 = vunpack.c.l.b16 %v245
  %v821 = vunpack.c.l.b16 %v246
  %v822 = vunpack.c.l.b16 %v247
  %v823 = vunpack.c.l.b16 %v248
  %v824 = vunpack.c.l.b16 %v249
  %v825 = vunpack.c.l.b16 %v250
  %v826 = vunpack.c.l.b16 %v251
  %v827 = vunpack.c.l.b16 %v252
  %v828 = vunpack.c.l.b16 %v253
  %v829 = vunpack.c.l.b16 %v254
  %v830 = vunpack.c.l.b16 %v255
  %v831 = vunpack.c.l.b16 %v256
  %v832 = vunpack.c.l.b16 %v257
  %v833 = vunpack.c.l.b16 %v258
  %v834 = vunpack.c.l.b16 %v259
  %v835 = vunpack.c.l.b16 %v260
  %v836 = vunpack.c.l.b16 %v261
  %v837 = vunpack.c.l.b16 %v262
  %v838 = vunpack.c.l.b16 %v263
  %v839 = vunpack.c.l.b16 %v264
  %v840 = vunpack.c.l.b16 %v265
  %v841 = vunpack.c.l.b16 %v266
  %v842 = vunpack.c.l.b16 %v267
  %v843 = vunpack.c.l.b16 %v268
  %v844 = vunpack.c.l.b16 %v269
  %v845 = vunpack.c.l.b16 %v270
  %v846 = vunpack.c.l.b16 %v271
  %v847 = vunpack.c.l.b16 %v272
  %v848 = vunpack.c.l.b16 %v273
  %v849 = vunpack.c.l.b16 %v274
  %v850 = vunpack.c.l.b16 %v275
  %v851 = vunpack.c.l.b16 %v276
  %v852 = vunpack.c.l.b16 %v277
  %v853 = vunpack.c.l.b16 %v278
  %v854 = vpack.c.b16 %v599, %v598
  %v855 = vpack.c.b16 %v601, %v600
  %v856 = vpack.c.b16 %v603, %v602
  %v857 = vpack.c.b16 %v605, %v604
  %v858 = vpack.c.b16 %v607, %v606
  %v859 = vpack.c.b16 %v609, %v608
  %v860 = vpack.c.b16 %v611, %v610
  %v861 = vpack.c.b16 %v613, %v612
  %v862 = vpack.c.b16 %v615, %v614
  %v863 = vpack.c.b16 %v617, %v616
  %v864 = vpack.c.b16 %v619, %v618
  %v865 = vpack.c.b16 %v621, %v620
  %v866 = vpack.c.b16 %v623, %v622
  %v867 = vpack.c.b16 %v625, %v624
  %v868 = vpack.c.b16 %v627, %v626
  %v869 = vpack.c.b16 %v629, %v628
  %v870 = vpack.c.b16 %v631, %v630
  %v871 = vpack.c.b16 %v633, %v632
  %v872 = vpack.c.b16 %v635, %v634
  %v873 = vpack.c.b16 %v637, %v636
  %v874 = vpack.c.b16 %v639, %v638
  %v875 = vpack.c.b16 %v641, %v640
  %v876 = vpack.c.b16 %v643, %v642
  %v877 = vpack.c.b16 %v645, %v644
  %v878 = vpack.c.b16 %v647, %v646
  %v879 = vpack.c.b16 %v649, %v648
  %v880 = vpack.c.b16 %v651, %v650
  %v881 = vpack.c.b16 %v653, %v652
  %v882 = vpack.c.b16 %v655, %v654
  %v883 = vpack.c.b16 %v657, %v656
  %v884 = vpack.c.b16 %v659, %v658
  %v885 = vpack.c.b16 %v661, %v660
  %v886 = vpack.c.b16 %v663, %v662
  %v887 = vpack.c.b16 %v665, %v664
  %v888 = vpack.c.b16 %v667, %v666
  %v889 = vpack.c.b16 %v669, %v668
  %v890 = vpack.c.b16 %v671, %v670
  %v891 = vpack.c.b16 %v673, %v672
  %v892 = vpack.c.b16 %v675, %v674
  %v893 = vpack.c.b16 %v677, %v676
  %v894 = vpack.c.b16 %v679, %v678
  %v895 = vpack.c.b16 %v681, %v680
  %v896 = vpack.c.b16 %v683, %v682
  %v897 = vpack.c.b16 %v685, %v684
  %v898 = vpack.c.b16 %v687, %v686
  %v899 = vpack.c.b16 %v689, %v688
  %v900 = vpack.c.b16 %v691, %v690
  %v901 = vpack.c.b16 %v693, %v692
  %v902 = vpack.c.b16 %v695, %v694
  %v903 = vpack.c.b16 %v697, %v696
  %v904 = vpack.c.b16 %v699, %v698
  %v905 = vpack.c.b16 %v701, %v700
  %v906 = vpack.c.b16 %v703, %v702
  %v907 = vpack.c.b16 %v705, %v704
  %v908 = vpack.c.b16 %v707, %v706
  %v909 = vpack.c.b16 %v709, %v708
  %v910 = vpack.c.b16 %v711, %v710
  %v911 = vpack.c.b16 %v713, %v712
  %v912 = vpack.c.b16 %v715, %v714
  %v913 = vpack.c.b16 %v717, %v716
  %v914 = vpack.c.b16 %v719, %v718
  %v915 = vpack.c.b16 %v721, %v720
  %v916 = vpack.c.b16 %v723, %v722
  %v917 = vpack.c.b16 %v725, %v724
  %v918 = vpack.c.b16 %v727, %v726
  %v919 = vpack.c.b16 %v729, %v728
  %v920 = vpack.c.b16 %v731, %v730
  %v921 = vpack.c.b16 %v733, %v732
  %v922 = vpack.c.b16 %v735, %v734
  %v923 = vpack.c.b16 %v737, %v736
  %v924 = vpack.c.b16 %v739, %v738
  %v925 = vpack.c.b16 %v741, %v740
  %v926 = vpack.c.b16 %v743, %v742
  %v927 = vpack.c.b16 %v745, %v744
  %v928 = vpack.c.b16 %v747, %v746
  %v929 = vpack.c.b16 %v749, %v748
  %v930 = vpack.c.b16 %v751, %v750
  %v931 = vpack.c.b16 %v753, %v752
  %v932 = vpack.c.b16 %v755, %v754
  %v933 = vpack.c.b16 %v757, %v756
  %v934 = vpack.c.b16 %v759, %v758
  %v935 = vpack.c.b16 %v761, %v760
  %v936 = vpack.c.b16 %v763, %v762
  %v937 = vpack.c.b16 %v765, %v764
  %v938 = vpack.c.b16 %v767, %v766
  %v939 = vpack.c.b16 %v769, %v768
  %v940 = vpack.c.b16 %v771, %v770
  %v941 = vpack.c.b16 %v773, %v772
  %v942 = vpack.c.b16 %v775, %v774
  %v943 = vpack.c.b16 %v777, %v776
  %v944 = vpack.c.b16 %v779, %v778
  %v945 = vpack.c.b16 %v781, %v780
  %v946 = vpack.c.b16 %v783, %v782
  %v947 = vpack.c.b16 %v785, %v784
  %v948 = vpack.c.b16 %v787, %v786
  %v949 = vpack.c.b16 %v789, %v788
  %v950 = vpack.c.b16 %v791, %v790
  %v951 = vpack.c.b16 %v793, %v792
  %v952 = vpack.c.b16 %v795, %v794
  %v953 = vpack.c.b16 %v797, %v796
  %v954 = vpack.c.b16 %v799, %v798
  %v955 = vpack.c.b16 %v801, %v800
  %v956 = vpack.c.b16 %v803, %v802
  %v957 = vpack.c.b16 %v805, %v804
  %v958 = vpack.c.b16 %v807, %v806
  %v959 = vpack.c.b16 %v809, %v808
  %v960 = vpack.c.b16 %v811, %v810
  %v961 = vpack.c.b16 %v813, %v812
  %v962 = vpack.c.b16 %v815, %v814
  %v963 = vpack.c.b16 %v817, %v816
  %v964 = vpack.c.b16 %v819, %v818
  %v965 = vpack.c.b16 %v821, %v820
  %v966 = vpack.c.b16 %v823, %v822
  %v967 = vpack.c.b16 %v825, %v824
  %v968 = vpack.c.b16 %v827, %v826
  %v969 = vpack.c.b16 %v829, %v828
  %v970 = vpack.c.b16 %v831, %v830
  %v971 = vpack.c.b16 %v833, %v832
  %v972 = vpack.c.b16 %v835, %v834
  %v973 = vpack.c.b16 %v837, %v836
  %v974 = vpack.c.b16 %v839, %v838
  %v975 = vpack.c.b16 %v841, %v840
  %v976 = vpack.c.b16 %v843, %v842
  %v977 = vpack.c.b16 %v845, %v844
  %v978 = vpack.c.b16 %v847, %v846
  %v979 = vpack.c.b16 %v849, %v848
  %v980 = vpack.c.b16 %v851, %v850
  %v981 = vpack.c.b16 %v853, %v852
  %1110 = vmatprep.subr.bf16.mxu0 0
  %1111 = vmatpush1.bf16.msra.mxu0 %v854
  %1112 = vmatprep.subr.bf16.mxu0 0
  %1113 = vmatpush1.bf16.msra.mxu0 %v855
  %1114 = vmatprep.subr.bf16.mxu0 0
  %1115 = vmatpush1.bf16.msra.mxu0 %v856
  %1116 = vmatprep.subr.bf16.mxu0 0
  %1117 = vmatpush1.bf16.msra.mxu0 %v857
  %1118 = vmatprep.subr.bf16.mxu0 0
  %1119 = vmatpush1.bf16.msra.mxu0 %v858
  %1120 = vmatprep.subr.bf16.mxu0 0
  %1121 = vmatpush1.bf16.msra.mxu0 %v859
  %1122 = vmatprep.subr.bf16.mxu0 0
  %1123 = vmatpush1.bf16.msra.mxu0 %v860
  %1124 = vmatprep.subr.bf16.mxu0 0
  %1125 = vmatpush1.bf16.msra.mxu0 %v861
  %1126 = vmatprep.subr.bf16.mxu0 0
  %1127 = vmatpush1.bf16.msra.mxu0 %v862
  %1128 = vmatprep.subr.bf16.mxu0 0
  %1129 = vmatpush1.bf16.msra.mxu0 %v863
  %1130 = vmatprep.subr.bf16.mxu0 0
  %1131 = vmatpush1.bf16.msra.mxu0 %v864
  %1132 = vmatprep.subr.bf16.mxu0 0
  %1133 = vmatpush1.bf16.msra.mxu0 %v865
  %1134 = vmatprep.subr.bf16.mxu0 0
  %1135 = vmatpush1.bf16.msra.mxu0 %v866
  %1136 = vmatprep.subr.bf16.mxu0 0
  %1137 = vmatpush1.bf16.msra.mxu0 %v867
  %1138 = vmatprep.subr.bf16.mxu0 0
  %1139 = vmatpush1.bf16.msra.mxu0 %v868
  %1140 = vmatprep.subr.bf16.mxu0 0
  %1141 = vmatpush1.bf16.msra.mxu0 %v869
  %1142 = vmatprep.mubr.bf16.mxu0 %v311
  %1143 = vmatmul.mubr.bf16.gmra.mrb[0].mxu0 %v310
  %v1144 = vpop.f32.mrb[0].mxu0
  %v1145 = vadd.f32 %v284, %v1144
  %v1146 = vpop.f32.mrb[0].mxu0
  %v1147 = vpop.f32.mrb[0].mxu0
  %v1148 = vpop.f32.mrb[0].mxu0
  %1149 = vdwg.mxu0
  %1150 = vmatprep.subr.bf16.mxu0 0
  %1151 = vmatpush1.bf16.msra.mxu0 %v870
  %1152 = vmatprep.subr.bf16.mxu0 0
  %1153 = vmatpush1.bf16.msra.mxu0 %v871
  %1154 = vmatprep.subr.bf16.mxu0 0
  %1155 = vmatpush1.bf16.msra.mxu0 %v872
  %1156 = vmatprep.subr.bf16.mxu0 0
  %1157 = vmatpush1.bf16.msra.mxu0 %v873
  %1158 = vmatprep.subr.bf16.mxu0 0
  %1159 = vmatpush1.bf16.msra.mxu0 %v874
  %1160 = vmatprep.subr.bf16.mxu0 0
  %1161 = vmatpush1.bf16.msra.mxu0 %v875
  %1162 = vmatprep.subr.bf16.mxu0 0
  %1163 = vmatpush1.bf16.msra.mxu0 %v876
  %1164 = vmatprep.subr.bf16.mxu0 0
  %1165 = vmatpush1.bf16.msra.mxu0 %v877
  %1166 = vmatprep.subr.bf16.mxu0 0
  %1167 = vmatpush1.bf16.msra.mxu0 %v878
  %1168 = vmatprep.subr.bf16.mxu0 0
  %1169 = vmatpush1.bf16.msra.mxu0 %v879
  %1170 = vmatprep.subr.bf16.mxu0 0
  %1171 = vmatpush1.bf16.msra.mxu0 %v880
  %1172 = vmatprep.subr.bf16.mxu0 0
  %1173 = vmatpush1.bf16.msra.mxu0 %v881
  %1174 = vmatprep.subr.bf16.mxu0 0
  %1175 = vmatpush1.bf16.msra.mxu0 %v882
  %1176 = vmatprep.subr.bf16.mxu0 0
  %1177 = vmatpush1.bf16.msra.mxu0 %v883
  %1178 = vmatprep.subr.bf16.mxu0 0
  %1179 = vmatpush1.bf16.msra.mxu0 %v884
  %1180 = vmatprep.subr.bf16.mxu0 0
  %1181 = vmatpush1.bf16.msra.mxu0 %v885
  %1182 = vmatprep.mubr.bf16.mxu0 %v313
  %1183 = vmatmul.mubr.bf16.gmra.mrb[0].mxu0 %v312
  %v1184 = vpop.f32.mrb[0].mxu0
  %v1185 = vadd.f32 %v1145, %v1184
  %v1186 = vpop.f32.mrb[0].mxu0
  %v1187 = vpop.f32.mrb[0].mxu0
  %v1188 = vpop.f32.mrb[0].mxu0
  %1189 = vdwg.mxu0
  %1190 = vmatprep.subr.bf16.mxu0 0
  %1191 = vmatpush1.bf16.msra.mxu0 %v886
  %1192 = vmatprep.subr.bf16.mxu0 0
  %1193 = vmatpush1.bf16.msra.mxu0 %v887
  %1194 = vmatprep.subr.bf16.mxu0 0
  %1195 = vmatpush1.bf16.msra.mxu0 %v888
  %1196 = vmatprep.subr.bf16.mxu0 0
  %1197 = vmatpush1.bf16.msra.mxu0 %v889
  %1198 = vmatprep.subr.bf16.mxu0 0
  %1199 = vmatpush1.bf16.msra.mxu0 %v890
  %1200 = vmatprep.subr.bf16.mxu0 0
  %1201 = vmatpush1.bf16.msra.mxu0 %v891
  %1202 = vmatprep.subr.bf16.mxu0 0
  %1203 = vmatpush1.bf16.msra.mxu0 %v892
  %1204 = vmatprep.subr.bf16.mxu0 0
  %1205 = vmatpush1.bf16.msra.mxu0 %v893
  %1206 = vmatprep.subr.bf16.mxu0 0
  %1207 = vmatpush1.bf16.msra.mxu0 %v894
  %1208 = vmatprep.subr.bf16.mxu0 0
  %1209 = vmatpush1.bf16.msra.mxu0 %v895
  %1210 = vmatprep.subr.bf16.mxu0 0
  %1211 = vmatpush1.bf16.msra.mxu0 %v896
  %1212 = vmatprep.subr.bf16.mxu0 0
  %1213 = vmatpush1.bf16.msra.mxu0 %v897
  %1214 = vmatprep.subr.bf16.mxu0 0
  %1215 = vmatpush1.bf16.msra.mxu0 %v898
  %1216 = vmatprep.subr.bf16.mxu0 0
  %1217 = vmatpush1.bf16.msra.mxu0 %v899
  %1218 = vmatprep.subr.bf16.mxu0 0
  %1219 = vmatpush1.bf16.msra.mxu0 %v900
  %1220 = vmatprep.subr.bf16.mxu0 0
  %1221 = vmatpush1.bf16.msra.mxu0 %v901
  %1222 = vmatprep.mubr.bf16.mxu0 %v315
  %1223 = vmatmul.mubr.bf16.gmra.mrb[0].mxu0 %v314
  %v1224 = vpop.f32.mrb[0].mxu0
  %v1225 = vadd.f32 %v1185, %v1224
  %v1226 = vpop.f32.mrb[0].mxu0
  %v1227 = vpop.f32.mrb[0].mxu0
  %v1228 = vpop.f32.mrb[0].mxu0
  %1229 = vdwg.mxu0
  %1230 = vmatprep.subr.bf16.mxu0 0
  %1231 = vmatpush1.bf16.msra.mxu0 %v902
  %1232 = vmatprep.subr.bf16.mxu0 0
  %1233 = vmatpush1.bf16.msra.mxu0 %v903
  %1234 = vmatprep.subr.bf16.mxu0 0
  %1235 = vmatpush1.bf16.msra.mxu0 %v904
  %1236 = vmatprep.subr.bf16.mxu0 0
  %1237 = vmatpush1.bf16.msra.mxu0 %v905
  %1238 = vmatprep.subr.bf16.mxu0 0
  %1239 = vmatpush1.bf16.msra.mxu0 %v906
  %1240 = vmatprep.subr.bf16.mxu0 0
  %1241 = vmatpush1.bf16.msra.mxu0 %v907
  %1242 = vmatprep.subr.bf16.mxu0 0
  %1243 = vmatpush1.bf16.msra.mxu0 %v908
  %1244 = vmatprep.subr.bf16.mxu0 0
  %1245 = vmatpush1.bf16.msra.mxu0 %v909
  %1246 = vmatprep.subr.bf16.mxu0 0
  %1247 = vmatpush1.bf16.msra.mxu0 %v910
  %1248 = vmatprep.subr.bf16.mxu0 0
  %1249 = vmatpush1.bf16.msra.mxu0 %v911
  %1250 = vmatprep.subr.bf16.mxu0 0
  %1251 = vmatpush1.bf16.msra.mxu0 %v912
  %1252 = vmatprep.subr.bf16.mxu0 0
  %1253 = vmatpush1.bf16.msra.mxu0 %v913
  %1254 = vmatprep.subr.bf16.mxu0 0
  %1255 = vmatpush1.bf16.msra.mxu0 %v914
  %1256 = vmatprep.subr.bf16.mxu0 0
  %1257 = vmatpush1.bf16.msra.mxu0 %v915
  %1258 = vmatprep.subr.bf16.mxu0 0
  %1259 = vmatpush1.bf16.msra.mxu0 %v916
  %1260 = vmatprep.subr.bf16.mxu0 0
  %1261 = vmatpush1.bf16.msra.mxu0 %v917
  %1262 = vmatprep.mubr.bf16.mxu0 %v317
  %1263 = vmatmul.mubr.bf16.gmra.mrb[0].mxu0 %v316
  %v1264 = vpop.f32.mrb[0].mxu0
  %v1265 = vadd.f32 %v1225, %v1264
  %v1266 = vpop.f32.mrb[0].mxu0
  %v1267 = vpop.f32.mrb[0].mxu0
  %v1268 = vpop.f32.mrb[0].mxu0
  %1269 = vdwg.mxu0
  %1270 = vmatprep.subr.bf16.mxu0 0
  %1271 = vmatpush1.bf16.msra.mxu0 %v918
  %1272 = vmatprep.subr.bf16.mxu0 0
  %1273 = vmatpush1.bf16.msra.mxu0 %v919
  %1274 = vmatprep.subr.bf16.mxu0 0
  %1275 = vmatpush1.bf16.msra.mxu0 %v920
  %1276 = vmatprep.subr.bf16.mxu0 0
  %1277 = vmatpush1.bf16.msra.mxu0 %v921
  %1278 = vmatprep.subr.bf16.mxu0 0
  %1279 = vmatpush1.bf16.msra.mxu0 %v922
  %1280 = vmatprep.subr.bf16.mxu0 0
  %1281 = vmatpush1.bf16.msra.mxu0 %v923
  %1282 = vmatprep.subr.bf16.mxu0 0
  %1283 = vmatpush1.bf16.msra.mxu0 %v924
  %1284 = vmatprep.subr.bf16.mxu0 0
  %1285 = vmatpush1.bf16.msra.mxu0 %v925
  %1286 = vmatprep.subr.bf16.mxu0 0
  %1287 = vmatpush1.bf16.msra.mxu0 %v926
  %1288 = vmatprep.subr.bf16.mxu0 0
  %1289 = vmatpush1.bf16.msra.mxu0 %v927
  %1290 = vmatprep.subr.bf16.mxu0 0
  %1291 = vmatpush1.bf16.msra.mxu0 %v928
  %1292 = vmatprep.subr.bf16.mxu0 0
  %1293 = vmatpush1.bf16.msra.mxu0 %v929
  %1294 = vmatprep.subr.bf16.mxu0 0
  %1295 = vmatpush1.bf16.msra.mxu0 %v930
  %1296 = vmatprep.subr.bf16.mxu0 0
  %1297 = vmatpush1.bf16.msra.mxu0 %v931
  %1298 = vmatprep.subr.bf16.mxu0 0
  %1299 = vmatpush1.bf16.msra.mxu0 %v932
  %1300 = vmatprep.subr.bf16.mxu0 0
  %1301 = vmatpush1.bf16.msra.mxu0 %v933
  %1302 = vmatprep.mubr.bf16.mxu0 %v319
  %1303 = vmatmul.mubr.bf16.gmra.mrb[0].mxu0 %v318
  %v1304 = vpop.f32.mrb[0].mxu0
  %v1305 = vadd.f32 %v1265, %v1304
  %v1306 = vpop.f32.mrb[0].mxu0
  %v1307 = vpop.f32.mrb[0].mxu0
  %v1308 = vpop.f32.mrb[0].mxu0
  %1309 = vdwg.mxu0
  %1310 = vmatprep.subr.bf16.mxu0 0
  %1311 = vmatpush1.bf16.msra.mxu0 %v934
  %1312 = vmatprep.subr.bf16.mxu0 0
  %1313 = vmatpush1.bf16.msra.mxu0 %v935
  %1314 = vmatprep.subr.bf16.mxu0 0
  %1315 = vmatpush1.bf16.msra.mxu0 %v936
  %1316 = vmatprep.subr.bf16.mxu0 0
  %1317 = vmatpush1.bf16.msra.mxu0 %v937
  %1318 = vmatprep.subr.bf16.mxu0 0
  %1319 = vmatpush1.bf16.msra.mxu0 %v938
  %1320 = vmatprep.subr.bf16.mxu0 0
  %1321 = vmatpush1.bf16.msra.mxu0 %v939
  %1322 = vmatprep.subr.bf16.mxu0 0
  %1323 = vmatpush1.bf16.msra.mxu0 %v940
  %1324 = vmatprep.subr.bf16.mxu0 0
  %1325 = vmatpush1.bf16.msra.mxu0 %v941
  %1326 = vmatprep.subr.bf16.mxu0 0
  %1327 = vmatpush1.bf16.msra.mxu0 %v942
  %1328 = vmatprep.subr.bf16.mxu0 0
  %1329 = vmatpush1.bf16.msra.mxu0 %v943
  %1330 = vmatprep.subr.bf16.mxu0 0
  %1331 = vmatpush1.bf16.msra.mxu0 %v944
  %1332 = vmatprep.subr.bf16.mxu0 0
  %1333 = vmatpush1.bf16.msra.mxu0 %v945
  %1334 = vmatprep.subr.bf16.mxu0 0
  %1335 = vmatpush1.bf16.msra.mxu0 %v946
  %1336 = vmatprep.subr.bf16.mxu0 0
  %1337 = vmatpush1.bf16.msra.mxu0 %v947
  %1338 = vmatprep.subr.bf16.mxu0 0
  %1339 = vmatpush1.bf16.msra.mxu0 %v948
  %1340 = vmatprep.subr.bf16.mxu0 0
  %1341 = vmatpush1.bf16.msra.mxu0 %v949
  %1342 = vmatprep.mubr.bf16.mxu0 %v321
  %1343 = vmatmul.mubr.bf16.gmra.mrb[0].mxu0 %v320
  %v1344 = vpop.f32.mrb[0].mxu0
  %v1345 = vadd.f32 %v1305, %v1344
  %v1346 = vpop.f32.mrb[0].mxu0
  %v1347 = vpop.f32.mrb[0].mxu0
  %v1348 = vpop.f32.mrb[0].mxu0
  %1349 = vdwg.mxu0
  %1350 = vmatprep.subr.bf16.mxu0 0
  %1351 = vmatpush1.bf16.msra.mxu0 %v950
  %1352 = vmatprep.subr.bf16.mxu0 0
  %1353 = vmatpush1.bf16.msra.mxu0 %v951
  %1354 = vmatprep.subr.bf16.mxu0 0
  %1355 = vmatpush1.bf16.msra.mxu0 %v952
  %1356 = vmatprep.subr.bf16.mxu0 0
  %1357 = vmatpush1.bf16.msra.mxu0 %v953
  %1358 = vmatprep.subr.bf16.mxu0 0
  %1359 = vmatpush1.bf16.msra.mxu0 %v954
  %1360 = vmatprep.subr.bf16.mxu0 0
  %1361 = vmatpush1.bf16.msra.mxu0 %v955
  %1362 = vmatprep.subr.bf16.mxu0 0
  %1363 = vmatpush1.bf16.msra.mxu0 %v956
  %1364 = vmatprep.subr.bf16.mxu0 0
  %1365 = vmatpush1.bf16.msra.mxu0 %v957
  %1366 = vmatprep.subr.bf16.mxu0 0
  %1367 = vmatpush1.bf16.msra.mxu0 %v958
  %1368 = vmatprep.subr.bf16.mxu0 0
  %1369 = vmatpush1.bf16.msra.mxu0 %v959
  %1370 = vmatprep.subr.bf16.mxu0 0
  %1371 = vmatpush1.bf16.msra.mxu0 %v960
  %1372 = vmatprep.subr.bf16.mxu0 0
  %1373 = vmatpush1.bf16.msra.mxu0 %v961
  %1374 = vmatprep.subr.bf16.mxu0 0
  %1375 = vmatpush1.bf16.msra.mxu0 %v962
  %1376 = vmatprep.subr.bf16.mxu0 0
  %1377 = vmatpush1.bf16.msra.mxu0 %v963
  %1378 = vmatprep.subr.bf16.mxu0 0
  %1379 = vmatpush1.bf16.msra.mxu0 %v964
  %1380 = vmatprep.subr.bf16.mxu0 0
  %1381 = vmatpush1.bf16.msra.mxu0 %v965
  %1382 = vmatprep.mubr.bf16.mxu0 %v323
  %1383 = vmatmul.mubr.bf16.gmra.mrb[0].mxu0 %v322
  %v1384 = vpop.f32.mrb[0].mxu0
  %v1385 = vadd.f32 %v1345, %v1384
  %v1386 = vpop.f32.mrb[0].mxu0
  %v1387 = vpop.f32.mrb[0].mxu0
  %v1388 = vpop.f32.mrb[0].mxu0
  %1389 = vdwg.mxu0
  %1390 = vmatprep.subr.bf16.mxu0 0
  %1391 = vmatpush1.bf16.msra.mxu0 %v966
  %1392 = vmatprep.subr.bf16.mxu0 0
  %1393 = vmatpush1.bf16.msra.mxu0 %v967
  %1394 = vmatprep.subr.bf16.mxu0 0
  %1395 = vmatpush1.bf16.msra.mxu0 %v968
  %1396 = vmatprep.subr.bf16.mxu0 0
  %1397 = vmatpush1.bf16.msra.mxu0 %v969
  %1398 = vmatprep.subr.bf16.mxu0 0
  %1399 = vmatpush1.bf16.msra.mxu0 %v970
  %1400 = vmatprep.subr.bf16.mxu0 0
  %1401 = vmatpush1.bf16.msra.mxu0 %v971
  %1402 = vmatprep.subr.bf16.mxu0 0
  %1403 = vmatpush1.bf16.msra.mxu0 %v972
  %1404 = vmatprep.subr.bf16.mxu0 0
  %1405 = vmatpush1.bf16.msra.mxu0 %v973
  %1406 = vmatprep.subr.bf16.mxu0 0
  %1407 = vmatpush1.bf16.msra.mxu0 %v974
  %1408 = vmatprep.subr.bf16.mxu0 0
  %1409 = vmatpush1.bf16.msra.mxu0 %v975
  %1410 = vmatprep.subr.bf16.mxu0 0
  %1411 = vmatpush1.bf16.msra.mxu0 %v976
  %1412 = vmatprep.subr.bf16.mxu0 0
  %1413 = vmatpush1.bf16.msra.mxu0 %v977
  %1414 = vmatprep.subr.bf16.mxu0 0
  %1415 = vmatpush1.bf16.msra.mxu0 %v978
  %1416 = vmatprep.subr.bf16.mxu0 0
  %1417 = vmatpush1.bf16.msra.mxu0 %v979
  %1418 = vmatprep.subr.bf16.mxu0 0
  %1419 = vmatpush1.bf16.msra.mxu0 %v980
  %1420 = vmatprep.subr.bf16.mxu0 0
  %1421 = vmatpush1.bf16.msra.mxu0 %v981
  %1422 = vmatprep.mubr.bf16.mxu0 %v325
  %1423 = vmatmul.mubr.bf16.gmra.mrb[0].mxu0 %v324
  %v1424 = vpop.f32.mrb[0].mxu0
  %v1425 = vadd.f32 %v1385, %v1424
  %v1426 = vpop.f32.mrb[0].mxu0
  %v1427 = vpop.f32.mrb[0].mxu0
  %v1428 = vpop.f32.mrb[0].mxu0
  %1429 = vdwg.mxu0
  %1430 = vst [vmem:[%s3] sm:$0xff] %v1425
  // Predicated region
  $region14: #{_lambda_.15} parent=0 // pred_check
    _
  $region15: #{_lambda_.15} parent=0 // pred_check_branch
    %1432 = sbr.rel (0) target = $region17
  $region16: #{_lambda_.15} parent=0 // pred_region
    _
  $region17: #{_lambda_.15} parent=0 // pred_fallthru
    _
  // Predicated region
  $region18: #{_lambda_.15} parent=0 // pred_check
    _
  $region19: #{_lambda_.15} parent=0 // pred_check_branch
    %1434 = sbr.rel (0) target = $region21
  $region20: #{_lambda_.15} parent=0 // pred_region
    _
  $region21: #{_lambda_.15} parent=0 // pred_fallthru
    _

</llo_original>
